<compile_context>
chip_gen: v5e
topology: v5e:2x2
jax: 0.10.0
libtpu: 0.0.40
codegen_flags: <defaults>
</compile_context>

<pallas_src>
import jax
import jax.numpy as jnp
from jax import lax
from jax.experimental import pallas as pl
from jax.experimental.pallas import tpu as pltpu


# ----------------------------------------------------------------------------
# Kernel
# ----------------------------------------------------------------------------
def lstm_kernel(x_ref,                       # (T, Bp, D)   time-major padded input
                wih1_ref, whh1_ref, b1_ref,  # (D, G) (Hp, G) (1, G)
                wih2_ref, whh2_ref, b2_ref,  # (Hp, G) (Hp, G) (1, G)
                wfc_ref, bfc_ref,            # (Hp, O) (1, O)
                out_ref,                     # (Bp, O)
                gin1_sc, gin2_sc, h1seq_sc): # scratch: (T,Bp,G) (T,Bp,G) (T,Bp,Hp)
    T, Bp, D = x_ref.shape
    Hp = whh1_ref.shape[0]
    G = 4 * Hp

    def cell(gin, h, c, whh):
        # gin already contains x_t @ W_ih + b (hoisted); one recurrent matmul here.
        gates = gin + jnp.dot(h, whh, preferred_element_type=jnp.float32)
        i = jax.nn.sigmoid(gates[:, 0 * Hp:1 * Hp])
        f = jax.nn.sigmoid(gates[:, 1 * Hp:2 * Hp])
        g = jnp.tanh(gates[:, 2 * Hp:3 * Hp])
        o = jax.nn.sigmoid(gates[:, 3 * Hp:4 * Hp])
        c_new = f * c + i * g
        h_new = o * jnp.tanh(c_new)
        return h_new, c_new

    # ---- Layer 1: hoisted input projection (one big matmul, bias added once) ----
    x_all = x_ref[...].reshape(T * Bp, D)                       # (T*Bp, D)
    gin1 = (jnp.dot(x_all, wih1_ref[...], preferred_element_type=jnp.float32)
            + b1_ref[...])                                      # (T*Bp, G)
    gin1_sc[...] = gin1.reshape(T, Bp, G)

    # ---- Layer 1 recurrence: one (Bp,Hp)x(Hp,G) matmul per step ----
    whh1 = whh1_ref[...]
    h1 = jnp.zeros((Bp, Hp), jnp.float32)
    c1 = jnp.zeros((Bp, Hp), jnp.float32)
    for t in range(T):                      # static unroll; T is small
        h1, c1 = cell(gin1_sc[t], h1, c1, whh1)
        h1seq_sc[t] = h1

    # TODO(synk): inter-layer dropout (p=0.3) is identity here (eval mode).

    # ---- Layer 2: hoisted input projection over the whole h1 sequence ----
    h1_all = h1seq_sc[...].reshape(T * Bp, Hp)                  # (T*Bp, Hp)
    gin2 = (jnp.dot(h1_all, wih2_ref[...], preferred_element_type=jnp.float32)
            + b2_ref[...])                                      # (T*Bp, G)
    gin2_sc[...] = gin2.reshape(T, Bp, G)

    # ---- Layer 2 recurrence ----
    whh2 = whh2_ref[...]
    h2 = jnp.zeros((Bp, Hp), jnp.float32)
    c2 = jnp.zeros((Bp, Hp), jnp.float32)
    for t in range(T):
        h2, c2 = cell(gin2_sc[t], h2, c2, whh2)

    # ---- Final Linear on the last-timestep hidden state of the top layer ----
    out_ref[...] = (jnp.dot(h2, wfc_ref[...], preferred_element_type=jnp.float32)
                    + bfc_ref[...]).astype(out_ref.dtype)


# ----------------------------------------------------------------------------
# Wrapper (padding + pallas_call)
# ----------------------------------------------------------------------------
def _pad_gate_cols(w, H, Hp):
    """(in, 4H) -> (in, 4Hp): each gate block padded with zero columns to Hp lanes."""
    in_dim = w.shape[0]
    w4 = w.reshape(in_dim, 4, H)
    w4 = jnp.pad(w4, ((0, 0), (0, 0), (0, Hp - H)))
    return w4.reshape(in_dim, 4 * Hp)


def _pad_rows(w, Hp):
    """Zero-pad leading (input) dim to Hp."""
    return jnp.pad(w, ((0, Hp - w.shape[0]), (0, 0)))


def lstm_model_forward(x, params):
    """x: (B, T, D) float32 (batch_first, like the PyTorch module)."""
    B, T, D = x.shape
    H = params["whh1"].shape[0]
    O = params["wfc"].shape[1]

    Bp = ((B + 7) // 8) * 8          # full sublane tile
    Hp = ((H + 127) // 128) * 128    # full lane tile per gate
    G = 4 * Hp

    # Time-major + batch pad (XLA fuses this into a single copy).
    x_tm = jnp.transpose(x, (1, 0, 2))                     # (T, B, D)
    x_tm = jnp.pad(x_tm, ((0, 0), (0, Bp - B), (0, 0)))    # (T, Bp, D)

    wih1 = _pad_gate_cols(params["wih1"], H, Hp)                  # (D, G)
    whh1 = _pad_rows(_pad_gate_cols(params["whh1"], H, Hp), Hp)   # (Hp, G)
    b1 = _pad_gate_cols(params["b1"], H, Hp)                      # (1, G)
    wih2 = _pad_rows(_pad_gate_cols(params["wih2"], H, Hp), Hp)   # (Hp, G)
    whh2 = _pad_rows(_pad_gate_cols(params["whh2"], H, Hp), Hp)   # (Hp, G)
    b2 = _pad_gate_cols(params["b2"], H, Hp)                      # (1, G)
    wfc = jnp.pad(params["wfc"], ((0, Hp - H), (0, 0)))           # (Hp, O)
    bfc = params["bfc"]                                           # (1, O)

    full2 = lambda i: (0, 0)
    out = pl.pallas_call(
        lstm_kernel,
        out_shape=jax.ShapeDtypeStruct((Bp, O), jnp.float32),
        grid=(1,),
        in_specs=[
            pl.BlockSpec((T, Bp, D), lambda i: (0, 0, 0)),  # x (time-major, padded)
            pl.BlockSpec((D, G), full2),                    # W_ih layer1
            pl.BlockSpec((Hp, G), full2),                   # W_hh layer1
            pl.BlockSpec((1, G), full2),                    # b layer1 (b_ih + b_hh)
            pl.BlockSpec((Hp, G), full2),                   # W_ih layer2
            pl.BlockSpec((Hp, G), full2),                   # W_hh layer2
            pl.BlockSpec((1, G), full2),                    # b layer2
            pl.BlockSpec((Hp, O), full2),                   # fc weight
            pl.BlockSpec((1, O), full2),                    # fc bias
        ],
        out_specs=pl.BlockSpec((Bp, O), full2),
        scratch_shapes=[
            pltpu.VMEM((T, Bp, G), jnp.float32),    # hoisted layer-1 input projections
            pltpu.VMEM((T, Bp, G), jnp.float32),    # hoisted layer-2 input projections
            pltpu.VMEM((T, Bp, Hp), jnp.float32),   # layer-1 hidden-state sequence
        ],
        compiler_params=pltpu.CompilerParams(
            dimension_semantics=("arbitrary",)),
    )(x_tm, wih1, whh1, b1, wih2, whh2, b2, wfc, bfc)

    return out[:B]


# ----------------------------------------------------------------------------
# Pure-JAX reference (matches the PyTorch forward in eval mode)
# ----------------------------------------------------------------------------
def _lstm_cell_ref(x, h, c, w_ih, w_hh, b):
    H = h.shape[-1]
    gates = jnp.dot(x, w_ih) + jnp.dot(h, w_hh) + b
    i = jax.nn.sigmoid(gates[:, 0 * H:1 * H])
    f = jax.nn.sigmoid(gates[:, 1 * H:2 * H])
    g = jnp.tanh(gates[:, 2 * H:3 * H])
    o = jax.nn.sigmoid(gates[:, 3 * H:4 * H])
    c_new = f * c + i * g
    h_new = o * jnp.tanh(c_new)
    return h_new, c_new


def lstm_model_reference(x, params):
    def layer(x_seq, w_ih, w_hh, b):
        B = x_seq.shape[0]
        H = w_hh.shape[0]

        def step(carry, x_t):
            h, c = carry
            h, c = _lstm_cell_ref(x_t, h, c, w_ih, w_hh, b)
            return (h, c), h

        init = (jnp.zeros((B, H), jnp.float32), jnp.zeros((B, H), jnp.float32))
        _, hs = lax.scan(step, init, jnp.transpose(x_seq, (1, 0, 2)))
        return jnp.transpose(hs, (1, 0, 2))

    h1 = layer(x, params["wih1"], params["whh1"], params["b1"])
    h2 = layer(h1, params["wih2"], params["whh2"], params["b2"])
    last = h2[:, -1, :]
    return jnp.dot(last, params["wfc"]) + params["bfc"]


def init_params(key, input_dim, hidden_dim, output_dim):
    """Deterministic init (PyTorch-style U(-1/sqrt(H), 1/sqrt(H)))."""
    H = hidden_dim
    k = 1.0 / jnp.sqrt(jnp.float32(H))
    keys = jax.random.split(key, 10)
    u = lambda kk, shape: jax.random.uniform(kk, shape, jnp.float32, -k, k)
    return {
        "wih1": u(keys[0], (input_dim, 4 * H)),
        "whh1": u(keys[1], (H, 4 * H)),
        "b1":   u(keys[2], (1, 4 * H)) + u(keys[3], (1, 4 * H)),  # b_ih + b_hh
        "wih2": u(keys[4], (H, 4 * H)),
        "whh2": u(keys[5], (H, 4 * H)),
        "b2":   u(keys[6], (1, 4 * H)) + u(keys[7], (1, 4 * H)),
        "wfc":  u(keys[8], (H, output_dim)),
        "bfc":  u(keys[9], (1, output_dim)),
    }


if __name__ == "__main__":
    # Small shapes consistent with the module: EEG features D, hidden 64, 2 layers.
    B, T, D = 4, 8, 16
    hidden_dim = 64
    output_dim = 3

    key = jax.random.PRNGKey(0)
    k_x, k_p = jax.random.split(key)
    x = jax.random.normal(k_x, (B, T, D), dtype=jnp.float32)
    params = init_params(k_p, D, hidden_dim, output_dim)

    forward = jax.jit(lstm_model_forward)
    out = jax.block_until_ready(forward(x, params))

    ref = jax.block_until_ready(lstm_model_reference(x, params))
    assert out.shape == (B, output_dim)
    assert jnp.allclose(out, ref, atol=1e-4, rtol=1e-4), (out, ref)

    print("KERNEL_OK")
</pallas_src>

<mosaic_0001>
module attributes {stable_mosaic.version = 11 : i64} {
  func.func @lstm_kernel(%arg0: i32, %arg1: memref<8x8x16xf32, #tpu.memory_space<vmem>>, %arg2: memref<16x512xf32, #tpu.memory_space<vmem>>, %arg3: memref<128x512xf32, #tpu.memory_space<vmem>>, %arg4: memref<1x512xf32, #tpu.memory_space<vmem>>, %arg5: memref<128x512xf32, #tpu.memory_space<vmem>>, %arg6: memref<128x512xf32, #tpu.memory_space<vmem>>, %arg7: memref<1x512xf32, #tpu.memory_space<vmem>>, %arg8: memref<128x3xf32, #tpu.memory_space<vmem>>, %arg9: memref<1x3xf32, #tpu.memory_space<vmem>>, %arg10: memref<8x3xf32, #tpu.memory_space<vmem>>, %arg11: memref<8x8x512xf32, #tpu.memory_space<vmem>>, %arg12: memref<8x8x512xf32, #tpu.memory_space<vmem>>, %arg13: memref<8x8x128xf32, #tpu.memory_space<vmem>>) attributes {dimension_semantics = [#tpu.dimension_semantics<arbitrary>], iteration_bounds = array<i64: 1>, scalar_prefetch = 0 : i64, scratch_operands = 3 : i64, tpu.core_type = #tpu.core_type<tc>, window_params = [{pipeline_mode = #tpu.pipeline_mode<synchronous>, transform_indices = @transform_0, window_bounds = array<i64: 8, 8, 16>}, {pipeline_mode = #tpu.pipeline_mode<synchronous>, transform_indices = @transform_1, window_bounds = array<i64: 16, 512>}, {pipeline_mode = #tpu.pipeline_mode<synchronous>, transform_indices = @transform_2, window_bounds = array<i64: 128, 512>}, {pipeline_mode = #tpu.pipeline_mode<synchronous>, transform_indices = @transform_3, window_bounds = array<i64: 1, 512>}, {pipeline_mode = #tpu.pipeline_mode<synchronous>, transform_indices = @transform_4, window_bounds = array<i64: 128, 512>}, {pipeline_mode = #tpu.pipeline_mode<synchronous>, transform_indices = @transform_5, window_bounds = array<i64: 128, 512>}, {pipeline_mode = #tpu.pipeline_mode<synchronous>, transform_indices = @transform_6, window_bounds = array<i64: 1, 512>}, {pipeline_mode = #tpu.pipeline_mode<synchronous>, transform_indices = @transform_7, window_bounds = array<i64: 128, 3>}, {pipeline_mode = #tpu.pipeline_mode<synchronous>, transform_indices = @transform_8, window_bounds = array<i64: 1, 3>}, {pipeline_mode = #tpu.pipeline_mode<synchronous>, transform_indices = @transform_9, window_bounds = array<i64: 8, 3>}]} {
    %c0 = arith.constant 0 : index
    %c0_0 = arith.constant 0 : index
    %c0_1 = arith.constant 0 : index
    %0 = vector.load %arg1[%c0, %c0_0, %c0_1] : memref<8x8x16xf32, #tpu.memory_space<vmem>>, vector<8x8x16xf32>
    %1 = vector.shape_cast %0 : vector<8x8x16xf32> to vector<64x16xf32>
    %c0_2 = arith.constant 0 : index
    %c0_3 = arith.constant 0 : index
    %2 = vector.load %arg2[%c0_2, %c0_3] : memref<16x512xf32, #tpu.memory_space<vmem>>, vector<16x512xf32>
    %cst = arith.constant dense<0.000000e+00> : vector<64x512xf32>
    %3 = tpu.matmul %1, %2, %cst {dimension_numbers = #tpu.dot_dimension_numbers<[1], [0], [0], [1], [0, 0, 1, 1], [], []>} : vector<64x16xf32>, vector<16x512xf32>, vector<64x512xf32> -> vector<64x512xf32>
    %c0_4 = arith.constant 0 : index
    %c0_5 = arith.constant 0 : index
    %4 = vector.load %arg4[%c0_4, %c0_5] : memref<1x512xf32, #tpu.memory_space<vmem>>, vector<1x512xf32>
    %5 = vector.broadcast %4 : vector<1x512xf32> to vector<64x512xf32>
    %6 = arith.addf %3, %5 : vector<64x512xf32>
    %7 = vector.shape_cast %6 : vector<64x512xf32> to vector<8x8x512xf32>
    %c0_6 = arith.constant 0 : index
    %c0_7 = arith.constant 0 : index
    %c0_8 = arith.constant 0 : index
    %8 = vector.load %arg11[%c0_6, %c0_7, %c0_8] : memref<8x8x512xf32, #tpu.memory_space<vmem>>, vector<8x8x512xf32>
    tpu.vector_store %arg11[%c0_6, %c0_7, %c0_8], %7 {strides = array<i32>} : memref<8x8x512xf32, #tpu.memory_space<vmem>>, vector<8x8x512xf32>,
    %c0_9 = arith.constant 0 : index
    %c0_10 = arith.constant 0 : index
    %9 = vector.load %arg3[%c0_9, %c0_10] : memref<128x512xf32, #tpu.memory_space<vmem>>, vector<128x512xf32>
    %cst_11 = arith.constant 0.000000e+00 : f32
    %10 = vector.broadcast %cst_11 : f32 to vector<8x128xf32>
    %cst_12 = arith.constant 0.000000e+00 : f32
    %11 = vector.broadcast %cst_12 : f32 to vector<8x128xf32>
    %c0_13 = arith.constant 0 : index
    %c0_14 = arith.constant 0 : index
    %c0_15 = arith.constant 0 : index
    %12 = vector.load %arg11[%c0_13, %c0_14, %c0_15] : memref<8x8x512xf32, #tpu.memory_space<vmem>>, vector<1x8x512xf32>
    %13 = vector.shape_cast %12 : vector<1x8x512xf32> to vector<8x512xf32>
    %cst_16 = arith.constant dense<0.000000e+00> : vector<8x512xf32>
    %14 = tpu.matmul %10, %9, %cst_16 {dimension_numbers = #tpu.dot_dimension_numbers<[1], [0], [0], [1], [0, 0, 1, 1], [], []>} : vector<8x128xf32>, vector<128x512xf32>, vector<8x512xf32> -> vector<8x512xf32>
    %15 = arith.addf %13, %14 : vector<8x512xf32>
    %16 = vector.extract_strided_slice %15 {offsets = [0, 0], sizes = [8, 128], strides = [1, 1]} : vector<8x512xf32> to vector<8x128xf32>
    %17 = arith.negf %16 : vector<8x128xf32>
    %18 = math.exp %17 : vector<8x128xf32>
    %cst_17 = arith.constant 1.000000e+00 : f32
    %19 = vector.broadcast %cst_17 : f32 to vector<8x128xf32>
    %20 = arith.addf %19, %18 : vector<8x128xf32>
    %21 = arith.divf %19, %20 : vector<8x128xf32>
    %22 = vector.extract_strided_slice %15 {offsets = [0, 128], sizes = [8, 128], strides = [1, 1]} : vector<8x512xf32> to vector<8x128xf32>
    %23 = arith.negf %22 : vector<8x128xf32>
    %24 = math.exp %23 : vector<8x128xf32>
    %cst_18 = arith.constant 1.000000e+00 : f32
    %25 = vector.broadcast %cst_18 : f32 to vector<8x128xf32>
    %26 = arith.addf %25, %24 : vector<8x128xf32>
    %27 = arith.divf %25, %26 : vector<8x128xf32>
    %28 = vector.extract_strided_slice %15 {offsets = [0, 256], sizes = [8, 128], strides = [1, 1]} : vector<8x512xf32> to vector<8x128xf32>
    %29 = math.tanh %28 : vector<8x128xf32>
    %30 = vector.extract_strided_slice %15 {offsets = [0, 384], sizes = [8, 128], strides = [1, 1]} : vector<8x512xf32> to vector<8x128xf32>
    %31 = arith.negf %30 : vector<8x128xf32>
    %32 = math.exp %31 : vector<8x128xf32>
    %cst_19 = arith.constant 1.000000e+00 : f32
    %33 = vector.broadcast %cst_19 : f32 to vector<8x128xf32>
    %34 = arith.addf %33, %32 : vector<8x128xf32>
    %35 = arith.divf %33, %34 : vector<8x128xf32>
    %36 = arith.mulf %27, %11 : vector<8x128xf32>
    %37 = arith.mulf %21, %29 : vector<8x128xf32>
    %38 = arith.addf %36, %37 : vector<8x128xf32>
    %39 = math.tanh %38 : vector<8x128xf32>
    %40 = arith.mulf %35, %39 : vector<8x128xf32>
    %c0_20 = arith.constant 0 : index
    %c0_21 = arith.constant 0 : index
    %c0_22 = arith.constant 0 : index
    %41 = vector.load %arg13[%c0_20, %c0_21, %c0_22] : memref<8x8x128xf32, #tpu.memory_space<vmem>>, vector<1x8x128xf32>
    %42 = vector.shape_cast %41 : vector<1x8x128xf32> to vector<8x128xf32>
    %43 = vector.shape_cast %40 : vector<8x128xf32> to vector<1x8x128xf32>
    tpu.vector_store %arg13[%c0_20, %c0_21, %c0_22], %43 {strides = array<i32>} : memref<8x8x128xf32, #tpu.memory_space<vmem>>, vector<1x8x128xf32>,
    %c1 = arith.constant 1 : index
    %c0_23 = arith.constant 0 : index
    %c0_24 = arith.constant 0 : index
    %44 = vector.load %arg11[%c1, %c0_23, %c0_24] : memref<8x8x512xf32, #tpu.memory_space<vmem>>, vector<1x8x512xf32>
    %45 = vector.shape_cast %44 : vector<1x8x512xf32> to vector<8x512xf32>
    %cst_25 = arith.constant dense<0.000000e+00> : vector<8x512xf32>
    %46 = tpu.matmul %40, %9, %cst_25 {dimension_numbers = #tpu.dot_dimension_numbers<[1], [0], [0], [1], [0, 0, 1, 1], [], []>} : vector<8x128xf32>, vector<128x512xf32>, vector<8x512xf32> -> vector<8x512xf32>
    %47 = arith.addf %45, %46 : vector<8x512xf32>
    %48 = vector.extract_strided_slice %47 {offsets = [0, 0], sizes = [8, 128], strides = [1, 1]} : vector<8x512xf32> to vector<8x128xf32>
    %49 = arith.negf %48 : vector<8x128xf32>
    %50 = math.exp %49 : vector<8x128xf32>
    %cst_26 = arith.constant 1.000000e+00 : f32
    %51 = vector.broadcast %cst_26 : f32 to vector<8x128xf32>
    %52 = arith.addf %51, %50 : vector<8x128xf32>
    %53 = arith.divf %51, %52 : vector<8x128xf32>
    %54 = vector.extract_strided_slice %47 {offsets = [0, 128], sizes = [8, 128], strides = [1, 1]} : vector<8x512xf32> to vector<8x128xf32>
    %55 = arith.negf %54 : vector<8x128xf32>
    %56 = math.exp %55 : vector<8x128xf32>
    %cst_27 = arith.constant 1.000000e+00 : f32
    %57 = vector.broadcast %cst_27 : f32 to vector<8x128xf32>
    %58 = arith.addf %57, %56 : vector<8x128xf32>
    %59 = arith.divf %57, %58 : vector<8x128xf32>
    %60 = vector.extract_strided_slice %47 {offsets = [0, 256], sizes = [8, 128], strides = [1, 1]} : vector<8x512xf32> to vector<8x128xf32>
    %61 = math.tanh %60 : vector<8x128xf32>
    %62 = vector.extract_strided_slice %47 {offsets = [0, 384], sizes = [8, 128], strides = [1, 1]} : vector<8x512xf32> to vector<8x128xf32>
    %63 = arith.negf %62 : vector<8x128xf32>
    %64 = math.exp %63 : vector<8x128xf32>
    %cst_28 = arith.constant 1.000000e+00 : f32
    %65 = vector.broadcast %cst_28 : f32 to vector<8x128xf32>
    %66 = arith.addf %65, %64 : vector<8x128xf32>
    %67 = arith.divf %65, %66 : vector<8x128xf32>
    %68 = arith.mulf %59, %38 : vector<8x128xf32>
    %69 = arith.mulf %53, %61 : vector<8x128xf32>
    %70 = arith.addf %68, %69 : vector<8x128xf32>
    %71 = math.tanh %70 : vector<8x128xf32>
    %72 = arith.mulf %67, %71 : vector<8x128xf32>
    %c1_29 = arith.constant 1 : index
    %c0_30 = arith.constant 0 : index
    %c0_31 = arith.constant 0 : index
    %73 = vector.load %arg13[%c1_29, %c0_30, %c0_31] : memref<8x8x128xf32, #tpu.memory_space<vmem>>, vector<1x8x128xf32>
    %74 = vector.shape_cast %73 : vector<1x8x128xf32> to vector<8x128xf32>
    %75 = vector.shape_cast %72 : vector<8x128xf32> to vector<1x8x128xf32>
    tpu.vector_store %arg13[%c1_29, %c0_30, %c0_31], %75 {strides = array<i32>} : memref<8x8x128xf32, #tpu.memory_space<vmem>>, vector<1x8x128xf32>,
    %c2 = arith.constant 2 : index
    %c0_32 = arith.constant 0 : index
    %c0_33 = arith.constant 0 : index
    %76 = vector.load %arg11[%c2, %c0_32, %c0_33] : memref<8x8x512xf32, #tpu.memory_space<vmem>>, vector<1x8x512xf32>
    %77 = vector.shape_cast %76 : vector<1x8x512xf32> to vector<8x512xf32>
    %cst_34 = arith.constant dense<0.000000e+00> : vector<8x512xf32>
    %78 = tpu.matmul %72, %9, %cst_34 {dimension_numbers = #tpu.dot_dimension_numbers<[1], [0], [0], [1], [0, 0, 1, 1], [], []>} : vector<8x128xf32>, vector<128x512xf32>, vector<8x512xf32> -> vector<8x512xf32>
    %79 = arith.addf %77, %78 : vector<8x512xf32>
    %80 = vector.extract_strided_slice %79 {offsets = [0, 0], sizes = [8, 128], strides = [1, 1]} : vector<8x512xf32> to vector<8x128xf32>
    %81 = arith.negf %80 : vector<8x128xf32>
    %82 = math.exp %81 : vector<8x128xf32>
    %cst_35 = arith.constant 1.000000e+00 : f32
    %83 = vector.broadcast %cst_35 : f32 to vector<8x128xf32>
    %84 = arith.addf %83, %82 : vector<8x128xf32>
    %85 = arith.divf %83, %84 : vector<8x128xf32>
    %86 = vector.extract_strided_slice %79 {offsets = [0, 128], sizes = [8, 128], strides = [1, 1]} : vector<8x512xf32> to vector<8x128xf32>
    %87 = arith.negf %86 : vector<8x128xf32>
    %88 = math.exp %87 : vector<8x128xf32>
    %cst_36 = arith.constant 1.000000e+00 : f32
    %89 = vector.broadcast %cst_36 : f32 to vector<8x128xf32>
    %90 = arith.addf %89, %88 : vector<8x128xf32>
    %91 = arith.divf %89, %90 : vector<8x128xf32>
    %92 = vector.extract_strided_slice %79 {offsets = [0, 256], sizes = [8, 128], strides = [1, 1]} : vector<8x512xf32> to vector<8x128xf32>
    %93 = math.tanh %92 : vector<8x128xf32>
    %94 = vector.extract_strided_slice %79 {offsets = [0, 384], sizes = [8, 128], strides = [1, 1]} : vector<8x512xf32> to vector<8x128xf32>
    %95 = arith.negf %94 : vector<8x128xf32>
    %96 = math.exp %95 : vector<8x128xf32>
    %cst_37 = arith.constant 1.000000e+00 : f32
    %97 = vector.broadcast %cst_37 : f32 to vector<8x128xf32>
    %98 = arith.addf %97, %96 : vector<8x128xf32>
    %99 = arith.divf %97, %98 : vector<8x128xf32>
    %100 = arith.mulf %91, %70 : vector<8x128xf32>
    %101 = arith.mulf %85, %93 : vector<8x128xf32>
    %102 = arith.addf %100, %101 : vector<8x128xf32>
    %103 = math.tanh %102 : vector<8x128xf32>
    %104 = arith.mulf %99, %103 : vector<8x128xf32>
    %c2_38 = arith.constant 2 : index
    %c0_39 = arith.constant 0 : index
    %c0_40 = arith.constant 0 : index
    %105 = vector.load %arg13[%c2_38, %c0_39, %c0_40] : memref<8x8x128xf32, #tpu.memory_space<vmem>>, vector<1x8x128xf32>
    %106 = vector.shape_cast %105 : vector<1x8x128xf32> to vector<8x128xf32>
    %107 = vector.shape_cast %104 : vector<8x128xf32> to vector<1x8x128xf32>
    tpu.vector_store %arg13[%c2_38, %c0_39, %c0_40], %107 {strides = array<i32>} : memref<8x8x128xf32, #tpu.memory_space<vmem>>, vector<1x8x128xf32>,
    %c3 = arith.constant 3 : index
    %c0_41 = arith.constant 0 : index
    %c0_42 = arith.constant 0 : index
    %108 = vector.load %arg11[%c3, %c0_41, %c0_42] : memref<8x8x512xf32, #tpu.memory_space<vmem>>, vector<1x8x512xf32>
    %109 = vector.shape_cast %108 : vector<1x8x512xf32> to vector<8x512xf32>
    %cst_43 = arith.constant dense<0.000000e+00> : vector<8x512xf32>
    %110 = tpu.matmul %104, %9, %cst_43 {dimension_numbers = #tpu.dot_dimension_numbers<[1], [0], [0], [1], [0, 0, 1, 1], [], []>} : vector<8x128xf32>, vector<128x512xf32>, vector<8x512xf32> -> vector<8x512xf32>
    %111 = arith.addf %109, %110 : vector<8x512xf32>
    %112 = vector.extract_strided_slice %111 {offsets = [0, 0], sizes = [8, 128], strides = [1, 1]} : vector<8x512xf32> to vector<8x128xf32>
    %113 = arith.negf %112 : vector<8x128xf32>
    %114 = math.exp %113 : vector<8x128xf32>
    %cst_44 = arith.constant 1.000000e+00 : f32
    %115 = vector.broadcast %cst_44 : f32 to vector<8x128xf32>
    %116 = arith.addf %115, %114 : vector<8x128xf32>
    %117 = arith.divf %115, %116 : vector<8x128xf32>
    %118 = vector.extract_strided_slice %111 {offsets = [0, 128], sizes = [8, 128], strides = [1, 1]} : vector<8x512xf32> to vector<8x128xf32>
    %119 = arith.negf %118 : vector<8x128xf32>
    %120 = math.exp %119 : vector<8x128xf32>
    %cst_45 = arith.constant 1.000000e+00 : f32
    %121 = vector.broadcast %cst_45 : f32 to vector<8x128xf32>
    %122 = arith.addf %121, %120 : vector<8x128xf32>
    %123 = arith.divf %121, %122 : vector<8x128xf32>
    %124 = vector.extract_strided_slice %111 {offsets = [0, 256], sizes = [8, 128], strides = [1, 1]} : vector<8x512xf32> to vector<8x128xf32>
    %125 = math.tanh %124 : vector<8x128xf32>
    %126 = vector.extract_strided_slice %111 {offsets = [0, 384], sizes = [8, 128], strides = [1, 1]} : vector<8x512xf32> to vector<8x128xf32>
    %127 = arith.negf %126 : vector<8x128xf32>
    %128 = math.exp %127 : vector<8x128xf32>
    %cst_46 = arith.constant 1.000000e+00 : f32
    %129 = vector.broadcast %cst_46 : f32 to vector<8x128xf32>
    %130 = arith.addf %129, %128 : vector<8x128xf32>
    %131 = arith.divf %129, %130 : vector<8x128xf32>
    %132 = arith.mulf %123, %102 : vector<8x128xf32>
    %133 = arith.mulf %117, %125 : vector<8x128xf32>
    %134 = arith.addf %132, %133 : vector<8x128xf32>
    %135 = math.tanh %134 : vector<8x128xf32>
    %136 = arith.mulf %131, %135 : vector<8x128xf32>
    %c3_47 = arith.constant 3 : index
    %c0_48 = arith.constant 0 : index
    %c0_49 = arith.constant 0 : index
    %137 = vector.load %arg13[%c3_47, %c0_48, %c0_49] : memref<8x8x128xf32, #tpu.memory_space<vmem>>, vector<1x8x128xf32>
    %138 = vector.shape_cast %137 : vector<1x8x128xf32> to vector<8x128xf32>
    %139 = vector.shape_cast %136 : vector<8x128xf32> to vector<1x8x128xf32>
    tpu.vector_store %arg13[%c3_47, %c0_48, %c0_49], %139 {strides = array<i32>} : memref<8x8x128xf32, #tpu.memory_space<vmem>>, vector<1x8x128xf32>,
    %c4 = arith.constant 4 : index
    %c0_50 = arith.constant 0 : index
    %c0_51 = arith.constant 0 : index
    %140 = vector.load %arg11[%c4, %c0_50, %c0_51] : memref<8x8x512xf32, #tpu.memory_space<vmem>>, vector<1x8x512xf32>
    %141 = vector.shape_cast %140 : vector<1x8x512xf32> to vector<8x512xf32>
    %cst_52 = arith.constant dense<0.000000e+00> : vector<8x512xf32>
    %142 = tpu.matmul %136, %9, %cst_52 {dimension_numbers = #tpu.dot_dimension_numbers<[1], [0], [0], [1], [0, 0, 1, 1], [], []>} : vector<8x128xf32>, vector<128x512xf32>, vector<8x512xf32> -> vector<8x512xf32>
    %143 = arith.addf %141, %142 : vector<8x512xf32>
    %144 = vector.extract_strided_slice %143 {offsets = [0, 0], sizes = [8, 128], strides = [1, 1]} : vector<8x512xf32> to vector<8x128xf32>
    %145 = arith.negf %144 : vector<8x128xf32>
    %146 = math.exp %145 : vector<8x128xf32>
    %cst_53 = arith.constant 1.000000e+00 : f32
    %147 = vector.broadcast %cst_53 : f32 to vector<8x128xf32>
    %148 = arith.addf %147, %146 : vector<8x128xf32>
    %149 = arith.divf %147, %148 : vector<8x128xf32>
    %150 = vector.extract_strided_slice %143 {offsets = [0, 128], sizes = [8, 128], strides = [1, 1]} : vector<8x512xf32> to vector<8x128xf32>
    %151 = arith.negf %150 : vector<8x128xf32>
    %152 = math.exp %151 : vector<8x128xf32>
    %cst_54 = arith.constant 1.000000e+00 : f32
    %153 = vector.broadcast %cst_54 : f32 to vector<8x128xf32>
    %154 = arith.addf %153, %152 : vector<8x128xf32>
    %155 = arith.divf %153, %154 : vector<8x128xf32>
    %156 = vector.extract_strided_slice %143 {offsets = [0, 256], sizes = [8, 128], strides = [1, 1]} : vector<8x512xf32> to vector<8x128xf32>
    %157 = math.tanh %156 : vector<8x128xf32>
    %158 = vector.extract_strided_slice %143 {offsets = [0, 384], sizes = [8, 128], strides = [1, 1]} : vector<8x512xf32> to vector<8x128xf32>
    %159 = arith.negf %158 : vector<8x128xf32>
    %160 = math.exp %159 : vector<8x128xf32>
    %cst_55 = arith.constant 1.000000e+00 : f32
    %161 = vector.broadcast %cst_55 : f32 to vector<8x128xf32>
    %162 = arith.addf %161, %160 : vector<8x128xf32>
    %163 = arith.divf %161, %162 : vector<8x128xf32>
    %164 = arith.mulf %155, %134 : vector<8x128xf32>
    %165 = arith.mulf %149, %157 : vector<8x128xf32>
    %166 = arith.addf %164, %165 : vector<8x128xf32>
    %167 = math.tanh %166 : vector<8x128xf32>
    %168 = arith.mulf %163, %167 : vector<8x128xf32>
    %c4_56 = arith.constant 4 : index
    %c0_57 = arith.constant 0 : index
    %c0_58 = arith.constant 0 : index
    %169 = vector.load %arg13[%c4_56, %c0_57, %c0_58] : memref<8x8x128xf32, #tpu.memory_space<vmem>>, vector<1x8x128xf32>
    %170 = vector.shape_cast %169 : vector<1x8x128xf32> to vector<8x128xf32>
    %171 = vector.shape_cast %168 : vector<8x128xf32> to vector<1x8x128xf32>
    tpu.vector_store %arg13[%c4_56, %c0_57, %c0_58], %171 {strides = array<i32>} : memref<8x8x128xf32, #tpu.memory_space<vmem>>, vector<1x8x128xf32>,
    %c5 = arith.constant 5 : index
    %c0_59 = arith.constant 0 : index
    %c0_60 = arith.constant 0 : index
    %172 = vector.load %arg11[%c5, %c0_59, %c0_60] : memref<8x8x512xf32, #tpu.memory_space<vmem>>, vector<1x8x512xf32>
    %173 = vector.shape_cast %172 : vector<1x8x512xf32> to vector<8x512xf32>
    %cst_61 = arith.constant dense<0.000000e+00> : vector<8x512xf32>
    %174 = tpu.matmul %168, %9, %cst_61 {dimension_numbers = #tpu.dot_dimension_numbers<[1], [0], [0], [1], [0, 0, 1, 1], [], []>} : vector<8x128xf32>, vector<128x512xf32>, vector<8x512xf32> -> vector<8x512xf32>
    %175 = arith.addf %173, %174 : vector<8x512xf32>
    %176 = vector.extract_strided_slice %175 {offsets = [0, 0], sizes = [8, 128], strides = [1, 1]} : vector<8x512xf32> to vector<8x128xf32>
    %177 = arith.negf %176 : vector<8x128xf32>
    %178 = math.exp %177 : vector<8x128xf32>
    %cst_62 = arith.constant 1.000000e+00 : f32
    %179 = vector.broadcast %cst_62 : f32 to vector<8x128xf32>
    %180 = arith.addf %179, %178 : vector<8x128xf32>
    %181 = arith.divf %179, %180 : vector<8x128xf32>
    %182 = vector.extract_strided_slice %175 {offsets = [0, 128], sizes = [8, 128], strides = [1, 1]} : vector<8x512xf32> to vector<8x128xf32>
    %183 = arith.negf %182 : vector<8x128xf32>
    %184 = math.exp %183 : vector<8x128xf32>
    %cst_63 = arith.constant 1.000000e+00 : f32
    %185 = vector.broadcast %cst_63 : f32 to vector<8x128xf32>
    %186 = arith.addf %185, %184 : vector<8x128xf32>
    %187 = arith.divf %185, %186 : vector<8x128xf32>
    %188 = vector.extract_strided_slice %175 {offsets = [0, 256], sizes = [8, 128], strides = [1, 1]} : vector<8x512xf32> to vector<8x128xf32>
    %189 = math.tanh %188 : vector<8x128xf32>
    %190 = vector.extract_strided_slice %175 {offsets = [0, 384], sizes = [8, 128], strides = [1, 1]} : vector<8x512xf32> to vector<8x128xf32>
    %191 = arith.negf %190 : vector<8x128xf32>
    %192 = math.exp %191 : vector<8x128xf32>
    %cst_64 = arith.constant 1.000000e+00 : f32
    %193 = vector.broadcast %cst_64 : f32 to vector<8x128xf32>
    %194 = arith.addf %193, %192 : vector<8x128xf32>
    %195 = arith.divf %193, %194 : vector<8x128xf32>
    %196 = arith.mulf %187, %166 : vector<8x128xf32>
    %197 = arith.mulf %181, %189 : vector<8x128xf32>
    %198 = arith.addf %196, %197 : vector<8x128xf32>
    %199 = math.tanh %198 : vector<8x128xf32>
    %200 = arith.mulf %195, %199 : vector<8x128xf32>
    %c5_65 = arith.constant 5 : index
    %c0_66 = arith.constant 0 : index
    %c0_67 = arith.constant 0 : index
    %201 = vector.load %arg13[%c5_65, %c0_66, %c0_67] : memref<8x8x128xf32, #tpu.memory_space<vmem>>, vector<1x8x128xf32>
    %202 = vector.shape_cast %201 : vector<1x8x128xf32> to vector<8x128xf32>
    %203 = vector.shape_cast %200 : vector<8x128xf32> to vector<1x8x128xf32>
    tpu.vector_store %arg13[%c5_65, %c0_66, %c0_67], %203 {strides = array<i32>} : memref<8x8x128xf32, #tpu.memory_space<vmem>>, vector<1x8x128xf32>,
    %c6 = arith.constant 6 : index
    %c0_68 = arith.constant 0 : index
    %c0_69 = arith.constant 0 : index
    %204 = vector.load %arg11[%c6, %c0_68, %c0_69] : memref<8x8x512xf32, #tpu.memory_space<vmem>>, vector<1x8x512xf32>
    %205 = vector.shape_cast %204 : vector<1x8x512xf32> to vector<8x512xf32>
    %cst_70 = arith.constant dense<0.000000e+00> : vector<8x512xf32>
    %206 = tpu.matmul %200, %9, %cst_70 {dimension_numbers = #tpu.dot_dimension_numbers<[1], [0], [0], [1], [0, 0, 1, 1], [], []>} : vector<8x128xf32>, vector<128x512xf32>, vector<8x512xf32> -> vector<8x512xf32>
    %207 = arith.addf %205, %206 : vector<8x512xf32>
    %208 = vector.extract_strided_slice %207 {offsets = [0, 0], sizes = [8, 128], strides = [1, 1]} : vector<8x512xf32> to vector<8x128xf32>
    %209 = arith.negf %208 : vector<8x128xf32>
    %210 = math.exp %209 : vector<8x128xf32>
    %cst_71 = arith.constant 1.000000e+00 : f32
    %211 = vector.broadcast %cst_71 : f32 to vector<8x128xf32>
    %212 = arith.addf %211, %210 : vector<8x128xf32>
    %213 = arith.divf %211, %212 : vector<8x128xf32>
    %214 = vector.extract_strided_slice %207 {offsets = [0, 128], sizes = [8, 128], strides = [1, 1]} : vector<8x512xf32> to vector<8x128xf32>
    %215 = arith.negf %214 : vector<8x128xf32>
    %216 = math.exp %215 : vector<8x128xf32>
    %cst_72 = arith.constant 1.000000e+00 : f32
    %217 = vector.broadcast %cst_72 : f32 to vector<8x128xf32>
    %218 = arith.addf %217, %216 : vector<8x128xf32>
    %219 = arith.divf %217, %218 : vector<8x128xf32>
    %220 = vector.extract_strided_slice %207 {offsets = [0, 256], sizes = [8, 128], strides = [1, 1]} : vector<8x512xf32> to vector<8x128xf32>
    %221 = math.tanh %220 : vector<8x128xf32>
    %222 = vector.extract_strided_slice %207 {offsets = [0, 384], sizes = [8, 128], strides = [1, 1]} : vector<8x512xf32> to vector<8x128xf32>
    %223 = arith.negf %222 : vector<8x128xf32>
    %224 = math.exp %223 : vector<8x128xf32>
    %cst_73 = arith.constant 1.000000e+00 : f32
    %225 = vector.broadcast %cst_73 : f32 to vector<8x128xf32>
    %226 = arith.addf %225, %224 : vector<8x128xf32>
    %227 = arith.divf %225, %226 : vector<8x128xf32>
    %228 = arith.mulf %219, %198 : vector<8x128xf32>
    %229 = arith.mulf %213, %221 : vector<8x128xf32>
    %230 = arith.addf %228, %229 : vector<8x128xf32>
    %231 = math.tanh %230 : vector<8x128xf32>
    %232 = arith.mulf %227, %231 : vector<8x128xf32>
    %c6_74 = arith.constant 6 : index
    %c0_75 = arith.constant 0 : index
    %c0_76 = arith.constant 0 : index
    %233 = vector.load %arg13[%c6_74, %c0_75, %c0_76] : memref<8x8x128xf32, #tpu.memory_space<vmem>>, vector<1x8x128xf32>
    %234 = vector.shape_cast %233 : vector<1x8x128xf32> to vector<8x128xf32>
    %235 = vector.shape_cast %232 : vector<8x128xf32> to vector<1x8x128xf32>
    tpu.vector_store %arg13[%c6_74, %c0_75, %c0_76], %235 {strides = array<i32>} : memref<8x8x128xf32, #tpu.memory_space<vmem>>, vector<1x8x128xf32>,
    %c7 = arith.constant 7 : index
    %c0_77 = arith.constant 0 : index
    %c0_78 = arith.constant 0 : index
    %236 = vector.load %arg11[%c7, %c0_77, %c0_78] : memref<8x8x512xf32, #tpu.memory_space<vmem>>, vector<1x8x512xf32>
    %237 = vector.shape_cast %236 : vector<1x8x512xf32> to vector<8x512xf32>
    %cst_79 = arith.constant dense<0.000000e+00> : vector<8x512xf32>
    %238 = tpu.matmul %232, %9, %cst_79 {dimension_numbers = #tpu.dot_dimension_numbers<[1], [0], [0], [1], [0, 0, 1, 1], [], []>} : vector<8x128xf32>, vector<128x512xf32>, vector<8x512xf32> -> vector<8x512xf32>
    %239 = arith.addf %237, %238 : vector<8x512xf32>
    %240 = vector.extract_strided_slice %239 {offsets = [0, 0], sizes = [8, 128], strides = [1, 1]} : vector<8x512xf32> to vector<8x128xf32>
    %241 = arith.negf %240 : vector<8x128xf32>
    %242 = math.exp %241 : vector<8x128xf32>
    %cst_80 = arith.constant 1.000000e+00 : f32
    %243 = vector.broadcast %cst_80 : f32 to vector<8x128xf32>
    %244 = arith.addf %243, %242 : vector<8x128xf32>
    %245 = arith.divf %243, %244 : vector<8x128xf32>
    %246 = vector.extract_strided_slice %239 {offsets = [0, 128], sizes = [8, 128], strides = [1, 1]} : vector<8x512xf32> to vector<8x128xf32>
    %247 = arith.negf %246 : vector<8x128xf32>
    %248 = math.exp %247 : vector<8x128xf32>
    %cst_81 = arith.constant 1.000000e+00 : f32
    %249 = vector.broadcast %cst_81 : f32 to vector<8x128xf32>
    %250 = arith.addf %249, %248 : vector<8x128xf32>
    %251 = arith.divf %249, %250 : vector<8x128xf32>
    %252 = vector.extract_strided_slice %239 {offsets = [0, 256], sizes = [8, 128], strides = [1, 1]} : vector<8x512xf32> to vector<8x128xf32>
    %253 = math.tanh %252 : vector<8x128xf32>
    %254 = vector.extract_strided_slice %239 {offsets = [0, 384], sizes = [8, 128], strides = [1, 1]} : vector<8x512xf32> to vector<8x128xf32>
    %255 = arith.negf %254 : vector<8x128xf32>
    %256 = math.exp %255 : vector<8x128xf32>
    %cst_82 = arith.constant 1.000000e+00 : f32
    %257 = vector.broadcast %cst_82 : f32 to vector<8x128xf32>
    %258 = arith.addf %257, %256 : vector<8x128xf32>
    %259 = arith.divf %257, %258 : vector<8x128xf32>
    %260 = arith.mulf %251, %230 : vector<8x128xf32>
    %261 = arith.mulf %245, %253 : vector<8x128xf32>
    %262 = arith.addf %260, %261 : vector<8x128xf32>
    %263 = math.tanh %262 : vector<8x128xf32>
    %264 = arith.mulf %259, %263 : vector<8x128xf32>
    %c7_83 = arith.constant 7 : index
    %c0_84 = arith.constant 0 : index
    %c0_85 = arith.constant 0 : index
    %265 = vector.load %arg13[%c7_83, %c0_84, %c0_85] : memref<8x8x128xf32, #tpu.memory_space<vmem>>, vector<1x8x128xf32>
    %266 = vector.shape_cast %265 : vector<1x8x128xf32> to vector<8x128xf32>
    %267 = vector.shape_cast %264 : vector<8x128xf32> to vector<1x8x128xf32>
    tpu.vector_store %arg13[%c7_83, %c0_84, %c0_85], %267 {strides = array<i32>} : memref<8x8x128xf32, #tpu.memory_space<vmem>>, vector<1x8x128xf32>,
    %c0_86 = arith.constant 0 : index
    %c0_87 = arith.constant 0 : index
    %c0_88 = arith.constant 0 : index
    %268 = vector.load %arg13[%c0_86, %c0_87, %c0_88] : memref<8x8x128xf32, #tpu.memory_space<vmem>>, vector<8x8x128xf32>
    %269 = vector.shape_cast %268 : vector<8x8x128xf32> to vector<64x128xf32>
    %c0_89 = arith.constant 0 : index
    %c0_90 = arith.constant 0 : index
    %270 = vector.load %arg5[%c0_89, %c0_90] : memref<128x512xf32, #tpu.memory_space<vmem>>, vector<128x512xf32>
    %cst_91 = arith.constant dense<0.000000e+00> : vector<64x512xf32>
    %271 = tpu.matmul %269, %270, %cst_91 {dimension_numbers = #tpu.dot_dimension_numbers<[1], [0], [0], [1], [0, 0, 1, 1], [], []>} : vector<64x128xf32>, vector<128x512xf32>, vector<64x512xf32> -> vector<64x512xf32>
    %c0_92 = arith.constant 0 : index
    %c0_93 = arith.constant 0 : index
    %272 = vector.load %arg7[%c0_92, %c0_93] : memref<1x512xf32, #tpu.memory_space<vmem>>, vector<1x512xf32>
    %273 = vector.broadcast %272 : vector<1x512xf32> to vector<64x512xf32>
    %274 = arith.addf %271, %273 : vector<64x512xf32>
    %275 = vector.shape_cast %274 : vector<64x512xf32> to vector<8x8x512xf32>
    %c0_94 = arith.constant 0 : index
    %c0_95 = arith.constant 0 : index
    %c0_96 = arith.constant 0 : index
    %276 = vector.load %arg12[%c0_94, %c0_95, %c0_96] : memref<8x8x512xf32, #tpu.memory_space<vmem>>, vector<8x8x512xf32>
    tpu.vector_store %arg12[%c0_94, %c0_95, %c0_96], %275 {strides = array<i32>} : memref<8x8x512xf32, #tpu.memory_space<vmem>>, vector<8x8x512xf32>,
    %c0_97 = arith.constant 0 : index
    %c0_98 = arith.constant 0 : index
    %277 = vector.load %arg6[%c0_97, %c0_98] : memref<128x512xf32, #tpu.memory_space<vmem>>, vector<128x512xf32>
    %cst_99 = arith.constant 0.000000e+00 : f32
    %278 = vector.broadcast %cst_99 : f32 to vector<8x128xf32>
    %cst_100 = arith.constant 0.000000e+00 : f32
    %279 = vector.broadcast %cst_100 : f32 to vector<8x128xf32>
    %c0_101 = arith.constant 0 : index
    %c0_102 = arith.constant 0 : index
    %c0_103 = arith.constant 0 : index
    %280 = vector.load %arg12[%c0_101, %c0_102, %c0_103] : memref<8x8x512xf32, #tpu.memory_space<vmem>>, vector<1x8x512xf32>
    %281 = vector.shape_cast %280 : vector<1x8x512xf32> to vector<8x512xf32>
    %cst_104 = arith.constant dense<0.000000e+00> : vector<8x512xf32>
    %282 = tpu.matmul %278, %277, %cst_104 {dimension_numbers = #tpu.dot_dimension_numbers<[1], [0], [0], [1], [0, 0, 1, 1], [], []>} : vector<8x128xf32>, vector<128x512xf32>, vector<8x512xf32> -> vector<8x512xf32>
    %283 = arith.addf %281, %282 : vector<8x512xf32>
    %284 = vector.extract_strided_slice %283 {offsets = [0, 0], sizes = [8, 128], strides = [1, 1]} : vector<8x512xf32> to vector<8x128xf32>
    %285 = arith.negf %284 : vector<8x128xf32>
    %286 = math.exp %285 : vector<8x128xf32>
    %cst_105 = arith.constant 1.000000e+00 : f32
    %287 = vector.broadcast %cst_105 : f32 to vector<8x128xf32>
    %288 = arith.addf %287, %286 : vector<8x128xf32>
    %289 = arith.divf %287, %288 : vector<8x128xf32>
    %290 = vector.extract_strided_slice %283 {offsets = [0, 128], sizes = [8, 128], strides = [1, 1]} : vector<8x512xf32> to vector<8x128xf32>
    %291 = arith.negf %290 : vector<8x128xf32>
    %292 = math.exp %291 : vector<8x128xf32>
    %cst_106 = arith.constant 1.000000e+00 : f32
    %293 = vector.broadcast %cst_106 : f32 to vector<8x128xf32>
    %294 = arith.addf %293, %292 : vector<8x128xf32>
    %295 = arith.divf %293, %294 : vector<8x128xf32>
    %296 = vector.extract_strided_slice %283 {offsets = [0, 256], sizes = [8, 128], strides = [1, 1]} : vector<8x512xf32> to vector<8x128xf32>
    %297 = math.tanh %296 : vector<8x128xf32>
    %298 = vector.extract_strided_slice %283 {offsets = [0, 384], sizes = [8, 128], strides = [1, 1]} : vector<8x512xf32> to vector<8x128xf32>
    %299 = arith.negf %298 : vector<8x128xf32>
    %300 = math.exp %299 : vector<8x128xf32>
    %cst_107 = arith.constant 1.000000e+00 : f32
    %301 = vector.broadcast %cst_107 : f32 to vector<8x128xf32>
    %302 = arith.addf %301, %300 : vector<8x128xf32>
    %303 = arith.divf %301, %302 : vector<8x128xf32>
    %304 = arith.mulf %295, %279 : vector<8x128xf32>
    %305 = arith.mulf %289, %297 : vector<8x128xf32>
    %306 = arith.addf %304, %305 : vector<8x128xf32>
    %307 = math.tanh %306 : vector<8x128xf32>
    %308 = arith.mulf %303, %307 : vector<8x128xf32>
    %c1_108 = arith.constant 1 : index
    %c0_109 = arith.constant 0 : index
    %c0_110 = arith.constant 0 : index
    %309 = vector.load %arg12[%c1_108, %c0_109, %c0_110] : memref<8x8x512xf32, #tpu.memory_space<vmem>>, vector<1x8x512xf32>
    %310 = vector.shape_cast %309 : vector<1x8x512xf32> to vector<8x512xf32>
    %cst_111 = arith.constant dense<0.000000e+00> : vector<8x512xf32>
    %311 = tpu.matmul %308, %277, %cst_111 {dimension_numbers = #tpu.dot_dimension_numbers<[1], [0], [0], [1], [0, 0, 1, 1], [], []>} : vector<8x128xf32>, vector<128x512xf32>, vector<8x512xf32> -> vector<8x512xf32>
    %312 = arith.addf %310, %311 : vector<8x512xf32>
    %313 = vector.extract_strided_slice %312 {offsets = [0, 0], sizes = [8, 128], strides = [1, 1]} : vector<8x512xf32> to vector<8x128xf32>
    %314 = arith.negf %313 : vector<8x128xf32>
    %315 = math.exp %314 : vector<8x128xf32>
    %cst_112 = arith.constant 1.000000e+00 : f32
    %316 = vector.broadcast %cst_112 : f32 to vector<8x128xf32>
    %317 = arith.addf %316, %315 : vector<8x128xf32>
    %318 = arith.divf %316, %317 : vector<8x128xf32>
    %319 = vector.extract_strided_slice %312 {offsets = [0, 128], sizes = [8, 128], strides = [1, 1]} : vector<8x512xf32> to vector<8x128xf32>
    %320 = arith.negf %319 : vector<8x128xf32>
    %321 = math.exp %320 : vector<8x128xf32>
    %cst_113 = arith.constant 1.000000e+00 : f32
    %322 = vector.broadcast %cst_113 : f32 to vector<8x128xf32>
    %323 = arith.addf %322, %321 : vector<8x128xf32>
    %324 = arith.divf %322, %323 : vector<8x128xf32>
    %325 = vector.extract_strided_slice %312 {offsets = [0, 256], sizes = [8, 128], strides = [1, 1]} : vector<8x512xf32> to vector<8x128xf32>
    %326 = math.tanh %325 : vector<8x128xf32>
    %327 = vector.extract_strided_slice %312 {offsets = [0, 384], sizes = [8, 128], strides = [1, 1]} : vector<8x512xf32> to vector<8x128xf32>
    %328 = arith.negf %327 : vector<8x128xf32>
    %329 = math.exp %328 : vector<8x128xf32>
    %cst_114 = arith.constant 1.000000e+00 : f32
    %330 = vector.broadcast %cst_114 : f32 to vector<8x128xf32>
    %331 = arith.addf %330, %329 : vector<8x128xf32>
    %332 = arith.divf %330, %331 : vector<8x128xf32>
    %333 = arith.mulf %324, %306 : vector<8x128xf32>
    %334 = arith.mulf %318, %326 : vector<8x128xf32>
    %335 = arith.addf %333, %334 : vector<8x128xf32>
    %336 = math.tanh %335 : vector<8x128xf32>
    %337 = arith.mulf %332, %336 : vector<8x128xf32>
    %c2_115 = arith.constant 2 : index
    %c0_116 = arith.constant 0 : index
    %c0_117 = arith.constant 0 : index
    %338 = vector.load %arg12[%c2_115, %c0_116, %c0_117] : memref<8x8x512xf32, #tpu.memory_space<vmem>>, vector<1x8x512xf32>
    %339 = vector.shape_cast %338 : vector<1x8x512xf32> to vector<8x512xf32>
    %cst_118 = arith.constant dense<0.000000e+00> : vector<8x512xf32>
    %340 = tpu.matmul %337, %277, %cst_118 {dimension_numbers = #tpu.dot_dimension_numbers<[1], [0], [0], [1], [0, 0, 1, 1], [], []>} : vector<8x128xf32>, vector<128x512xf32>, vector<8x512xf32> -> vector<8x512xf32>
    %341 = arith.addf %339, %340 : vector<8x512xf32>
    %342 = vector.extract_strided_slice %341 {offsets = [0, 0], sizes = [8, 128], strides = [1, 1]} : vector<8x512xf32> to vector<8x128xf32>
    %343 = arith.negf %342 : vector<8x128xf32>
    %344 = math.exp %343 : vector<8x128xf32>
    %cst_119 = arith.constant 1.000000e+00 : f32
    %345 = vector.broadcast %cst_119 : f32 to vector<8x128xf32>
    %346 = arith.addf %345, %344 : vector<8x128xf32>
    %347 = arith.divf %345, %346 : vector<8x128xf32>
    %348 = vector.extract_strided_slice %341 {offsets = [0, 128], sizes = [8, 128], strides = [1, 1]} : vector<8x512xf32> to vector<8x128xf32>
    %349 = arith.negf %348 : vector<8x128xf32>
    %350 = math.exp %349 : vector<8x128xf32>
    %cst_120 = arith.constant 1.000000e+00 : f32
    %351 = vector.broadcast %cst_120 : f32 to vector<8x128xf32>
    %352 = arith.addf %351, %350 : vector<8x128xf32>
    %353 = arith.divf %351, %352 : vector<8x128xf32>
    %354 = vector.extract_strided_slice %341 {offsets = [0, 256], sizes = [8, 128], strides = [1, 1]} : vector<8x512xf32> to vector<8x128xf32>
    %355 = math.tanh %354 : vector<8x128xf32>
    %356 = vector.extract_strided_slice %341 {offsets = [0, 384], sizes = [8, 128], strides = [1, 1]} : vector<8x512xf32> to vector<8x128xf32>
    %357 = arith.negf %356 : vector<8x128xf32>
    %358 = math.exp %357 : vector<8x128xf32>
    %cst_121 = arith.constant 1.000000e+00 : f32
    %359 = vector.broadcast %cst_121 : f32 to vector<8x128xf32>
    %360 = arith.addf %359, %358 : vector<8x128xf32>
    %361 = arith.divf %359, %360 : vector<8x128xf32>
    %362 = arith.mulf %353, %335 : vector<8x128xf32>
    %363 = arith.mulf %347, %355 : vector<8x128xf32>
    %364 = arith.addf %362, %363 : vector<8x128xf32>
    %365 = math.tanh %364 : vector<8x128xf32>
    %366 = arith.mulf %361, %365 : vector<8x128xf32>
    %c3_122 = arith.constant 3 : index
    %c0_123 = arith.constant 0 : index
    %c0_124 = arith.constant 0 : index
    %367 = vector.load %arg12[%c3_122, %c0_123, %c0_124] : memref<8x8x512xf32, #tpu.memory_space<vmem>>, vector<1x8x512xf32>
    %368 = vector.shape_cast %367 : vector<1x8x512xf32> to vector<8x512xf32>
    %cst_125 = arith.constant dense<0.000000e+00> : vector<8x512xf32>
    %369 = tpu.matmul %366, %277, %cst_125 {dimension_numbers = #tpu.dot_dimension_numbers<[1], [0], [0], [1], [0, 0, 1, 1], [], []>} : vector<8x128xf32>, vector<128x512xf32>, vector<8x512xf32> -> vector<8x512xf32>
    %370 = arith.addf %368, %369 : vector<8x512xf32>
    %371 = vector.extract_strided_slice %370 {offsets = [0, 0], sizes = [8, 128], strides = [1, 1]} : vector<8x512xf32> to vector<8x128xf32>
    %372 = arith.negf %371 : vector<8x128xf32>
    %373 = math.exp %372 : vector<8x128xf32>
    %cst_126 = arith.constant 1.000000e+00 : f32
    %374 = vector.broadcast %cst_126 : f32 to vector<8x128xf32>
    %375 = arith.addf %374, %373 : vector<8x128xf32>
    %376 = arith.divf %374, %375 : vector<8x128xf32>
    %377 = vector.extract_strided_slice %370 {offsets = [0, 128], sizes = [8, 128], strides = [1, 1]} : vector<8x512xf32> to vector<8x128xf32>
    %378 = arith.negf %377 : vector<8x128xf32>
    %379 = math.exp %378 : vector<8x128xf32>
    %cst_127 = arith.constant 1.000000e+00 : f32
    %380 = vector.broadcast %cst_127 : f32 to vector<8x128xf32>
    %381 = arith.addf %380, %379 : vector<8x128xf32>
    %382 = arith.divf %380, %381 : vector<8x128xf32>
    %383 = vector.extract_strided_slice %370 {offsets = [0, 256], sizes = [8, 128], strides = [1, 1]} : vector<8x512xf32> to vector<8x128xf32>
    %384 = math.tanh %383 : vector<8x128xf32>
    %385 = vector.extract_strided_slice %370 {offsets = [0, 384], sizes = [8, 128], strides = [1, 1]} : vector<8x512xf32> to vector<8x128xf32>
    %386 = arith.negf %385 : vector<8x128xf32>
    %387 = math.exp %386 : vector<8x128xf32>
    %cst_128 = arith.constant 1.000000e+00 : f32
    %388 = vector.broadcast %cst_128 : f32 to vector<8x128xf32>
    %389 = arith.addf %388, %387 : vector<8x128xf32>
    %390 = arith.divf %388, %389 : vector<8x128xf32>
    %391 = arith.mulf %382, %364 : vector<8x128xf32>
    %392 = arith.mulf %376, %384 : vector<8x128xf32>
    %393 = arith.addf %391, %392 : vector<8x128xf32>
    %394 = math.tanh %393 : vector<8x128xf32>
    %395 = arith.mulf %390, %394 : vector<8x128xf32>
    %c4_129 = arith.constant 4 : index
    %c0_130 = arith.constant 0 : index
    %c0_131 = arith.constant 0 : index
    %396 = vector.load %arg12[%c4_129, %c0_130, %c0_131] : memref<8x8x512xf32, #tpu.memory_space<vmem>>, vector<1x8x512xf32>
    %397 = vector.shape_cast %396 : vector<1x8x512xf32> to vector<8x512xf32>
    %cst_132 = arith.constant dense<0.000000e+00> : vector<8x512xf32>
    %398 = tpu.matmul %395, %277, %cst_132 {dimension_numbers = #tpu.dot_dimension_numbers<[1], [0], [0], [1], [0, 0, 1, 1], [], []>} : vector<8x128xf32>, vector<128x512xf32>, vector<8x512xf32> -> vector<8x512xf32>
    %399 = arith.addf %397, %398 : vector<8x512xf32>
    %400 = vector.extract_strided_slice %399 {offsets = [0, 0], sizes = [8, 128], strides = [1, 1]} : vector<8x512xf32> to vector<8x128xf32>
    %401 = arith.negf %400 : vector<8x128xf32>
    %402 = math.exp %401 : vector<8x128xf32>
    %cst_133 = arith.constant 1.000000e+00 : f32
    %403 = vector.broadcast %cst_133 : f32 to vector<8x128xf32>
    %404 = arith.addf %403, %402 : vector<8x128xf32>
    %405 = arith.divf %403, %404 : vector<8x128xf32>
    %406 = vector.extract_strided_slice %399 {offsets = [0, 128], sizes = [8, 128], strides = [1, 1]} : vector<8x512xf32> to vector<8x128xf32>
    %407 = arith.negf %406 : vector<8x128xf32>
    %408 = math.exp %407 : vector<8x128xf32>
    %cst_134 = arith.constant 1.000000e+00 : f32
    %409 = vector.broadcast %cst_134 : f32 to vector<8x128xf32>
    %410 = arith.addf %409, %408 : vector<8x128xf32>
    %411 = arith.divf %409, %410 : vector<8x128xf32>
    %412 = vector.extract_strided_slice %399 {offsets = [0, 256], sizes = [8, 128], strides = [1, 1]} : vector<8x512xf32> to vector<8x128xf32>
    %413 = math.tanh %412 : vector<8x128xf32>
    %414 = vector.extract_strided_slice %399 {offsets = [0, 384], sizes = [8, 128], strides = [1, 1]} : vector<8x512xf32> to vector<8x128xf32>
    %415 = arith.negf %414 : vector<8x128xf32>
    %416 = math.exp %415 : vector<8x128xf32>
    %cst_135 = arith.constant 1.000000e+00 : f32
    %417 = vector.broadcast %cst_135 : f32 to vector<8x128xf32>
    %418 = arith.addf %417, %416 : vector<8x128xf32>
    %419 = arith.divf %417, %418 : vector<8x128xf32>
    %420 = arith.mulf %411, %393 : vector<8x128xf32>
    %421 = arith.mulf %405, %413 : vector<8x128xf32>
    %422 = arith.addf %420, %421 : vector<8x128xf32>
    %423 = math.tanh %422 : vector<8x128xf32>
    %424 = arith.mulf %419, %423 : vector<8x128xf32>
    %c5_136 = arith.constant 5 : index
    %c0_137 = arith.constant 0 : index
    %c0_138 = arith.constant 0 : index
    %425 = vector.load %arg12[%c5_136, %c0_137, %c0_138] : memref<8x8x512xf32, #tpu.memory_space<vmem>>, vector<1x8x512xf32>
    %426 = vector.shape_cast %425 : vector<1x8x512xf32> to vector<8x512xf32>
    %cst_139 = arith.constant dense<0.000000e+00> : vector<8x512xf32>
    %427 = tpu.matmul %424, %277, %cst_139 {dimension_numbers = #tpu.dot_dimension_numbers<[1], [0], [0], [1], [0, 0, 1, 1], [], []>} : vector<8x128xf32>, vector<128x512xf32>, vector<8x512xf32> -> vector<8x512xf32>
    %428 = arith.addf %426, %427 : vector<8x512xf32>
    %429 = vector.extract_strided_slice %428 {offsets = [0, 0], sizes = [8, 128], strides = [1, 1]} : vector<8x512xf32> to vector<8x128xf32>
    %430 = arith.negf %429 : vector<8x128xf32>
    %431 = math.exp %430 : vector<8x128xf32>
    %cst_140 = arith.constant 1.000000e+00 : f32
    %432 = vector.broadcast %cst_140 : f32 to vector<8x128xf32>
    %433 = arith.addf %432, %431 : vector<8x128xf32>
    %434 = arith.divf %432, %433 : vector<8x128xf32>
    %435 = vector.extract_strided_slice %428 {offsets = [0, 128], sizes = [8, 128], strides = [1, 1]} : vector<8x512xf32> to vector<8x128xf32>
    %436 = arith.negf %435 : vector<8x128xf32>
    %437 = math.exp %436 : vector<8x128xf32>
    %cst_141 = arith.constant 1.000000e+00 : f32
    %438 = vector.broadcast %cst_141 : f32 to vector<8x128xf32>
    %439 = arith.addf %438, %437 : vector<8x128xf32>
    %440 = arith.divf %438, %439 : vector<8x128xf32>
    %441 = vector.extract_strided_slice %428 {offsets = [0, 256], sizes = [8, 128], strides = [1, 1]} : vector<8x512xf32> to vector<8x128xf32>
    %442 = math.tanh %441 : vector<8x128xf32>
    %443 = vector.extract_strided_slice %428 {offsets = [0, 384], sizes = [8, 128], strides = [1, 1]} : vector<8x512xf32> to vector<8x128xf32>
    %444 = arith.negf %443 : vector<8x128xf32>
    %445 = math.exp %444 : vector<8x128xf32>
    %cst_142 = arith.constant 1.000000e+00 : f32
    %446 = vector.broadcast %cst_142 : f32 to vector<8x128xf32>
    %447 = arith.addf %446, %445 : vector<8x128xf32>
    %448 = arith.divf %446, %447 : vector<8x128xf32>
    %449 = arith.mulf %440, %422 : vector<8x128xf32>
    %450 = arith.mulf %434, %442 : vector<8x128xf32>
    %451 = arith.addf %449, %450 : vector<8x128xf32>
    %452 = math.tanh %451 : vector<8x128xf32>
    %453 = arith.mulf %448, %452 : vector<8x128xf32>
    %c6_143 = arith.constant 6 : index
    %c0_144 = arith.constant 0 : index
    %c0_145 = arith.constant 0 : index
    %454 = vector.load %arg12[%c6_143, %c0_144, %c0_145] : memref<8x8x512xf32, #tpu.memory_space<vmem>>, vector<1x8x512xf32>
    %455 = vector.shape_cast %454 : vector<1x8x512xf32> to vector<8x512xf32>
    %cst_146 = arith.constant dense<0.000000e+00> : vector<8x512xf32>
    %456 = tpu.matmul %453, %277, %cst_146 {dimension_numbers = #tpu.dot_dimension_numbers<[1], [0], [0], [1], [0, 0, 1, 1], [], []>} : vector<8x128xf32>, vector<128x512xf32>, vector<8x512xf32> -> vector<8x512xf32>
    %457 = arith.addf %455, %456 : vector<8x512xf32>
    %458 = vector.extract_strided_slice %457 {offsets = [0, 0], sizes = [8, 128], strides = [1, 1]} : vector<8x512xf32> to vector<8x128xf32>
    %459 = arith.negf %458 : vector<8x128xf32>
    %460 = math.exp %459 : vector<8x128xf32>
    %cst_147 = arith.constant 1.000000e+00 : f32
    %461 = vector.broadcast %cst_147 : f32 to vector<8x128xf32>
    %462 = arith.addf %461, %460 : vector<8x128xf32>
    %463 = arith.divf %461, %462 : vector<8x128xf32>
    %464 = vector.extract_strided_slice %457 {offsets = [0, 128], sizes = [8, 128], strides = [1, 1]} : vector<8x512xf32> to vector<8x128xf32>
    %465 = arith.negf %464 : vector<8x128xf32>
    %466 = math.exp %465 : vector<8x128xf32>
    %cst_148 = arith.constant 1.000000e+00 : f32
    %467 = vector.broadcast %cst_148 : f32 to vector<8x128xf32>
    %468 = arith.addf %467, %466 : vector<8x128xf32>
    %469 = arith.divf %467, %468 : vector<8x128xf32>
    %470 = vector.extract_strided_slice %457 {offsets = [0, 256], sizes = [8, 128], strides = [1, 1]} : vector<8x512xf32> to vector<8x128xf32>
    %471 = math.tanh %470 : vector<8x128xf32>
    %472 = vector.extract_strided_slice %457 {offsets = [0, 384], sizes = [8, 128], strides = [1, 1]} : vector<8x512xf32> to vector<8x128xf32>
    %473 = arith.negf %472 : vector<8x128xf32>
    %474 = math.exp %473 : vector<8x128xf32>
    %cst_149 = arith.constant 1.000000e+00 : f32
    %475 = vector.broadcast %cst_149 : f32 to vector<8x128xf32>
    %476 = arith.addf %475, %474 : vector<8x128xf32>
    %477 = arith.divf %475, %476 : vector<8x128xf32>
    %478 = arith.mulf %469, %451 : vector<8x128xf32>
    %479 = arith.mulf %463, %471 : vector<8x128xf32>
    %480 = arith.addf %478, %479 : vector<8x128xf32>
    %481 = math.tanh %480 : vector<8x128xf32>
    %482 = arith.mulf %477, %481 : vector<8x128xf32>
    %c7_150 = arith.constant 7 : index
    %c0_151 = arith.constant 0 : index
    %c0_152 = arith.constant 0 : index
    %483 = vector.load %arg12[%c7_150, %c0_151, %c0_152] : memref<8x8x512xf32, #tpu.memory_space<vmem>>, vector<1x8x512xf32>
    %484 = vector.shape_cast %483 : vector<1x8x512xf32> to vector<8x512xf32>
    %cst_153 = arith.constant dense<0.000000e+00> : vector<8x512xf32>
    %485 = tpu.matmul %482, %277, %cst_153 {dimension_numbers = #tpu.dot_dimension_numbers<[1], [0], [0], [1], [0, 0, 1, 1], [], []>} : vector<8x128xf32>, vector<128x512xf32>, vector<8x512xf32> -> vector<8x512xf32>
    %486 = arith.addf %484, %485 : vector<8x512xf32>
    %487 = vector.extract_strided_slice %486 {offsets = [0, 0], sizes = [8, 128], strides = [1, 1]} : vector<8x512xf32> to vector<8x128xf32>
    %488 = arith.negf %487 : vector<8x128xf32>
    %489 = math.exp %488 : vector<8x128xf32>
    %cst_154 = arith.constant 1.000000e+00 : f32
    %490 = vector.broadcast %cst_154 : f32 to vector<8x128xf32>
    %491 = arith.addf %490, %489 : vector<8x128xf32>
    %492 = arith.divf %490, %491 : vector<8x128xf32>
    %493 = vector.extract_strided_slice %486 {offsets = [0, 128], sizes = [8, 128], strides = [1, 1]} : vector<8x512xf32> to vector<8x128xf32>
    %494 = arith.negf %493 : vector<8x128xf32>
    %495 = math.exp %494 : vector<8x128xf32>
    %cst_155 = arith.constant 1.000000e+00 : f32
    %496 = vector.broadcast %cst_155 : f32 to vector<8x128xf32>
    %497 = arith.addf %496, %495 : vector<8x128xf32>
    %498 = arith.divf %496, %497 : vector<8x128xf32>
    %499 = vector.extract_strided_slice %486 {offsets = [0, 256], sizes = [8, 128], strides = [1, 1]} : vector<8x512xf32> to vector<8x128xf32>
    %500 = math.tanh %499 : vector<8x128xf32>
    %501 = vector.extract_strided_slice %486 {offsets = [0, 384], sizes = [8, 128], strides = [1, 1]} : vector<8x512xf32> to vector<8x128xf32>
    %502 = arith.negf %501 : vector<8x128xf32>
    %503 = math.exp %502 : vector<8x128xf32>
    %cst_156 = arith.constant 1.000000e+00 : f32
    %504 = vector.broadcast %cst_156 : f32 to vector<8x128xf32>
    %505 = arith.addf %504, %503 : vector<8x128xf32>
    %506 = arith.divf %504, %505 : vector<8x128xf32>
    %507 = arith.mulf %498, %480 : vector<8x128xf32>
    %508 = arith.mulf %492, %500 : vector<8x128xf32>
    %509 = arith.addf %507, %508 : vector<8x128xf32>
    %510 = math.tanh %509 : vector<8x128xf32>
    %511 = arith.mulf %506, %510 : vector<8x128xf32>
    %c0_157 = arith.constant 0 : index
    %c0_158 = arith.constant 0 : index
    %512 = vector.load %arg8[%c0_157, %c0_158] : memref<128x3xf32, #tpu.memory_space<vmem>>, vector<128x3xf32>
    %cst_159 = arith.constant dense<0.000000e+00> : vector<8x3xf32>
    %513 = tpu.matmul %511, %512, %cst_159 {dimension_numbers = #tpu.dot_dimension_numbers<[1], [0], [0], [1], [0, 0, 1, 1], [], []>} : vector<8x128xf32>, vector<128x3xf32>, vector<8x3xf32> -> vector<8x3xf32>
    %c0_160 = arith.constant 0 : index
    %c0_161 = arith.constant 0 : index
    %514 = vector.load %arg9[%c0_160, %c0_161] : memref<1x3xf32, #tpu.memory_space<vmem>>, vector<1x3xf32>
    %515 = vector.broadcast %514 : vector<1x3xf32> to vector<8x3xf32>
    %516 = arith.addf %513, %515 : vector<8x3xf32>
    %c0_162 = arith.constant 0 : index
    %c0_163 = arith.constant 0 : index
    %517 = vector.load %arg10[%c0_162, %c0_163] : memref<8x3xf32, #tpu.memory_space<vmem>>, vector<8x3xf32>
    tpu.vector_store %arg10[%c0_162, %c0_163], %516 {strides = array<i32>} : memref<8x3xf32, #tpu.memory_space<vmem>>, vector<8x3xf32>,
    return
  }
  func.func @transform_0(%arg0: i32) -> (i32, i32, i32) {
    %c0_i32 = arith.constant 0 : i32
    %c0_i32_0 = arith.constant 0 : i32
    %c0_i32_1 = arith.constant 0 : i32
    %c0_i32_2 = arith.constant 0 : i32
    return %c0_i32, %c0_i32_0, %c0_i32_1 : i32, i32, i32
  }
  func.func @transform_1(%arg0: i32) -> (i32, i32) {
    %c0_i32 = arith.constant 0 : i32
    %c0_i32_0 = arith.constant 0 : i32
    %c0_i32_1 = arith.constant 0 : i32
    return %c0_i32, %c0_i32_0 : i32, i32
  }
  func.func @transform_2(%arg0: i32) -> (i32, i32) {
    %c0_i32 = arith.constant 0 : i32
    %c0_i32_0 = arith.constant 0 : i32
    %c0_i32_1 = arith.constant 0 : i32
    return %c0_i32, %c0_i32_0 : i32, i32
  }
  func.func @transform_3(%arg0: i32) -> (i32, i32) {
    %c0_i32 = arith.constant 0 : i32
    %c0_i32_0 = arith.constant 0 : i32
    %c0_i32_1 = arith.constant 0 : i32
    return %c0_i32, %c0_i32_0 : i32, i32
  }
  func.func @transform_4(%arg0: i32) -> (i32, i32) {
    %c0_i32 = arith.constant 0 : i32
    %c0_i32_0 = arith.constant 0 : i32
    %c0_i32_1 = arith.constant 0 : i32
    return %c0_i32, %c0_i32_0 : i32, i32
  }
  func.func @transform_5(%arg0: i32) -> (i32, i32) {
    %c0_i32 = arith.constant 0 : i32
    %c0_i32_0 = arith.constant 0 : i32
    %c0_i32_1 = arith.constant 0 : i32
    return %c0_i32, %c0_i32_0 : i32, i32
  }
  func.func @transform_6(%arg0: i32) -> (i32, i32) {
    %c0_i32 = arith.constant 0 : i32
    %c0_i32_0 = arith.constant 0 : i32
    %c0_i32_1 = arith.constant 0 : i32
    return %c0_i32, %c0_i32_0 : i32, i32
  }
  func.func @transform_7(%arg0: i32) -> (i32, i32) {
    %c0_i32 = arith.constant 0 : i32
    %c0_i32_0 = arith.constant 0 : i32
    %c0_i32_1 = arith.constant 0 : i32
    return %c0_i32, %c0_i32_0 : i32, i32
  }
  func.func @transform_8(%arg0: i32) -> (i32, i32) {
    %c0_i32 = arith.constant 0 : i32
    %c0_i32_0 = arith.constant 0 : i32
    %c0_i32_1 = arith.constant 0 : i32
    return %c0_i32, %c0_i32_0 : i32, i32
  }
  func.func @transform_9(%arg0: i32) -> (i32, i32) {
    %c0_i32 = arith.constant 0 : i32
    %c0_i32_0 = arith.constant 0 : i32
    %c0_i32_1 = arith.constant 0 : i32
    return %c0_i32, %c0_i32_0 : i32, i32
  }
}

</mosaic_0001>

<llo_original>
// kernel: lstm_model_forward.1
$region0: #{lstm_model_forward.1}
  #allocation0 [shape = 'u32[]', space=smem, size = 0x4, offset = 0x4, fixed_abs, tag = 'smem constant byte address 0x4 - core index']
  #allocation1 [shape = 'u32[72,128]{1,0:T(1,128)}', space=vmem, size = 0x9000, scoped, tag = 'internal scratch']
  #allocation2 [shape = 'f32[8,8,512]{2,1,0:T(8,128)}', space=vmem, size = 0x20000, scoped, tag = 'scratch operand']
  #allocation3 [shape = 'f32[8,8,512]{2,1,0:T(8,128)}', space=vmem, size = 0x20000, scoped, tag = 'scratch operand']
  #allocation4 [shape = 'f32[8,8,128]{2,1,0:T(8,128)}', space=vmem, size = 0x8000, scoped, tag = 'scratch operand']
  %s0 = inlined_call_operand.vmem [shape: f32[8,8,16], index: 0, kind: input, shape index: {}]
  %s1 = inlined_call_operand.vmem [shape: f32[16,512], index: 1, kind: input, shape index: {}]
  %s2 = inlined_call_operand.vmem [shape: f32[128,512], index: 2, kind: input, shape index: {}]
  %s3 = inlined_call_operand.vmem [shape: f32[1,512], index: 3, kind: input, shape index: {}]
  %s4 = inlined_call_operand.vmem [shape: f32[128,512], index: 4, kind: input, shape index: {}]
  %s5 = inlined_call_operand.vmem [shape: f32[128,512], index: 5, kind: input, shape index: {}]
  %s6 = inlined_call_operand.vmem [shape: f32[1,512], index: 6, kind: input, shape index: {}]
  %s7 = inlined_call_operand.vmem [shape: f32[128,3], index: 7, kind: input, shape index: {}]
  %s8 = inlined_call_operand.vmem [shape: f32[1,3], index: 8, kind: input, shape index: {}]
  %s9 = inlined_call_operand.vmem [shape: f32[8,3], index: 9, kind: output, shape index: {}]
  %s10 = sld [smem:[#allocation0]]
  $region46: #{lstm_model_forward.1} parent=0
    _
  %s12 = ssub.s32 1, %s10
  %s13 = scalar_select 0, %s12, %s10
  // Predicated region
  $region2: #{lstm_model_forward.1} parent=0 // pred_check
    _
  $region3: #{lstm_model_forward.1} parent=0 // pred_check_branch
    %15 = sbr.rel (0) target = $region5
  $region4: #{lstm_model_forward.1} parent=0 // pred_region
    _
  $region5: #{lstm_model_forward.1} parent=0 // pred_fallthru
    _
  // Predicated region
  $region6: #{lstm_model_forward.1} parent=0 // pred_check
    _
  $region7: #{lstm_model_forward.1} parent=0 // pred_check_branch
    %17 = sbr.rel (0) target = $region9
  $region8: #{lstm_model_forward.1} parent=0 // pred_region
    _
  $region9: #{lstm_model_forward.1} parent=0 // pred_fallthru
    _
  // Predicated region
  $region10: #{lstm_model_forward.1} parent=0 // pred_check
    _
  $region11: #{lstm_model_forward.1} parent=0 // pred_check_branch
    %19 = sbr.rel (0) target = $region13
  $region12: #{lstm_model_forward.1} parent=0 // pred_region
    _
  $region13: #{lstm_model_forward.1} parent=0 // pred_fallthru
    _
  // Predicated region
  $region14: #{lstm_model_forward.1} parent=0 // pred_check
    _
  $region15: #{lstm_model_forward.1} parent=0 // pred_check_branch
    %21 = sbr.rel (0) target = $region17
  $region16: #{lstm_model_forward.1} parent=0 // pred_region
    _
  $region17: #{lstm_model_forward.1} parent=0 // pred_fallthru
    _
  // Predicated region
  $region18: #{lstm_model_forward.1} parent=0 // pred_check
    _
  $region19: #{lstm_model_forward.1} parent=0 // pred_check_branch
    %23 = sbr.rel (0) target = $region21
  $region20: #{lstm_model_forward.1} parent=0 // pred_region
    _
  $region21: #{lstm_model_forward.1} parent=0 // pred_fallthru
    _
  // Predicated region
  $region22: #{lstm_model_forward.1} parent=0 // pred_check
    _
  $region23: #{lstm_model_forward.1} parent=0 // pred_check_branch
    %25 = sbr.rel (0) target = $region25
  $region24: #{lstm_model_forward.1} parent=0 // pred_region
    _
  $region25: #{lstm_model_forward.1} parent=0 // pred_fallthru
    _
  // Predicated region
  $region26: #{lstm_model_forward.1} parent=0 // pred_check
    _
  $region27: #{lstm_model_forward.1} parent=0 // pred_check_branch
    %27 = sbr.rel (0) target = $region29
  $region28: #{lstm_model_forward.1} parent=0 // pred_region
    _
  $region29: #{lstm_model_forward.1} parent=0 // pred_fallthru
    _
  // Predicated region
  $region30: #{lstm_model_forward.1} parent=0 // pred_check
    _
  $region31: #{lstm_model_forward.1} parent=0 // pred_check_branch
    %29 = sbr.rel (0) target = $region33
  $region32: #{lstm_model_forward.1} parent=0 // pred_region
    _
  $region33: #{lstm_model_forward.1} parent=0 // pred_fallthru
    _
  // Predicated region
  $region34: #{lstm_model_forward.1} parent=0 // pred_check
    _
  $region35: #{lstm_model_forward.1} parent=0 // pred_check_branch
    %31 = sbr.rel (0) target = $region37
  $region36: #{lstm_model_forward.1} parent=0 // pred_region
    _
  $region37: #{lstm_model_forward.1} parent=0 // pred_fallthru
    _
  %v32 = vld [vmem:[%s0] sm:$0xff]
  %v33 = vld [vmem:[%s0 + $0x8] sm:$0xff]
  %v34 = vld [vmem:[%s0 + $0x10] sm:$0xff]
  %v35 = vld [vmem:[%s0 + $0x18] sm:$0xff]
  %v36 = vld [vmem:[%s0 + $0x20] sm:$0xff]
  %v37 = vld [vmem:[%s0 + $0x28] sm:$0xff]
  %v38 = vld [vmem:[%s0 + $0x30] sm:$0xff]
  %v39 = vld [vmem:[%s0 + $0x38] sm:$0xff]
  %v40 = vld [vmem:[%s1] sm:$0xff]
  %v41 = vld [vmem:[%s1 + $0x8] sm:$0xff]
  %v42 = vld [vmem:[%s1 + $0x10] sm:$0xff]
  %v43 = vld [vmem:[%s1 + $0x18] sm:$0xff]
  %v44 = vld [vmem:[%s1 + $0x20] sm:$0xff]
  %v45 = vld [vmem:[%s1 + $0x28] sm:$0xff]
  %v46 = vld [vmem:[%s1 + $0x30] sm:$0xff]
  %v47 = vld [vmem:[%s1 + $0x38] sm:$0xff]
  %v48 = vld [vmem:[%s3] sm:$0xf]
  %v50 = vperm.slane %v48, 0
  %v51 = vperm.slane %v48, 1
  %v52 = vperm.slane %v48, 2
  %v53 = vperm.slane %v48, 3
  %vm58 = vcmask 130048
  %v60 = vsel %vm58, %v32, 0
  %v63 = vsel %vm58, %v33, 0
  %v66 = vsel %vm58, %v34, 0
  %v69 = vsel %vm58, %v35, 0
  %v72 = vsel %vm58, %v36, 0
  %v75 = vsel %vm58, %v37, 0
  %v78 = vsel %vm58, %v38, 0
  %v81 = vsel %vm58, %v39, 0
  %83 = vmatpush.msra.mxu0 0.0
  %84 = vmatpush.msra.mxu0 0.0
  %85 = vmatpush.msra.mxu0 0.0
  %86 = vmatpush.msra.mxu0 0.0
  %87 = vmatpush.msra.mxu0 0.0
  %88 = vmatpush.msra.mxu0 0.0
  %89 = vmatpush.msra.mxu0 0.0
  %90 = vmatpush.msra.mxu0 0.0
  %91 = vmatpush.msra.mxu0 0.0
  %92 = vmatpush.msra.mxu0 0.0
  %93 = vmatpush.msra.mxu0 0.0
  %94 = vmatpush.msra.mxu0 0.0
  %95 = vmatpush.msra.mxu0 0.0
  %96 = vmatpush.msra.mxu0 0.0
  %97 = vmatpush.msra.mxu0 %v44
  %98 = vmatpush.msra.mxu0 %v40
  %99 = vmatmul.f32.gmra.mxu0 %v60
  %v100 = vpop.f32.mrf.mxu0
  %v101 = vadd.f32 %v50, %v100
  %102 = vmatmul.f32.gmra.mxu0 %v63
  %v103 = vpop.f32.mrf.mxu0
  %v104 = vadd.f32 %v50, %v103
  %105 = vmatmul.f32.gmra.mxu0 %v66
  %v106 = vpop.f32.mrf.mxu0
  %v107 = vadd.f32 %v50, %v106
  %108 = vmatmul.f32.gmra.mxu0 %v69
  %v109 = vpop.f32.mrf.mxu0
  %v110 = vadd.f32 %v50, %v109
  %111 = vmatmul.f32.gmra.mxu0 %v72
  %v112 = vpop.f32.mrf.mxu0
  %v113 = vadd.f32 %v50, %v112
  %114 = vmatmul.f32.gmra.mxu0 %v75
  %v115 = vpop.f32.mrf.mxu0
  %v116 = vadd.f32 %v50, %v115
  %117 = vmatmul.f32.gmra.mxu0 %v78
  %v118 = vpop.f32.mrf.mxu0
  %v119 = vadd.f32 %v50, %v118
  %120 = vmatmul.f32.gmra.mxu0 %v81
  %v121 = vpop.f32.mrf.mxu0
  %v122 = vadd.f32 %v50, %v121
  %123 = vdwg.mxu0
  %124 = vmatpush.msra.mxu0 0.0
  %125 = vmatpush.msra.mxu0 0.0
  %126 = vmatpush.msra.mxu0 0.0
  %127 = vmatpush.msra.mxu0 0.0
  %128 = vmatpush.msra.mxu0 0.0
  %129 = vmatpush.msra.mxu0 0.0
  %130 = vmatpush.msra.mxu0 0.0
  %131 = vmatpush.msra.mxu0 0.0
  %132 = vmatpush.msra.mxu0 0.0
  %133 = vmatpush.msra.mxu0 0.0
  %134 = vmatpush.msra.mxu0 0.0
  %135 = vmatpush.msra.mxu0 0.0
  %136 = vmatpush.msra.mxu0 0.0
  %137 = vmatpush.msra.mxu0 0.0
  %138 = vmatpush.msra.mxu0 %v45
  %139 = vmatpush.msra.mxu0 %v41
  %140 = vmatmul.f32.gmra.mxu0 %v60
  %v141 = vpop.f32.mrf.mxu0
  %v142 = vadd.f32 %v51, %v141
  %143 = vmatmul.f32.gmra.mxu0 %v63
  %v144 = vpop.f32.mrf.mxu0
  %v145 = vadd.f32 %v51, %v144
  %146 = vmatmul.f32.gmra.mxu0 %v66
  %v147 = vpop.f32.mrf.mxu0
  %v148 = vadd.f32 %v51, %v147
  %149 = vmatmul.f32.gmra.mxu0 %v69
  %v150 = vpop.f32.mrf.mxu0
  %v151 = vadd.f32 %v51, %v150
  %152 = vmatmul.f32.gmra.mxu0 %v72
  %v153 = vpop.f32.mrf.mxu0
  %v154 = vadd.f32 %v51, %v153
  %155 = vmatmul.f32.gmra.mxu0 %v75
  %v156 = vpop.f32.mrf.mxu0
  %v157 = vadd.f32 %v51, %v156
  %158 = vmatmul.f32.gmra.mxu0 %v78
  %v159 = vpop.f32.mrf.mxu0
  %v160 = vadd.f32 %v51, %v159
  %161 = vmatmul.f32.gmra.mxu0 %v81
  %v162 = vpop.f32.mrf.mxu0
  %v163 = vadd.f32 %v51, %v162
  %164 = vdwg.mxu0
  %165 = vmatpush.msra.mxu0 0.0
  %166 = vmatpush.msra.mxu0 0.0
  %167 = vmatpush.msra.mxu0 0.0
  %168 = vmatpush.msra.mxu0 0.0
  %169 = vmatpush.msra.mxu0 0.0
  %170 = vmatpush.msra.mxu0 0.0
  %171 = vmatpush.msra.mxu0 0.0
  %172 = vmatpush.msra.mxu0 0.0
  %173 = vmatpush.msra.mxu0 0.0
  %174 = vmatpush.msra.mxu0 0.0
  %175 = vmatpush.msra.mxu0 0.0
  %176 = vmatpush.msra.mxu0 0.0
  %177 = vmatpush.msra.mxu0 0.0
  %178 = vmatpush.msra.mxu0 0.0
  %179 = vmatpush.msra.mxu0 %v46
  %180 = vmatpush.msra.mxu0 %v42
  %181 = vmatmul.f32.gmra.mxu0 %v60
  %v182 = vpop.f32.mrf.mxu0
  %v183 = vadd.f32 %v52, %v182
  %184 = vmatmul.f32.gmra.mxu0 %v63
  %v185 = vpop.f32.mrf.mxu0
  %v186 = vadd.f32 %v52, %v185
  %187 = vmatmul.f32.gmra.mxu0 %v66
  %v188 = vpop.f32.mrf.mxu0
  %v189 = vadd.f32 %v52, %v188
  %190 = vmatmul.f32.gmra.mxu0 %v69
  %v191 = vpop.f32.mrf.mxu0
  %v192 = vadd.f32 %v52, %v191
  %193 = vmatmul.f32.gmra.mxu0 %v72
  %v194 = vpop.f32.mrf.mxu0
  %v195 = vadd.f32 %v52, %v194
  %196 = vmatmul.f32.gmra.mxu0 %v75
  %v197 = vpop.f32.mrf.mxu0
  %v198 = vadd.f32 %v52, %v197
  %199 = vmatmul.f32.gmra.mxu0 %v78
  %v200 = vpop.f32.mrf.mxu0
  %v201 = vadd.f32 %v52, %v200
  %202 = vmatmul.f32.gmra.mxu0 %v81
  %v203 = vpop.f32.mrf.mxu0
  %v204 = vadd.f32 %v52, %v203
  %205 = vdwg.mxu0
  %206 = vmatpush.msra.mxu0 0.0
  %207 = vmatpush.msra.mxu0 0.0
  %208 = vmatpush.msra.mxu0 0.0
  %209 = vmatpush.msra.mxu0 0.0
  %210 = vmatpush.msra.mxu0 0.0
  %211 = vmatpush.msra.mxu0 0.0
  %212 = vmatpush.msra.mxu0 0.0
  %213 = vmatpush.msra.mxu0 0.0
  %214 = vmatpush.msra.mxu0 0.0
  %215 = vmatpush.msra.mxu0 0.0
  %216 = vmatpush.msra.mxu0 0.0
  %217 = vmatpush.msra.mxu0 0.0
  %218 = vmatpush.msra.mxu0 0.0
  %219 = vmatpush.msra.mxu0 0.0
  %220 = vmatpush.msra.mxu0 %v47
  %221 = vmatpush.msra.mxu0 %v43
  %222 = vmatmul.f32.gmra.mxu0 %v60
  %v223 = vpop.f32.mrf.mxu0
  %v224 = vadd.f32 %v53, %v223
  %225 = vmatmul.f32.gmra.mxu0 %v63
  %v226 = vpop.f32.mrf.mxu0
  %v227 = vadd.f32 %v53, %v226
  %228 = vmatmul.f32.gmra.mxu0 %v66
  %v229 = vpop.f32.mrf.mxu0
  %v230 = vadd.f32 %v53, %v229
  %231 = vmatmul.f32.gmra.mxu0 %v69
  %v232 = vpop.f32.mrf.mxu0
  %v233 = vadd.f32 %v53, %v232
  %234 = vmatmul.f32.gmra.mxu0 %v72
  %v235 = vpop.f32.mrf.mxu0
  %v236 = vadd.f32 %v53, %v235
  %237 = vmatmul.f32.gmra.mxu0 %v75
  %v238 = vpop.f32.mrf.mxu0
  %v239 = vadd.f32 %v53, %v238
  %240 = vmatmul.f32.gmra.mxu0 %v78
  %v241 = vpop.f32.mrf.mxu0
  %v242 = vadd.f32 %v53, %v241
  %243 = vmatmul.f32.gmra.mxu0 %v81
  %v244 = vpop.f32.mrf.mxu0
  %v245 = vadd.f32 %v53, %v244
  %246 = vdwg.mxu0
  %247 = vst [vmem:[#allocation2] sm:$0xff] %v101
  %248 = vst [vmem:[#allocation2 + $0x8] sm:$0xff] %v142
  %249 = vst [vmem:[#allocation2 + $0x10] sm:$0xff] %v183
  %250 = vst [vmem:[#allocation2 + $0x18] sm:$0xff] %v224
  %251 = vst [vmem:[#allocation2 + $0x20] sm:$0xff] %v104
  %252 = vst [vmem:[#allocation2 + $0x28] sm:$0xff] %v145
  %253 = vst [vmem:[#allocation2 + $0x30] sm:$0xff] %v186
  %254 = vst [vmem:[#allocation2 + $0x38] sm:$0xff] %v227
  %255 = vst [vmem:[#allocation2 + $0x40] sm:$0xff] %v107
  %256 = vst [vmem:[#allocation2 + $0x48] sm:$0xff] %v148
  %257 = vst [vmem:[#allocation2 + $0x50] sm:$0xff] %v189
  %258 = vst [vmem:[#allocation2 + $0x58] sm:$0xff] %v230
  %259 = vst [vmem:[#allocation2 + $0x60] sm:$0xff] %v110
  %260 = vst [vmem:[#allocation2 + $0x68] sm:$0xff] %v151
  %261 = vst [vmem:[#allocation2 + $0x70] sm:$0xff] %v192
  %262 = vst [vmem:[#allocation2 + $0x78] sm:$0xff] %v233
  %263 = vst [vmem:[#allocation2 + $0x80] sm:$0xff] %v113
  %264 = vst [vmem:[#allocation2 + $0x88] sm:$0xff] %v154
  %265 = vst [vmem:[#allocation2 + $0x90] sm:$0xff] %v195
  %266 = vst [vmem:[#allocation2 + $0x98] sm:$0xff] %v236
  %267 = vst [vmem:[#allocation2 + $0xa0] sm:$0xff] %v116
  %268 = vst [vmem:[#allocation2 + $0xa8] sm:$0xff] %v157
  %269 = vst [vmem:[#allocation2 + $0xb0] sm:$0xff] %v198
  %270 = vst [vmem:[#allocation2 + $0xb8] sm:$0xff] %v239
  %271 = vst [vmem:[#allocation2 + $0xc0] sm:$0xff] %v119
  %272 = vst [vmem:[#allocation2 + $0xc8] sm:$0xff] %v160
  %273 = vst [vmem:[#allocation2 + $0xd0] sm:$0xff] %v201
  %274 = vst [vmem:[#allocation2 + $0xd8] sm:$0xff] %v242
  %275 = vst [vmem:[#allocation2 + $0xe0] sm:$0xff] %v122
  %276 = vst [vmem:[#allocation2 + $0xe8] sm:$0xff] %v163
  %277 = vst [vmem:[#allocation2 + $0xf0] sm:$0xff] %v204
  %278 = vst [vmem:[#allocation2 + $0xf8] sm:$0xff] %v245
  %v279 = vld [vmem:[%s2] sm:$0xff]
  %v280 = vld [vmem:[%s2 + $0x8] sm:$0xff]
  %v281 = vld [vmem:[%s2 + $0x10] sm:$0xff]
  %v282 = vld [vmem:[%s2 + $0x18] sm:$0xff]
  %v283 = vld [vmem:[%s2 + $0x20] sm:$0xff]
  %v284 = vld [vmem:[%s2 + $0x28] sm:$0xff]
  %v285 = vld [vmem:[%s2 + $0x30] sm:$0xff]
  %v286 = vld [vmem:[%s2 + $0x38] sm:$0xff]
  %v287 = vld [vmem:[%s2 + $0x40] sm:$0xff]
  %v288 = vld [vmem:[%s2 + $0x48] sm:$0xff]
  %v289 = vld [vmem:[%s2 + $0x50] sm:$0xff]
  %v290 = vld [vmem:[%s2 + $0x58] sm:$0xff]
  %v291 = vld [vmem:[%s2 + $0x60] sm:$0xff]
  %v292 = vld [vmem:[%s2 + $0x68] sm:$0xff]
  %v293 = vld [vmem:[%s2 + $0x70] sm:$0xff]
  %v294 = vld [vmem:[%s2 + $0x78] sm:$0xff]
  %v295 = vld [vmem:[%s2 + $0x80] sm:$0xff]
  %v296 = vld [vmem:[%s2 + $0x88] sm:$0xff]
  %v297 = vld [vmem:[%s2 + $0x90] sm:$0xff]
  %v298 = vld [vmem:[%s2 + $0x98] sm:$0xff]
  %v299 = vld [vmem:[%s2 + $0xa0] sm:$0xff]
  %v300 = vld [vmem:[%s2 + $0xa8] sm:$0xff]
  %v301 = vld [vmem:[%s2 + $0xb0] sm:$0xff]
  %v302 = vld [vmem:[%s2 + $0xb8] sm:$0xff]
  %v303 = vld [vmem:[%s2 + $0xc0] sm:$0xff]
  %v304 = vld [vmem:[%s2 + $0xc8] sm:$0xff]
  %v305 = vld [vmem:[%s2 + $0xd0] sm:$0xff]
  %v306 = vld [vmem:[%s2 + $0xd8] sm:$0xff]
  %v307 = vld [vmem:[%s2 + $0xe0] sm:$0xff]
  %v308 = vld [vmem:[%s2 + $0xe8] sm:$0xff]
  %v309 = vld [vmem:[%s2 + $0xf0] sm:$0xff]
  %v310 = vld [vmem:[%s2 + $0xf8] sm:$0xff]
  %v311 = vld [vmem:[%s2 + $0x100] sm:$0xff]
  %v312 = vld [vmem:[%s2 + $0x108] sm:$0xff]
  %v313 = vld [vmem:[%s2 + $0x110] sm:$0xff]
  %v314 = vld [vmem:[%s2 + $0x118] sm:$0xff]
  %v315 = vld [vmem:[%s2 + $0x120] sm:$0xff]
  %v316 = vld [vmem:[%s2 + $0x128] sm:$0xff]
  %v317 = vld [vmem:[%s2 + $0x130] sm:$0xff]
  %v318 = vld [vmem:[%s2 + $0x138] sm:$0xff]
  %v319 = vld [vmem:[%s2 + $0x140] sm:$0xff]
  %v320 = vld [vmem:[%s2 + $0x148] sm:$0xff]
  %v321 = vld [vmem:[%s2 + $0x150] sm:$0xff]
  %v322 = vld [vmem:[%s2 + $0x158] sm:$0xff]
  %v323 = vld [vmem:[%s2 + $0x160] sm:$0xff]
  %v324 = vld [vmem:[%s2 + $0x168] sm:$0xff]
  %v325 = vld [vmem:[%s2 + $0x170] sm:$0xff]
  %v326 = vld [vmem:[%s2 + $0x178] sm:$0xff]
  %v327 = vld [vmem:[%s2 + $0x180] sm:$0xff]
  %v328 = vld [vmem:[%s2 + $0x188] sm:$0xff]
  %v329 = vld [vmem:[%s2 + $0x190] sm:$0xff]
  %v330 = vld [vmem:[%s2 + $0x198] sm:$0xff]
  %v331 = vld [vmem:[%s2 + $0x1a0] sm:$0xff]
  %v332 = vld [vmem:[%s2 + $0x1a8] sm:$0xff]
  %v333 = vld [vmem:[%s2 + $0x1b0] sm:$0xff]
  %v334 = vld [vmem:[%s2 + $0x1b8] sm:$0xff]
  %v335 = vld [vmem:[%s2 + $0x1c0] sm:$0xff]
  %v336 = vld [vmem:[%s2 + $0x1c8] sm:$0xff]
  %v337 = vld [vmem:[%s2 + $0x1d0] sm:$0xff]
  %v338 = vld [vmem:[%s2 + $0x1d8] sm:$0xff]
  %v339 = vld [vmem:[%s2 + $0x1e0] sm:$0xff]
  %v340 = vld [vmem:[%s2 + $0x1e8] sm:$0xff]
  %v341 = vld [vmem:[%s2 + $0x1f0] sm:$0xff]
  %v342 = vld [vmem:[%s2 + $0x1f8] sm:$0xff]
  %v343 = vld [vmem:[#allocation2] sm:$0xff]
  %v344 = vld [vmem:[#allocation2 + $0x8] sm:$0xff]
  %v345 = vld [vmem:[#allocation2 + $0x10] sm:$0xff]
  %v346 = vld [vmem:[#allocation2 + $0x18] sm:$0xff]
  %347 = vmatpush.msra.mxu0 %v339
  %348 = vmatpush.msra.mxu0 %v335
  %349 = vmatpush.msra.mxu0 %v331
  %350 = vmatpush.msra.mxu0 %v327
  %351 = vmatpush.msra.mxu0 %v323
  %352 = vmatpush.msra.mxu0 %v319
  %353 = vmatpush.msra.mxu0 %v315
  %354 = vmatpush.msra.mxu0 %v311
  %355 = vmatpush.msra.mxu0 %v307
  %356 = vmatpush.msra.mxu0 %v303
  %357 = vmatpush.msra.mxu0 %v299
  %358 = vmatpush.msra.mxu0 %v295
  %359 = vmatpush.msra.mxu0 %v291
  %360 = vmatpush.msra.mxu0 %v287
  %361 = vmatpush.msra.mxu0 %v283
  %362 = vmatpush.msra.mxu0 %v279
  %363 = vmatmul.f32.gmra.mxu0 0.0
  %v364 = vpop.f32.mrf.mxu0
  %v365 = vadd.f32 0.0, %v364
  %366 = vdwg.mxu0
  %367 = vmatpush.msra.mxu0 %v340
  %368 = vmatpush.msra.mxu0 %v336
  %369 = vmatpush.msra.mxu0 %v332
  %370 = vmatpush.msra.mxu0 %v328
  %371 = vmatpush.msra.mxu0 %v324
  %372 = vmatpush.msra.mxu0 %v320
  %373 = vmatpush.msra.mxu0 %v316
  %374 = vmatpush.msra.mxu0 %v312
  %375 = vmatpush.msra.mxu0 %v308
  %376 = vmatpush.msra.mxu0 %v304
  %377 = vmatpush.msra.mxu0 %v300
  %378 = vmatpush.msra.mxu0 %v296
  %379 = vmatpush.msra.mxu0 %v292
  %380 = vmatpush.msra.mxu0 %v288
  %381 = vmatpush.msra.mxu0 %v284
  %382 = vmatpush.msra.mxu0 %v280
  %383 = vmatmul.f32.gmra.mxu0 0.0
  %v384 = vpop.f32.mrf.mxu0
  %v385 = vadd.f32 0.0, %v384
  %386 = vdwg.mxu0
  %387 = vmatpush.msra.mxu0 %v341
  %388 = vmatpush.msra.mxu0 %v337
  %389 = vmatpush.msra.mxu0 %v333
  %390 = vmatpush.msra.mxu0 %v329
  %391 = vmatpush.msra.mxu0 %v325
  %392 = vmatpush.msra.mxu0 %v321
  %393 = vmatpush.msra.mxu0 %v317
  %394 = vmatpush.msra.mxu0 %v313
  %395 = vmatpush.msra.mxu0 %v309
  %396 = vmatpush.msra.mxu0 %v305
  %397 = vmatpush.msra.mxu0 %v301
  %398 = vmatpush.msra.mxu0 %v297
  %399 = vmatpush.msra.mxu0 %v293
  %400 = vmatpush.msra.mxu0 %v289
  %401 = vmatpush.msra.mxu0 %v285
  %402 = vmatpush.msra.mxu0 %v281
  %403 = vmatmul.f32.gmra.mxu0 0.0
  %v404 = vpop.f32.mrf.mxu0
  %v405 = vadd.f32 0.0, %v404
  %406 = vdwg.mxu0
  %407 = vmatpush.msra.mxu0 %v342
  %408 = vmatpush.msra.mxu0 %v338
  %409 = vmatpush.msra.mxu0 %v334
  %410 = vmatpush.msra.mxu0 %v330
  %411 = vmatpush.msra.mxu0 %v326
  %412 = vmatpush.msra.mxu0 %v322
  %413 = vmatpush.msra.mxu0 %v318
  %414 = vmatpush.msra.mxu0 %v314
  %415 = vmatpush.msra.mxu0 %v310
  %416 = vmatpush.msra.mxu0 %v306
  %417 = vmatpush.msra.mxu0 %v302
  %418 = vmatpush.msra.mxu0 %v298
  %419 = vmatpush.msra.mxu0 %v294
  %420 = vmatpush.msra.mxu0 %v290
  %421 = vmatpush.msra.mxu0 %v286
  %422 = vmatpush.msra.mxu0 %v282
  %423 = vmatmul.f32.gmra.mxu0 0.0
  %v424 = vpop.f32.mrf.mxu0
  %v425 = vadd.f32 0.0, %v424
  %426 = vdwg.mxu0
  %v427 = vadd.f32 %v343, %v365
  %v428 = vadd.f32 %v344, %v385
  %v429 = vadd.f32 %v345, %v405
  %v430 = vadd.f32 %v346, %v425
  %v431 = vxor.u32 %v427, 2147483648
  %v432 = vmul.f32 %v431, 1.442695
  %v433 = vpow.pop %v432
  %v434 = vadd.f32 %v433, 1.0
  %v435 = vrcp.pop %v434
  %v436 = vmul.f32 %v434, %v435
  %v437 = vsub.f32 1.0, %v436
  %v438 = vmul.f32 %v435, %v437
  %v439 = vadd.f32 %v435, %v438
  %vm440 = vweird.f32 %v434
  %vm441 = vweird.f32 %v435
  %vm442 = vmor %vm440, %vm441
  %v443 = vsel %vm442, %v435, %v439
  %v444 = vand.u32 2147483647, %v434
  %vm445 = vcmp.eq.f32.partialorder %v444, 8.507059e+37
  %v446 = vand.u32 %v434, 2147483648
  %v447 = vor.u32 1.1754944e-38, %v446
  %v448 = vsel %vm445, %v447, %v443
  %v449 = vmul.f32 1.0, %v448
  %v450 = vxor.u32 %v428, 2147483648
  %v451 = vmul.f32 %v450, 1.442695
  %v452 = vpow.pop %v451
  %v453 = vadd.f32 %v452, 1.0
  %v454 = vrcp.pop %v453
  %v455 = vmul.f32 %v453, %v454
  %v456 = vsub.f32 1.0, %v455
  %v457 = vmul.f32 %v454, %v456
  %v458 = vadd.f32 %v454, %v457
  %vm459 = vweird.f32 %v453
  %vm460 = vweird.f32 %v454
  %vm461 = vmor %vm459, %vm460
  %v462 = vsel %vm461, %v454, %v458
  %v463 = vand.u32 2147483647, %v453
  %vm464 = vcmp.eq.f32.partialorder %v463, 8.507059e+37
  %v465 = vand.u32 %v453, 2147483648
  %v466 = vor.u32 1.1754944e-38, %v465
  %v467 = vsel %vm464, %v466, %v462
  %v468 = vmul.f32 1.0, %v467
  %v469 = vtanh.pop %v429
  %v470 = vxor.u32 %v430, 2147483648
  %v471 = vmul.f32 %v470, 1.442695
  %v472 = vpow.pop %v471
  %v473 = vadd.f32 %v472, 1.0
  %v474 = vrcp.pop %v473
  %v475 = vmul.f32 %v473, %v474
  %v476 = vsub.f32 1.0, %v475
  %v477 = vmul.f32 %v474, %v476
  %v478 = vadd.f32 %v474, %v477
  %vm479 = vweird.f32 %v473
  %vm480 = vweird.f32 %v474
  %vm481 = vmor %vm479, %vm480
  %v482 = vsel %vm481, %v474, %v478
  %v483 = vand.u32 2147483647, %v473
  %vm484 = vcmp.eq.f32.partialorder %v483, 8.507059e+37
  %v485 = vand.u32 %v473, 2147483648
  %v486 = vor.u32 1.1754944e-38, %v485
  %v487 = vsel %vm484, %v486, %v482
  %v488 = vmul.f32 1.0, %v487
  %v489 = vmul.f32 %v468, 0.0
  %v490 = vmul.f32 %v449, %v469
  %v491 = vadd.f32 %v489, %v490
  %v492 = vtanh.pop %v491
  %v493 = vmul.f32 %v488, %v492
  %494 = vst [vmem:[#allocation4] sm:$0xff] %v493
  %s495 = scalar_lea.vmem [#allocation2], 32
  %v496 = vld [vmem:[%s495] sm:$0xff]
  %v497 = vld [vmem:[%s495 + $0x8] sm:$0xff]
  %v498 = vld [vmem:[%s495 + $0x10] sm:$0xff]
  %v499 = vld [vmem:[%s495 + $0x18] sm:$0xff]
  %500 = vmatpush.msra.mxu0 %v339
  %501 = vmatpush.msra.mxu0 %v335
  %502 = vmatpush.msra.mxu0 %v331
  %503 = vmatpush.msra.mxu0 %v327
  %504 = vmatpush.msra.mxu0 %v323
  %505 = vmatpush.msra.mxu0 %v319
  %506 = vmatpush.msra.mxu0 %v315
  %507 = vmatpush.msra.mxu0 %v311
  %508 = vmatpush.msra.mxu0 %v307
  %509 = vmatpush.msra.mxu0 %v303
  %510 = vmatpush.msra.mxu0 %v299
  %511 = vmatpush.msra.mxu0 %v295
  %512 = vmatpush.msra.mxu0 %v291
  %513 = vmatpush.msra.mxu0 %v287
  %514 = vmatpush.msra.mxu0 %v283
  %515 = vmatpush.msra.mxu0 %v279
  %516 = vmatmul.f32.gmra.mxu0 %v493
  %v517 = vpop.f32.mrf.mxu0
  %v518 = vadd.f32 0.0, %v517
  %519 = vdwg.mxu0
  %520 = vmatpush.msra.mxu0 %v340
  %521 = vmatpush.msra.mxu0 %v336
  %522 = vmatpush.msra.mxu0 %v332
  %523 = vmatpush.msra.mxu0 %v328
  %524 = vmatpush.msra.mxu0 %v324
  %525 = vmatpush.msra.mxu0 %v320
  %526 = vmatpush.msra.mxu0 %v316
  %527 = vmatpush.msra.mxu0 %v312
  %528 = vmatpush.msra.mxu0 %v308
  %529 = vmatpush.msra.mxu0 %v304
  %530 = vmatpush.msra.mxu0 %v300
  %531 = vmatpush.msra.mxu0 %v296
  %532 = vmatpush.msra.mxu0 %v292
  %533 = vmatpush.msra.mxu0 %v288
  %534 = vmatpush.msra.mxu0 %v284
  %535 = vmatpush.msra.mxu0 %v280
  %536 = vmatmul.f32.gmra.mxu0 %v493
  %v537 = vpop.f32.mrf.mxu0
  %v538 = vadd.f32 0.0, %v537
  %539 = vdwg.mxu0
  %540 = vmatpush.msra.mxu0 %v341
  %541 = vmatpush.msra.mxu0 %v337
  %542 = vmatpush.msra.mxu0 %v333
  %543 = vmatpush.msra.mxu0 %v329
  %544 = vmatpush.msra.mxu0 %v325
  %545 = vmatpush.msra.mxu0 %v321
  %546 = vmatpush.msra.mxu0 %v317
  %547 = vmatpush.msra.mxu0 %v313
  %548 = vmatpush.msra.mxu0 %v309
  %549 = vmatpush.msra.mxu0 %v305
  %550 = vmatpush.msra.mxu0 %v301
  %551 = vmatpush.msra.mxu0 %v297
  %552 = vmatpush.msra.mxu0 %v293
  %553 = vmatpush.msra.mxu0 %v289
  %554 = vmatpush.msra.mxu0 %v285
  %555 = vmatpush.msra.mxu0 %v281
  %556 = vmatmul.f32.gmra.mxu0 %v493
  %v557 = vpop.f32.mrf.mxu0
  %v558 = vadd.f32 0.0, %v557
  %559 = vdwg.mxu0
  %560 = vmatpush.msra.mxu0 %v342
  %561 = vmatpush.msra.mxu0 %v338
  %562 = vmatpush.msra.mxu0 %v334
  %563 = vmatpush.msra.mxu0 %v330
  %564 = vmatpush.msra.mxu0 %v326
  %565 = vmatpush.msra.mxu0 %v322
  %566 = vmatpush.msra.mxu0 %v318
  %567 = vmatpush.msra.mxu0 %v314
  %568 = vmatpush.msra.mxu0 %v310
  %569 = vmatpush.msra.mxu0 %v306
  %570 = vmatpush.msra.mxu0 %v302
  %571 = vmatpush.msra.mxu0 %v298
  %572 = vmatpush.msra.mxu0 %v294
  %573 = vmatpush.msra.mxu0 %v290
  %574 = vmatpush.msra.mxu0 %v286
  %575 = vmatpush.msra.mxu0 %v282
  %576 = vmatmul.f32.gmra.mxu0 %v493
  %v577 = vpop.f32.mrf.mxu0
  %v578 = vadd.f32 0.0, %v577
  %579 = vdwg.mxu0
  %v580 = vadd.f32 %v496, %v518
  %v581 = vadd.f32 %v497, %v538
  %v582 = vadd.f32 %v498, %v558
  %v583 = vadd.f32 %v499, %v578
  %v584 = vxor.u32 %v580, 2147483648
  %v585 = vmul.f32 %v584, 1.442695
  %v586 = vpow.pop %v585
  %v587 = vadd.f32 %v586, 1.0
  %v588 = vrcp.pop %v587
  %v589 = vmul.f32 %v587, %v588
  %v590 = vsub.f32 1.0, %v589
  %v591 = vmul.f32 %v588, %v590
  %v592 = vadd.f32 %v588, %v591
  %vm593 = vweird.f32 %v587
  %vm594 = vweird.f32 %v588
  %vm595 = vmor %vm593, %vm594
  %v596 = vsel %vm595, %v588, %v592
  %v597 = vand.u32 2147483647, %v587
  %vm598 = vcmp.eq.f32.partialorder %v597, 8.507059e+37
  %v599 = vand.u32 %v587, 2147483648
  %v600 = vor.u32 1.1754944e-38, %v599
  %v601 = vsel %vm598, %v600, %v596
  %v602 = vmul.f32 1.0, %v601
  %v603 = vxor.u32 %v581, 2147483648
  %v604 = vmul.f32 %v603, 1.442695
  %v605 = vpow.pop %v604
  %v606 = vadd.f32 %v605, 1.0
  %v607 = vrcp.pop %v606
  %v608 = vmul.f32 %v606, %v607
  %v609 = vsub.f32 1.0, %v608
  %v610 = vmul.f32 %v607, %v609
  %v611 = vadd.f32 %v607, %v610
  %vm612 = vweird.f32 %v606
  %vm613 = vweird.f32 %v607
  %vm614 = vmor %vm612, %vm613
  %v615 = vsel %vm614, %v607, %v611
  %v616 = vand.u32 2147483647, %v606
  %vm617 = vcmp.eq.f32.partialorder %v616, 8.507059e+37
  %v618 = vand.u32 %v606, 2147483648
  %v619 = vor.u32 1.1754944e-38, %v618
  %v620 = vsel %vm617, %v619, %v615
  %v621 = vmul.f32 1.0, %v620
  %v622 = vtanh.pop %v582
  %v623 = vxor.u32 %v583, 2147483648
  %v624 = vmul.f32 %v623, 1.442695
  %v625 = vpow.pop %v624
  %v626 = vadd.f32 %v625, 1.0
  %v627 = vrcp.pop %v626
  %v628 = vmul.f32 %v626, %v627
  %v629 = vsub.f32 1.0, %v628
  %v630 = vmul.f32 %v627, %v629
  %v631 = vadd.f32 %v627, %v630
  %vm632 = vweird.f32 %v626
  %vm633 = vweird.f32 %v627
  %vm634 = vmor %vm632, %vm633
  %v635 = vsel %vm634, %v627, %v631
  %v636 = vand.u32 2147483647, %v626
  %vm637 = vcmp.eq.f32.partialorder %v636, 8.507059e+37
  %v638 = vand.u32 %v626, 2147483648
  %v639 = vor.u32 1.1754944e-38, %v638
  %v640 = vsel %vm637, %v639, %v635
  %v641 = vmul.f32 1.0, %v640
  %v642 = vmul.f32 %v621, %v491
  %v643 = vmul.f32 %v602, %v622
  %v644 = vadd.f32 %v642, %v643
  %v645 = vtanh.pop %v644
  %v646 = vmul.f32 %v641, %v645
  %s647 = scalar_lea.vmem [#allocation4], 8
  %648 = vst [vmem:[%s647] sm:$0xff] %v646
  %s649 = scalar_lea.vmem [#allocation2], 64
  %v650 = vld [vmem:[%s649] sm:$0xff]
  %v651 = vld [vmem:[%s649 + $0x8] sm:$0xff]
  %v652 = vld [vmem:[%s649 + $0x10] sm:$0xff]
  %v653 = vld [vmem:[%s649 + $0x18] sm:$0xff]
  %654 = vmatpush.msra.mxu0 %v339
  %655 = vmatpush.msra.mxu0 %v335
  %656 = vmatpush.msra.mxu0 %v331
  %657 = vmatpush.msra.mxu0 %v327
  %658 = vmatpush.msra.mxu0 %v323
  %659 = vmatpush.msra.mxu0 %v319
  %660 = vmatpush.msra.mxu0 %v315
  %661 = vmatpush.msra.mxu0 %v311
  %662 = vmatpush.msra.mxu0 %v307
  %663 = vmatpush.msra.mxu0 %v303
  %664 = vmatpush.msra.mxu0 %v299
  %665 = vmatpush.msra.mxu0 %v295
  %666 = vmatpush.msra.mxu0 %v291
  %667 = vmatpush.msra.mxu0 %v287
  %668 = vmatpush.msra.mxu0 %v283
  %669 = vmatpush.msra.mxu0 %v279
  %670 = vmatmul.f32.gmra.mxu0 %v646
  %v671 = vpop.f32.mrf.mxu0
  %v672 = vadd.f32 0.0, %v671
  %673 = vdwg.mxu0
  %674 = vmatpush.msra.mxu0 %v340
  %675 = vmatpush.msra.mxu0 %v336
  %676 = vmatpush.msra.mxu0 %v332
  %677 = vmatpush.msra.mxu0 %v328
  %678 = vmatpush.msra.mxu0 %v324
  %679 = vmatpush.msra.mxu0 %v320
  %680 = vmatpush.msra.mxu0 %v316
  %681 = vmatpush.msra.mxu0 %v312
  %682 = vmatpush.msra.mxu0 %v308
  %683 = vmatpush.msra.mxu0 %v304
  %684 = vmatpush.msra.mxu0 %v300
  %685 = vmatpush.msra.mxu0 %v296
  %686 = vmatpush.msra.mxu0 %v292
  %687 = vmatpush.msra.mxu0 %v288
  %688 = vmatpush.msra.mxu0 %v284
  %689 = vmatpush.msra.mxu0 %v280
  %690 = vmatmul.f32.gmra.mxu0 %v646
  %v691 = vpop.f32.mrf.mxu0
  %v692 = vadd.f32 0.0, %v691
  %693 = vdwg.mxu0
  %694 = vmatpush.msra.mxu0 %v341
  %695 = vmatpush.msra.mxu0 %v337
  %696 = vmatpush.msra.mxu0 %v333
  %697 = vmatpush.msra.mxu0 %v329
  %698 = vmatpush.msra.mxu0 %v325
  %699 = vmatpush.msra.mxu0 %v321
  %700 = vmatpush.msra.mxu0 %v317
  %701 = vmatpush.msra.mxu0 %v313
  %702 = vmatpush.msra.mxu0 %v309
  %703 = vmatpush.msra.mxu0 %v305
  %704 = vmatpush.msra.mxu0 %v301
  %705 = vmatpush.msra.mxu0 %v297
  %706 = vmatpush.msra.mxu0 %v293
  %707 = vmatpush.msra.mxu0 %v289
  %708 = vmatpush.msra.mxu0 %v285
  %709 = vmatpush.msra.mxu0 %v281
  %710 = vmatmul.f32.gmra.mxu0 %v646
  %v711 = vpop.f32.mrf.mxu0
  %v712 = vadd.f32 0.0, %v711
  %713 = vdwg.mxu0
  %714 = vmatpush.msra.mxu0 %v342
  %715 = vmatpush.msra.mxu0 %v338
  %716 = vmatpush.msra.mxu0 %v334
  %717 = vmatpush.msra.mxu0 %v330
  %718 = vmatpush.msra.mxu0 %v326
  %719 = vmatpush.msra.mxu0 %v322
  %720 = vmatpush.msra.mxu0 %v318
  %721 = vmatpush.msra.mxu0 %v314
  %722 = vmatpush.msra.mxu0 %v310
  %723 = vmatpush.msra.mxu0 %v306
  %724 = vmatpush.msra.mxu0 %v302
  %725 = vmatpush.msra.mxu0 %v298
  %726 = vmatpush.msra.mxu0 %v294
  %727 = vmatpush.msra.mxu0 %v290
  %728 = vmatpush.msra.mxu0 %v286
  %729 = vmatpush.msra.mxu0 %v282
  %730 = vmatmul.f32.gmra.mxu0 %v646
  %v731 = vpop.f32.mrf.mxu0
  %v732 = vadd.f32 0.0, %v731
  %733 = vdwg.mxu0
  %v734 = vadd.f32 %v650, %v672
  %v735 = vadd.f32 %v651, %v692
  %v736 = vadd.f32 %v652, %v712
  %v737 = vadd.f32 %v653, %v732
  %v738 = vxor.u32 %v734, 2147483648
  %v739 = vmul.f32 %v738, 1.442695
  %v740 = vpow.pop %v739
  %v741 = vadd.f32 %v740, 1.0
  %v742 = vrcp.pop %v741
  %v743 = vmul.f32 %v741, %v742
  %v744 = vsub.f32 1.0, %v743
  %v745 = vmul.f32 %v742, %v744
  %v746 = vadd.f32 %v742, %v745
  %vm747 = vweird.f32 %v741
  %vm748 = vweird.f32 %v742
  %vm749 = vmor %vm747, %vm748
  %v750 = vsel %vm749, %v742, %v746
  %v751 = vand.u32 2147483647, %v741
  %vm752 = vcmp.eq.f32.partialorder %v751, 8.507059e+37
  %v753 = vand.u32 %v741, 2147483648
  %v754 = vor.u32 1.1754944e-38, %v753
  %v755 = vsel %vm752, %v754, %v750
  %v756 = vmul.f32 1.0, %v755
  %v757 = vxor.u32 %v735, 2147483648
  %v758 = vmul.f32 %v757, 1.442695
  %v759 = vpow.pop %v758
  %v760 = vadd.f32 %v759, 1.0
  %v761 = vrcp.pop %v760
  %v762 = vmul.f32 %v760, %v761
  %v763 = vsub.f32 1.0, %v762
  %v764 = vmul.f32 %v761, %v763
  %v765 = vadd.f32 %v761, %v764
  %vm766 = vweird.f32 %v760
  %vm767 = vweird.f32 %v761
  %vm768 = vmor %vm766, %vm767
  %v769 = vsel %vm768, %v761, %v765
  %v770 = vand.u32 2147483647, %v760
  %vm771 = vcmp.eq.f32.partialorder %v770, 8.507059e+37
  %v772 = vand.u32 %v760, 2147483648
  %v773 = vor.u32 1.1754944e-38, %v772
  %v774 = vsel %vm771, %v773, %v769
  %v775 = vmul.f32 1.0, %v774
  %v776 = vtanh.pop %v736
  %v777 = vxor.u32 %v737, 2147483648
  %v778 = vmul.f32 %v777, 1.442695
  %v779 = vpow.pop %v778
  %v780 = vadd.f32 %v779, 1.0
  %v781 = vrcp.pop %v780
  %v782 = vmul.f32 %v780, %v781
  %v783 = vsub.f32 1.0, %v782
  %v784 = vmul.f32 %v781, %v783
  %v785 = vadd.f32 %v781, %v784
  %vm786 = vweird.f32 %v780
  %vm787 = vweird.f32 %v781
  %vm788 = vmor %vm786, %vm787
  %v789 = vsel %vm788, %v781, %v785
  %v790 = vand.u32 2147483647, %v780
  %vm791 = vcmp.eq.f32.partialorder %v790, 8.507059e+37
  %v792 = vand.u32 %v780, 2147483648
  %v793 = vor.u32 1.1754944e-38, %v792
  %v794 = vsel %vm791, %v793, %v789
  %v795 = vmul.f32 1.0, %v794
  %v796 = vmul.f32 %v775, %v644
  %v797 = vmul.f32 %v756, %v776
  %v798 = vadd.f32 %v796, %v797
  %v799 = vtanh.pop %v798
  %v800 = vmul.f32 %v795, %v799
  %s801 = scalar_lea.vmem [#allocation4], 16
  %802 = vst [vmem:[%s801] sm:$0xff] %v800
  %s803 = scalar_lea.vmem [#allocation2], 96
  %v804 = vld [vmem:[%s803] sm:$0xff]
  %v805 = vld [vmem:[%s803 + $0x8] sm:$0xff]
  %v806 = vld [vmem:[%s803 + $0x10] sm:$0xff]
  %v807 = vld [vmem:[%s803 + $0x18] sm:$0xff]
  %808 = vmatpush.msra.mxu0 %v339
  %809 = vmatpush.msra.mxu0 %v335
  %810 = vmatpush.msra.mxu0 %v331
  %811 = vmatpush.msra.mxu0 %v327
  %812 = vmatpush.msra.mxu0 %v323
  %813 = vmatpush.msra.mxu0 %v319
  %814 = vmatpush.msra.mxu0 %v315
  %815 = vmatpush.msra.mxu0 %v311
  %816 = vmatpush.msra.mxu0 %v307
  %817 = vmatpush.msra.mxu0 %v303
  %818 = vmatpush.msra.mxu0 %v299
  %819 = vmatpush.msra.mxu0 %v295
  %820 = vmatpush.msra.mxu0 %v291
  %821 = vmatpush.msra.mxu0 %v287
  %822 = vmatpush.msra.mxu0 %v283
  %823 = vmatpush.msra.mxu0 %v279
  %824 = vmatmul.f32.gmra.mxu0 %v800
  %v825 = vpop.f32.mrf.mxu0
  %v826 = vadd.f32 0.0, %v825
  %827 = vdwg.mxu0
  %828 = vmatpush.msra.mxu0 %v340
  %829 = vmatpush.msra.mxu0 %v336
  %830 = vmatpush.msra.mxu0 %v332
  %831 = vmatpush.msra.mxu0 %v328
  %832 = vmatpush.msra.mxu0 %v324
  %833 = vmatpush.msra.mxu0 %v320
  %834 = vmatpush.msra.mxu0 %v316
  %835 = vmatpush.msra.mxu0 %v312
  %836 = vmatpush.msra.mxu0 %v308
  %837 = vmatpush.msra.mxu0 %v304
  %838 = vmatpush.msra.mxu0 %v300
  %839 = vmatpush.msra.mxu0 %v296
  %840 = vmatpush.msra.mxu0 %v292
  %841 = vmatpush.msra.mxu0 %v288
  %842 = vmatpush.msra.mxu0 %v284
  %843 = vmatpush.msra.mxu0 %v280
  %844 = vmatmul.f32.gmra.mxu0 %v800
  %v845 = vpop.f32.mrf.mxu0
  %v846 = vadd.f32 0.0, %v845
  %847 = vdwg.mxu0
  %848 = vmatpush.msra.mxu0 %v341
  %849 = vmatpush.msra.mxu0 %v337
  %850 = vmatpush.msra.mxu0 %v333
  %851 = vmatpush.msra.mxu0 %v329
  %852 = vmatpush.msra.mxu0 %v325
  %853 = vmatpush.msra.mxu0 %v321
  %854 = vmatpush.msra.mxu0 %v317
  %855 = vmatpush.msra.mxu0 %v313
  %856 = vmatpush.msra.mxu0 %v309
  %857 = vmatpush.msra.mxu0 %v305
  %858 = vmatpush.msra.mxu0 %v301
  %859 = vmatpush.msra.mxu0 %v297
  %860 = vmatpush.msra.mxu0 %v293
  %861 = vmatpush.msra.mxu0 %v289
  %862 = vmatpush.msra.mxu0 %v285
  %863 = vmatpush.msra.mxu0 %v281
  %864 = vmatmul.f32.gmra.mxu0 %v800
  %v865 = vpop.f32.mrf.mxu0
  %v866 = vadd.f32 0.0, %v865
  %867 = vdwg.mxu0
  %868 = vmatpush.msra.mxu0 %v342
  %869 = vmatpush.msra.mxu0 %v338
  %870 = vmatpush.msra.mxu0 %v334
  %871 = vmatpush.msra.mxu0 %v330
  %872 = vmatpush.msra.mxu0 %v326
  %873 = vmatpush.msra.mxu0 %v322
  %874 = vmatpush.msra.mxu0 %v318
  %875 = vmatpush.msra.mxu0 %v314
  %876 = vmatpush.msra.mxu0 %v310
  %877 = vmatpush.msra.mxu0 %v306
  %878 = vmatpush.msra.mxu0 %v302
  %879 = vmatpush.msra.mxu0 %v298
  %880 = vmatpush.msra.mxu0 %v294
  %881 = vmatpush.msra.mxu0 %v290
  %882 = vmatpush.msra.mxu0 %v286
  %883 = vmatpush.msra.mxu0 %v282
  %884 = vmatmul.f32.gmra.mxu0 %v800
  %v885 = vpop.f32.mrf.mxu0
  %v886 = vadd.f32 0.0, %v885
  %887 = vdwg.mxu0
  %v888 = vadd.f32 %v804, %v826
  %v889 = vadd.f32 %v805, %v846
  %v890 = vadd.f32 %v806, %v866
  %v891 = vadd.f32 %v807, %v886
  %v892 = vxor.u32 %v888, 2147483648
  %v893 = vmul.f32 %v892, 1.442695
  %v894 = vpow.pop %v893
  %v895 = vadd.f32 %v894, 1.0
  %v896 = vrcp.pop %v895
  %v897 = vmul.f32 %v895, %v896
  %v898 = vsub.f32 1.0, %v897
  %v899 = vmul.f32 %v896, %v898
  %v900 = vadd.f32 %v896, %v899
  %vm901 = vweird.f32 %v895
  %vm902 = vweird.f32 %v896
  %vm903 = vmor %vm901, %vm902
  %v904 = vsel %vm903, %v896, %v900
  %v905 = vand.u32 2147483647, %v895
  %vm906 = vcmp.eq.f32.partialorder %v905, 8.507059e+37
  %v907 = vand.u32 %v895, 2147483648
  %v908 = vor.u32 1.1754944e-38, %v907
  %v909 = vsel %vm906, %v908, %v904
  %v910 = vmul.f32 1.0, %v909
  %v911 = vxor.u32 %v889, 2147483648
  %v912 = vmul.f32 %v911, 1.442695
  %v913 = vpow.pop %v912
  %v914 = vadd.f32 %v913, 1.0
  %v915 = vrcp.pop %v914
  %v916 = vmul.f32 %v914, %v915
  %v917 = vsub.f32 1.0, %v916
  %v918 = vmul.f32 %v915, %v917
  %v919 = vadd.f32 %v915, %v918
  %vm920 = vweird.f32 %v914
  %vm921 = vweird.f32 %v915
  %vm922 = vmor %vm920, %vm921
  %v923 = vsel %vm922, %v915, %v919
  %v924 = vand.u32 2147483647, %v914
  %vm925 = vcmp.eq.f32.partialorder %v924, 8.507059e+37
  %v926 = vand.u32 %v914, 2147483648
  %v927 = vor.u32 1.1754944e-38, %v926
  %v928 = vsel %vm925, %v927, %v923
  %v929 = vmul.f32 1.0, %v928
  %v930 = vtanh.pop %v890
  %v931 = vxor.u32 %v891, 2147483648
  %v932 = vmul.f32 %v931, 1.442695
  %v933 = vpow.pop %v932
  %v934 = vadd.f32 %v933, 1.0
  %v935 = vrcp.pop %v934
  %v936 = vmul.f32 %v934, %v935
  %v937 = vsub.f32 1.0, %v936
  %v938 = vmul.f32 %v935, %v937
  %v939 = vadd.f32 %v935, %v938
  %vm940 = vweird.f32 %v934
  %vm941 = vweird.f32 %v935
  %vm942 = vmor %vm940, %vm941
  %v943 = vsel %vm942, %v935, %v939
  %v944 = vand.u32 2147483647, %v934
  %vm945 = vcmp.eq.f32.partialorder %v944, 8.507059e+37
  %v946 = vand.u32 %v934, 2147483648
  %v947 = vor.u32 1.1754944e-38, %v946
  %v948 = vsel %vm945, %v947, %v943
  %v949 = vmul.f32 1.0, %v948
  %v950 = vmul.f32 %v929, %v798
  %v951 = vmul.f32 %v910, %v930
  %v952 = vadd.f32 %v950, %v951
  %v953 = vtanh.pop %v952
  %v954 = vmul.f32 %v949, %v953
  %s955 = scalar_lea.vmem [#allocation4], 24
  %956 = vst [vmem:[%s955] sm:$0xff] %v954
  %s957 = scalar_lea.vmem [#allocation2], 128
  %v958 = vld [vmem:[%s957] sm:$0xff]
  %v959 = vld [vmem:[%s957 + $0x8] sm:$0xff]
  %v960 = vld [vmem:[%s957 + $0x10] sm:$0xff]
  %v961 = vld [vmem:[%s957 + $0x18] sm:$0xff]
  %962 = vmatpush.msra.mxu0 %v339
  %963 = vmatpush.msra.mxu0 %v335
  %964 = vmatpush.msra.mxu0 %v331
  %965 = vmatpush.msra.mxu0 %v327
  %966 = vmatpush.msra.mxu0 %v323
  %967 = vmatpush.msra.mxu0 %v319
  %968 = vmatpush.msra.mxu0 %v315
  %969 = vmatpush.msra.mxu0 %v311
  %970 = vmatpush.msra.mxu0 %v307
  %971 = vmatpush.msra.mxu0 %v303
  %972 = vmatpush.msra.mxu0 %v299
  %973 = vmatpush.msra.mxu0 %v295
  %974 = vmatpush.msra.mxu0 %v291
  %975 = vmatpush.msra.mxu0 %v287
  %976 = vmatpush.msra.mxu0 %v283
  %977 = vmatpush.msra.mxu0 %v279
  %978 = vmatmul.f32.gmra.mxu0 %v954
  %v979 = vpop.f32.mrf.mxu0
  %v980 = vadd.f32 0.0, %v979
  %981 = vdwg.mxu0
  %982 = vmatpush.msra.mxu0 %v340
  %983 = vmatpush.msra.mxu0 %v336
  %984 = vmatpush.msra.mxu0 %v332
  %985 = vmatpush.msra.mxu0 %v328
  %986 = vmatpush.msra.mxu0 %v324
  %987 = vmatpush.msra.mxu0 %v320
  %988 = vmatpush.msra.mxu0 %v316
  %989 = vmatpush.msra.mxu0 %v312
  %990 = vmatpush.msra.mxu0 %v308
  %991 = vmatpush.msra.mxu0 %v304
  %992 = vmatpush.msra.mxu0 %v300
  %993 = vmatpush.msra.mxu0 %v296
  %994 = vmatpush.msra.mxu0 %v292
  %995 = vmatpush.msra.mxu0 %v288
  %996 = vmatpush.msra.mxu0 %v284
  %997 = vmatpush.msra.mxu0 %v280
  %998 = vmatmul.f32.gmra.mxu0 %v954
  %v999 = vpop.f32.mrf.mxu0
  %v1000 = vadd.f32 0.0, %v999
  %1001 = vdwg.mxu0
  %1002 = vmatpush.msra.mxu0 %v341
  %1003 = vmatpush.msra.mxu0 %v337
  %1004 = vmatpush.msra.mxu0 %v333
  %1005 = vmatpush.msra.mxu0 %v329
  %1006 = vmatpush.msra.mxu0 %v325
  %1007 = vmatpush.msra.mxu0 %v321
  %1008 = vmatpush.msra.mxu0 %v317
  %1009 = vmatpush.msra.mxu0 %v313
  %1010 = vmatpush.msra.mxu0 %v309
  %1011 = vmatpush.msra.mxu0 %v305
  %1012 = vmatpush.msra.mxu0 %v301
  %1013 = vmatpush.msra.mxu0 %v297
  %1014 = vmatpush.msra.mxu0 %v293
  %1015 = vmatpush.msra.mxu0 %v289
  %1016 = vmatpush.msra.mxu0 %v285
  %1017 = vmatpush.msra.mxu0 %v281
  %1018 = vmatmul.f32.gmra.mxu0 %v954
  %v1019 = vpop.f32.mrf.mxu0
  %v1020 = vadd.f32 0.0, %v1019
  %1021 = vdwg.mxu0
  %1022 = vmatpush.msra.mxu0 %v342
  %1023 = vmatpush.msra.mxu0 %v338
  %1024 = vmatpush.msra.mxu0 %v334
  %1025 = vmatpush.msra.mxu0 %v330
  %1026 = vmatpush.msra.mxu0 %v326
  %1027 = vmatpush.msra.mxu0 %v322
  %1028 = vmatpush.msra.mxu0 %v318
  %1029 = vmatpush.msra.mxu0 %v314
  %1030 = vmatpush.msra.mxu0 %v310
  %1031 = vmatpush.msra.mxu0 %v306
  %1032 = vmatpush.msra.mxu0 %v302
  %1033 = vmatpush.msra.mxu0 %v298
  %1034 = vmatpush.msra.mxu0 %v294
  %1035 = vmatpush.msra.mxu0 %v290
  %1036 = vmatpush.msra.mxu0 %v286
  %1037 = vmatpush.msra.mxu0 %v282
  %1038 = vmatmul.f32.gmra.mxu0 %v954
  %v1039 = vpop.f32.mrf.mxu0
  %v1040 = vadd.f32 0.0, %v1039
  %1041 = vdwg.mxu0
  %v1042 = vadd.f32 %v958, %v980
  %v1043 = vadd.f32 %v959, %v1000
  %v1044 = vadd.f32 %v960, %v1020
  %v1045 = vadd.f32 %v961, %v1040
  %v1046 = vxor.u32 %v1042, 2147483648
  %v1047 = vmul.f32 %v1046, 1.442695
  %v1048 = vpow.pop %v1047
  %v1049 = vadd.f32 %v1048, 1.0
  %v1050 = vrcp.pop %v1049
  %v1051 = vmul.f32 %v1049, %v1050
  %v1052 = vsub.f32 1.0, %v1051
  %v1053 = vmul.f32 %v1050, %v1052
  %v1054 = vadd.f32 %v1050, %v1053
  %vm1055 = vweird.f32 %v1049
  %vm1056 = vweird.f32 %v1050
  %vm1057 = vmor %vm1055, %vm1056
  %v1058 = vsel %vm1057, %v1050, %v1054
  %v1059 = vand.u32 2147483647, %v1049
  %vm1060 = vcmp.eq.f32.partialorder %v1059, 8.507059e+37
  %v1061 = vand.u32 %v1049, 2147483648
  %v1062 = vor.u32 1.1754944e-38, %v1061
  %v1063 = vsel %vm1060, %v1062, %v1058
  %v1064 = vmul.f32 1.0, %v1063
  %v1065 = vxor.u32 %v1043, 2147483648
  %v1066 = vmul.f32 %v1065, 1.442695
  %v1067 = vpow.pop %v1066
  %v1068 = vadd.f32 %v1067, 1.0
  %v1069 = vrcp.pop %v1068
  %v1070 = vmul.f32 %v1068, %v1069
  %v1071 = vsub.f32 1.0, %v1070
  %v1072 = vmul.f32 %v1069, %v1071
  %v1073 = vadd.f32 %v1069, %v1072
  %vm1074 = vweird.f32 %v1068
  %vm1075 = vweird.f32 %v1069
  %vm1076 = vmor %vm1074, %vm1075
  %v1077 = vsel %vm1076, %v1069, %v1073
  %v1078 = vand.u32 2147483647, %v1068
  %vm1079 = vcmp.eq.f32.partialorder %v1078, 8.507059e+37
  %v1080 = vand.u32 %v1068, 2147483648
  %v1081 = vor.u32 1.1754944e-38, %v1080
  %v1082 = vsel %vm1079, %v1081, %v1077
  %v1083 = vmul.f32 1.0, %v1082
  %v1084 = vtanh.pop %v1044
  %v1085 = vxor.u32 %v1045, 2147483648
  %v1086 = vmul.f32 %v1085, 1.442695
  %v1087 = vpow.pop %v1086
  %v1088 = vadd.f32 %v1087, 1.0
  %v1089 = vrcp.pop %v1088
  %v1090 = vmul.f32 %v1088, %v1089
  %v1091 = vsub.f32 1.0, %v1090
  %v1092 = vmul.f32 %v1089, %v1091
  %v1093 = vadd.f32 %v1089, %v1092
  %vm1094 = vweird.f32 %v1088
  %vm1095 = vweird.f32 %v1089
  %vm1096 = vmor %vm1094, %vm1095
  %v1097 = vsel %vm1096, %v1089, %v1093
  %v1098 = vand.u32 2147483647, %v1088
  %vm1099 = vcmp.eq.f32.partialorder %v1098, 8.507059e+37
  %v1100 = vand.u32 %v1088, 2147483648
  %v1101 = vor.u32 1.1754944e-38, %v1100
  %v1102 = vsel %vm1099, %v1101, %v1097
  %v1103 = vmul.f32 1.0, %v1102
  %v1104 = vmul.f32 %v1083, %v952
  %v1105 = vmul.f32 %v1064, %v1084
  %v1106 = vadd.f32 %v1104, %v1105
  %v1107 = vtanh.pop %v1106
  %v1108 = vmul.f32 %v1103, %v1107
  %s1109 = scalar_lea.vmem [#allocation4], 32
  %1110 = vst [vmem:[%s1109] sm:$0xff] %v1108
  %s1111 = scalar_lea.vmem [#allocation2], 160
  %v1112 = vld [vmem:[%s1111] sm:$0xff]
  %v1113 = vld [vmem:[%s1111 + $0x8] sm:$0xff]
  %v1114 = vld [vmem:[%s1111 + $0x10] sm:$0xff]
  %v1115 = vld [vmem:[%s1111 + $0x18] sm:$0xff]
  %1116 = vmatpush.msra.mxu0 %v339
  %1117 = vmatpush.msra.mxu0 %v335
  %1118 = vmatpush.msra.mxu0 %v331
  %1119 = vmatpush.msra.mxu0 %v327
  %1120 = vmatpush.msra.mxu0 %v323
  %1121 = vmatpush.msra.mxu0 %v319
  %1122 = vmatpush.msra.mxu0 %v315
  %1123 = vmatpush.msra.mxu0 %v311
  %1124 = vmatpush.msra.mxu0 %v307
  %1125 = vmatpush.msra.mxu0 %v303
  %1126 = vmatpush.msra.mxu0 %v299
  %1127 = vmatpush.msra.mxu0 %v295
  %1128 = vmatpush.msra.mxu0 %v291
  %1129 = vmatpush.msra.mxu0 %v287
  %1130 = vmatpush.msra.mxu0 %v283
  %1131 = vmatpush.msra.mxu0 %v279
  %1132 = vmatmul.f32.gmra.mxu0 %v1108
  %v1133 = vpop.f32.mrf.mxu0
  %v1134 = vadd.f32 0.0, %v1133
  %1135 = vdwg.mxu0
  %1136 = vmatpush.msra.mxu0 %v340
  %1137 = vmatpush.msra.mxu0 %v336
  %1138 = vmatpush.msra.mxu0 %v332
  %1139 = vmatpush.msra.mxu0 %v328
  %1140 = vmatpush.msra.mxu0 %v324
  %1141 = vmatpush.msra.mxu0 %v320
  %1142 = vmatpush.msra.mxu0 %v316
  %1143 = vmatpush.msra.mxu0 %v312
  %1144 = vmatpush.msra.mxu0 %v308
  %1145 = vmatpush.msra.mxu0 %v304
  %1146 = vmatpush.msra.mxu0 %v300
  %1147 = vmatpush.msra.mxu0 %v296
  %1148 = vmatpush.msra.mxu0 %v292
  %1149 = vmatpush.msra.mxu0 %v288
  %1150 = vmatpush.msra.mxu0 %v284
  %1151 = vmatpush.msra.mxu0 %v280
  %1152 = vmatmul.f32.gmra.mxu0 %v1108
  %v1153 = vpop.f32.mrf.mxu0
  %v1154 = vadd.f32 0.0, %v1153
  %1155 = vdwg.mxu0
  %1156 = vmatpush.msra.mxu0 %v341
  %1157 = vmatpush.msra.mxu0 %v337
  %1158 = vmatpush.msra.mxu0 %v333
  %1159 = vmatpush.msra.mxu0 %v329
  %1160 = vmatpush.msra.mxu0 %v325
  %1161 = vmatpush.msra.mxu0 %v321
  %1162 = vmatpush.msra.mxu0 %v317
  %1163 = vmatpush.msra.mxu0 %v313
  %1164 = vmatpush.msra.mxu0 %v309
  %1165 = vmatpush.msra.mxu0 %v305
  %1166 = vmatpush.msra.mxu0 %v301
  %1167 = vmatpush.msra.mxu0 %v297
  %1168 = vmatpush.msra.mxu0 %v293
  %1169 = vmatpush.msra.mxu0 %v289
  %1170 = vmatpush.msra.mxu0 %v285
  %1171 = vmatpush.msra.mxu0 %v281
  %1172 = vmatmul.f32.gmra.mxu0 %v1108
  %v1173 = vpop.f32.mrf.mxu0
  %v1174 = vadd.f32 0.0, %v1173
  %1175 = vdwg.mxu0
  %1176 = vmatpush.msra.mxu0 %v342
  %1177 = vmatpush.msra.mxu0 %v338
  %1178 = vmatpush.msra.mxu0 %v334
  %1179 = vmatpush.msra.mxu0 %v330
  %1180 = vmatpush.msra.mxu0 %v326
  %1181 = vmatpush.msra.mxu0 %v322
  %1182 = vmatpush.msra.mxu0 %v318
  %1183 = vmatpush.msra.mxu0 %v314
  %1184 = vmatpush.msra.mxu0 %v310
  %1185 = vmatpush.msra.mxu0 %v306
  %1186 = vmatpush.msra.mxu0 %v302
  %1187 = vmatpush.msra.mxu0 %v298
  %1188 = vmatpush.msra.mxu0 %v294
  %1189 = vmatpush.msra.mxu0 %v290
  %1190 = vmatpush.msra.mxu0 %v286
  %1191 = vmatpush.msra.mxu0 %v282
  %1192 = vmatmul.f32.gmra.mxu0 %v1108
  %v1193 = vpop.f32.mrf.mxu0
  %v1194 = vadd.f32 0.0, %v1193
  %1195 = vdwg.mxu0
  %v1196 = vadd.f32 %v1112, %v1134
  %v1197 = vadd.f32 %v1113, %v1154
  %v1198 = vadd.f32 %v1114, %v1174
  %v1199 = vadd.f32 %v1115, %v1194
  %v1200 = vxor.u32 %v1196, 2147483648
  %v1201 = vmul.f32 %v1200, 1.442695
  %v1202 = vpow.pop %v1201
  %v1203 = vadd.f32 %v1202, 1.0
  %v1204 = vrcp.pop %v1203
  %v1205 = vmul.f32 %v1203, %v1204
  %v1206 = vsub.f32 1.0, %v1205
  %v1207 = vmul.f32 %v1204, %v1206
  %v1208 = vadd.f32 %v1204, %v1207
  %vm1209 = vweird.f32 %v1203
  %vm1210 = vweird.f32 %v1204
  %vm1211 = vmor %vm1209, %vm1210
  %v1212 = vsel %vm1211, %v1204, %v1208
  %v1213 = vand.u32 2147483647, %v1203
  %vm1214 = vcmp.eq.f32.partialorder %v1213, 8.507059e+37
  %v1215 = vand.u32 %v1203, 2147483648
  %v1216 = vor.u32 1.1754944e-38, %v1215
  %v1217 = vsel %vm1214, %v1216, %v1212
  %v1218 = vmul.f32 1.0, %v1217
  %v1219 = vxor.u32 %v1197, 2147483648
  %v1220 = vmul.f32 %v1219, 1.442695
  %v1221 = vpow.pop %v1220
  %v1222 = vadd.f32 %v1221, 1.0
  %v1223 = vrcp.pop %v1222
  %v1224 = vmul.f32 %v1222, %v1223
  %v1225 = vsub.f32 1.0, %v1224
  %v1226 = vmul.f32 %v1223, %v1225
  %v1227 = vadd.f32 %v1223, %v1226
  %vm1228 = vweird.f32 %v1222
  %vm1229 = vweird.f32 %v1223
  %vm1230 = vmor %vm1228, %vm1229
  %v1231 = vsel %vm1230, %v1223, %v1227
  %v1232 = vand.u32 2147483647, %v1222
  %vm1233 = vcmp.eq.f32.partialorder %v1232, 8.507059e+37
  %v1234 = vand.u32 %v1222, 2147483648
  %v1235 = vor.u32 1.1754944e-38, %v1234
  %v1236 = vsel %vm1233, %v1235, %v1231
  %v1237 = vmul.f32 1.0, %v1236
  %v1238 = vtanh.pop %v1198
  %v1239 = vxor.u32 %v1199, 2147483648
  %v1240 = vmul.f32 %v1239, 1.442695
  %v1241 = vpow.pop %v1240
  %v1242 = vadd.f32 %v1241, 1.0
  %v1243 = vrcp.pop %v1242
  %v1244 = vmul.f32 %v1242, %v1243
  %v1245 = vsub.f32 1.0, %v1244
  %v1246 = vmul.f32 %v1243, %v1245
  %v1247 = vadd.f32 %v1243, %v1246
  %vm1248 = vweird.f32 %v1242
  %vm1249 = vweird.f32 %v1243
  %vm1250 = vmor %vm1248, %vm1249
  %v1251 = vsel %vm1250, %v1243, %v1247
  %v1252 = vand.u32 2147483647, %v1242
  %vm1253 = vcmp.eq.f32.partialorder %v1252, 8.507059e+37
  %v1254 = vand.u32 %v1242, 2147483648
  %v1255 = vor.u32 1.1754944e-38, %v1254
  %v1256 = vsel %vm1253, %v1255, %v1251
  %v1257 = vmul.f32 1.0, %v1256
  %v1258 = vmul.f32 %v1237, %v1106
  %v1259 = vmul.f32 %v1218, %v1238
  %v1260 = vadd.f32 %v1258, %v1259
  %v1261 = vtanh.pop %v1260
  %v1262 = vmul.f32 %v1257, %v1261
  %s1263 = scalar_lea.vmem [#allocation4], 40
  %1264 = vst [vmem:[%s1263] sm:$0xff] %v1262
  %s1265 = scalar_lea.vmem [#allocation2], 192
  %v1266 = vld [vmem:[%s1265] sm:$0xff]
  %v1267 = vld [vmem:[%s1265 + $0x8] sm:$0xff]
  %v1268 = vld [vmem:[%s1265 + $0x10] sm:$0xff]
  %v1269 = vld [vmem:[%s1265 + $0x18] sm:$0xff]
  %1270 = vmatpush.msra.mxu0 %v339
  %1271 = vmatpush.msra.mxu0 %v335
  %1272 = vmatpush.msra.mxu0 %v331
  %1273 = vmatpush.msra.mxu0 %v327
  %1274 = vmatpush.msra.mxu0 %v323
  %1275 = vmatpush.msra.mxu0 %v319
  %1276 = vmatpush.msra.mxu0 %v315
  %1277 = vmatpush.msra.mxu0 %v311
  %1278 = vmatpush.msra.mxu0 %v307
  %1279 = vmatpush.msra.mxu0 %v303
  %1280 = vmatpush.msra.mxu0 %v299
  %1281 = vmatpush.msra.mxu0 %v295
  %1282 = vmatpush.msra.mxu0 %v291
  %1283 = vmatpush.msra.mxu0 %v287
  %1284 = vmatpush.msra.mxu0 %v283
  %1285 = vmatpush.msra.mxu0 %v279
  %1286 = vmatmul.f32.gmra.mxu0 %v1262
  %v1287 = vpop.f32.mrf.mxu0
  %v1288 = vadd.f32 0.0, %v1287
  %1289 = vdwg.mxu0
  %1290 = vmatpush.msra.mxu0 %v340
  %1291 = vmatpush.msra.mxu0 %v336
  %1292 = vmatpush.msra.mxu0 %v332
  %1293 = vmatpush.msra.mxu0 %v328
  %1294 = vmatpush.msra.mxu0 %v324
  %1295 = vmatpush.msra.mxu0 %v320
  %1296 = vmatpush.msra.mxu0 %v316
  %1297 = vmatpush.msra.mxu0 %v312
  %1298 = vmatpush.msra.mxu0 %v308
  %1299 = vmatpush.msra.mxu0 %v304
  %1300 = vmatpush.msra.mxu0 %v300
  %1301 = vmatpush.msra.mxu0 %v296
  %1302 = vmatpush.msra.mxu0 %v292
  %1303 = vmatpush.msra.mxu0 %v288
  %1304 = vmatpush.msra.mxu0 %v284
  %1305 = vmatpush.msra.mxu0 %v280
  %1306 = vmatmul.f32.gmra.mxu0 %v1262
  %v1307 = vpop.f32.mrf.mxu0
  %v1308 = vadd.f32 0.0, %v1307
  %1309 = vdwg.mxu0
  %1310 = vmatpush.msra.mxu0 %v341
  %1311 = vmatpush.msra.mxu0 %v337
  %1312 = vmatpush.msra.mxu0 %v333
  %1313 = vmatpush.msra.mxu0 %v329
  %1314 = vmatpush.msra.mxu0 %v325
  %1315 = vmatpush.msra.mxu0 %v321
  %1316 = vmatpush.msra.mxu0 %v317
  %1317 = vmatpush.msra.mxu0 %v313
  %1318 = vmatpush.msra.mxu0 %v309
  %1319 = vmatpush.msra.mxu0 %v305
  %1320 = vmatpush.msra.mxu0 %v301
  %1321 = vmatpush.msra.mxu0 %v297
  %1322 = vmatpush.msra.mxu0 %v293
  %1323 = vmatpush.msra.mxu0 %v289
  %1324 = vmatpush.msra.mxu0 %v285
  %1325 = vmatpush.msra.mxu0 %v281
  %1326 = vmatmul.f32.gmra.mxu0 %v1262
  %v1327 = vpop.f32.mrf.mxu0
  %v1328 = vadd.f32 0.0, %v1327
  %1329 = vdwg.mxu0
  %1330 = vmatpush.msra.mxu0 %v342
  %1331 = vmatpush.msra.mxu0 %v338
  %1332 = vmatpush.msra.mxu0 %v334
  %1333 = vmatpush.msra.mxu0 %v330
  %1334 = vmatpush.msra.mxu0 %v326
  %1335 = vmatpush.msra.mxu0 %v322
  %1336 = vmatpush.msra.mxu0 %v318
  %1337 = vmatpush.msra.mxu0 %v314
  %1338 = vmatpush.msra.mxu0 %v310
  %1339 = vmatpush.msra.mxu0 %v306
  %1340 = vmatpush.msra.mxu0 %v302
  %1341 = vmatpush.msra.mxu0 %v298
  %1342 = vmatpush.msra.mxu0 %v294
  %1343 = vmatpush.msra.mxu0 %v290
  %1344 = vmatpush.msra.mxu0 %v286
  %1345 = vmatpush.msra.mxu0 %v282
  %1346 = vmatmul.f32.gmra.mxu0 %v1262
  %v1347 = vpop.f32.mrf.mxu0
  %v1348 = vadd.f32 0.0, %v1347
  %1349 = vdwg.mxu0
  %v1350 = vadd.f32 %v1266, %v1288
  %v1351 = vadd.f32 %v1267, %v1308
  %v1352 = vadd.f32 %v1268, %v1328
  %v1353 = vadd.f32 %v1269, %v1348
  %v1354 = vxor.u32 %v1350, 2147483648
  %v1355 = vmul.f32 %v1354, 1.442695
  %v1356 = vpow.pop %v1355
  %v1357 = vadd.f32 %v1356, 1.0
  %v1358 = vrcp.pop %v1357
  %v1359 = vmul.f32 %v1357, %v1358
  %v1360 = vsub.f32 1.0, %v1359
  %v1361 = vmul.f32 %v1358, %v1360
  %v1362 = vadd.f32 %v1358, %v1361
  %vm1363 = vweird.f32 %v1357
  %vm1364 = vweird.f32 %v1358
  %vm1365 = vmor %vm1363, %vm1364
  %v1366 = vsel %vm1365, %v1358, %v1362
  %v1367 = vand.u32 2147483647, %v1357
  %vm1368 = vcmp.eq.f32.partialorder %v1367, 8.507059e+37
  %v1369 = vand.u32 %v1357, 2147483648
  %v1370 = vor.u32 1.1754944e-38, %v1369
  %v1371 = vsel %vm1368, %v1370, %v1366
  %v1372 = vmul.f32 1.0, %v1371
  %v1373 = vxor.u32 %v1351, 2147483648
  %v1374 = vmul.f32 %v1373, 1.442695
  %v1375 = vpow.pop %v1374
  %v1376 = vadd.f32 %v1375, 1.0
  %v1377 = vrcp.pop %v1376
  %v1378 = vmul.f32 %v1376, %v1377
  %v1379 = vsub.f32 1.0, %v1378
  %v1380 = vmul.f32 %v1377, %v1379
  %v1381 = vadd.f32 %v1377, %v1380
  %vm1382 = vweird.f32 %v1376
  %vm1383 = vweird.f32 %v1377
  %vm1384 = vmor %vm1382, %vm1383
  %v1385 = vsel %vm1384, %v1377, %v1381
  %v1386 = vand.u32 2147483647, %v1376
  %vm1387 = vcmp.eq.f32.partialorder %v1386, 8.507059e+37
  %v1388 = vand.u32 %v1376, 2147483648
  %v1389 = vor.u32 1.1754944e-38, %v1388
  %v1390 = vsel %vm1387, %v1389, %v1385
  %v1391 = vmul.f32 1.0, %v1390
  %v1392 = vtanh.pop %v1352
  %v1393 = vxor.u32 %v1353, 2147483648
  %v1394 = vmul.f32 %v1393, 1.442695
  %v1395 = vpow.pop %v1394
  %v1396 = vadd.f32 %v1395, 1.0
  %v1397 = vrcp.pop %v1396
  %v1398 = vmul.f32 %v1396, %v1397
  %v1399 = vsub.f32 1.0, %v1398
  %v1400 = vmul.f32 %v1397, %v1399
  %v1401 = vadd.f32 %v1397, %v1400
  %vm1402 = vweird.f32 %v1396
  %vm1403 = vweird.f32 %v1397
  %vm1404 = vmor %vm1402, %vm1403
  %v1405 = vsel %vm1404, %v1397, %v1401
  %v1406 = vand.u32 2147483647, %v1396
  %vm1407 = vcmp.eq.f32.partialorder %v1406, 8.507059e+37
  %v1408 = vand.u32 %v1396, 2147483648
  %v1409 = vor.u32 1.1754944e-38, %v1408
  %v1410 = vsel %vm1407, %v1409, %v1405
  %v1411 = vmul.f32 1.0, %v1410
  %v1412 = vmul.f32 %v1391, %v1260
  %v1413 = vmul.f32 %v1372, %v1392
  %v1414 = vadd.f32 %v1412, %v1413
  %v1415 = vtanh.pop %v1414
  %v1416 = vmul.f32 %v1411, %v1415
  %s1417 = scalar_lea.vmem [#allocation4], 48
  %1418 = vst [vmem:[%s1417] sm:$0xff] %v1416
  %s1419 = scalar_lea.vmem [#allocation2], 224
  %v1420 = vld [vmem:[%s1419] sm:$0xff]
  %v1421 = vld [vmem:[%s1419 + $0x8] sm:$0xff]
  %v1422 = vld [vmem:[%s1419 + $0x10] sm:$0xff]
  %v1423 = vld [vmem:[%s1419 + $0x18] sm:$0xff]
  %1424 = vmatpush.msra.mxu0 %v339
  %1425 = vmatpush.msra.mxu0 %v335
  %1426 = vmatpush.msra.mxu0 %v331
  %1427 = vmatpush.msra.mxu0 %v327
  %1428 = vmatpush.msra.mxu0 %v323
  %1429 = vmatpush.msra.mxu0 %v319
  %1430 = vmatpush.msra.mxu0 %v315
  %1431 = vmatpush.msra.mxu0 %v311
  %1432 = vmatpush.msra.mxu0 %v307
  %1433 = vmatpush.msra.mxu0 %v303
  %1434 = vmatpush.msra.mxu0 %v299
  %1435 = vmatpush.msra.mxu0 %v295
  %1436 = vmatpush.msra.mxu0 %v291
  %1437 = vmatpush.msra.mxu0 %v287
  %1438 = vmatpush.msra.mxu0 %v283
  %1439 = vmatpush.msra.mxu0 %v279
  %1440 = vmatmul.f32.gmra.mxu0 %v1416
  %v1441 = vpop.f32.mrf.mxu0
  %v1442 = vadd.f32 0.0, %v1441
  %1443 = vdwg.mxu0
  %1444 = vmatpush.msra.mxu0 %v340
  %1445 = vmatpush.msra.mxu0 %v336
  %1446 = vmatpush.msra.mxu0 %v332
  %1447 = vmatpush.msra.mxu0 %v328
  %1448 = vmatpush.msra.mxu0 %v324
  %1449 = vmatpush.msra.mxu0 %v320
  %1450 = vmatpush.msra.mxu0 %v316
  %1451 = vmatpush.msra.mxu0 %v312
  %1452 = vmatpush.msra.mxu0 %v308
  %1453 = vmatpush.msra.mxu0 %v304
  %1454 = vmatpush.msra.mxu0 %v300
  %1455 = vmatpush.msra.mxu0 %v296
  %1456 = vmatpush.msra.mxu0 %v292
  %1457 = vmatpush.msra.mxu0 %v288
  %1458 = vmatpush.msra.mxu0 %v284
  %1459 = vmatpush.msra.mxu0 %v280
  %1460 = vmatmul.f32.gmra.mxu0 %v1416
  %v1461 = vpop.f32.mrf.mxu0
  %v1462 = vadd.f32 0.0, %v1461
  %1463 = vdwg.mxu0
  %1464 = vmatpush.msra.mxu0 %v341
  %1465 = vmatpush.msra.mxu0 %v337
  %1466 = vmatpush.msra.mxu0 %v333
  %1467 = vmatpush.msra.mxu0 %v329
  %1468 = vmatpush.msra.mxu0 %v325
  %1469 = vmatpush.msra.mxu0 %v321
  %1470 = vmatpush.msra.mxu0 %v317
  %1471 = vmatpush.msra.mxu0 %v313
  %1472 = vmatpush.msra.mxu0 %v309
  %1473 = vmatpush.msra.mxu0 %v305
  %1474 = vmatpush.msra.mxu0 %v301
  %1475 = vmatpush.msra.mxu0 %v297
  %1476 = vmatpush.msra.mxu0 %v293
  %1477 = vmatpush.msra.mxu0 %v289
  %1478 = vmatpush.msra.mxu0 %v285
  %1479 = vmatpush.msra.mxu0 %v281
  %1480 = vmatmul.f32.gmra.mxu0 %v1416
  %v1481 = vpop.f32.mrf.mxu0
  %v1482 = vadd.f32 0.0, %v1481
  %1483 = vdwg.mxu0
  %1484 = vmatpush.msra.mxu0 %v342
  %1485 = vmatpush.msra.mxu0 %v338
  %1486 = vmatpush.msra.mxu0 %v334
  %1487 = vmatpush.msra.mxu0 %v330
  %1488 = vmatpush.msra.mxu0 %v326
  %1489 = vmatpush.msra.mxu0 %v322
  %1490 = vmatpush.msra.mxu0 %v318
  %1491 = vmatpush.msra.mxu0 %v314
  %1492 = vmatpush.msra.mxu0 %v310
  %1493 = vmatpush.msra.mxu0 %v306
  %1494 = vmatpush.msra.mxu0 %v302
  %1495 = vmatpush.msra.mxu0 %v298
  %1496 = vmatpush.msra.mxu0 %v294
  %1497 = vmatpush.msra.mxu0 %v290
  %1498 = vmatpush.msra.mxu0 %v286
  %1499 = vmatpush.msra.mxu0 %v282
  %1500 = vmatmul.f32.gmra.mxu0 %v1416
  %v1501 = vpop.f32.mrf.mxu0
  %v1502 = vadd.f32 0.0, %v1501
  %1503 = vdwg.mxu0
  %v1504 = vadd.f32 %v1420, %v1442
  %v1505 = vadd.f32 %v1421, %v1462
  %v1506 = vadd.f32 %v1422, %v1482
  %v1507 = vadd.f32 %v1423, %v1502
  %v1508 = vxor.u32 %v1504, 2147483648
  %v1509 = vmul.f32 %v1508, 1.442695
  %v1510 = vpow.pop %v1509
  %v1511 = vadd.f32 %v1510, 1.0
  %v1512 = vrcp.pop %v1511
  %v1513 = vmul.f32 %v1511, %v1512
  %v1514 = vsub.f32 1.0, %v1513
  %v1515 = vmul.f32 %v1512, %v1514
  %v1516 = vadd.f32 %v1512, %v1515
  %vm1517 = vweird.f32 %v1511
  %vm1518 = vweird.f32 %v1512
  %vm1519 = vmor %vm1517, %vm1518
  %v1520 = vsel %vm1519, %v1512, %v1516
  %v1521 = vand.u32 2147483647, %v1511
  %vm1522 = vcmp.eq.f32.partialorder %v1521, 8.507059e+37
  %v1523 = vand.u32 %v1511, 2147483648
  %v1524 = vor.u32 1.1754944e-38, %v1523
  %v1525 = vsel %vm1522, %v1524, %v1520
  %v1526 = vmul.f32 1.0, %v1525
  %v1527 = vxor.u32 %v1505, 2147483648
  %v1528 = vmul.f32 %v1527, 1.442695
  %v1529 = vpow.pop %v1528
  %v1530 = vadd.f32 %v1529, 1.0
  %v1531 = vrcp.pop %v1530
  %v1532 = vmul.f32 %v1530, %v1531
  %v1533 = vsub.f32 1.0, %v1532
  %v1534 = vmul.f32 %v1531, %v1533
  %v1535 = vadd.f32 %v1531, %v1534
  %vm1536 = vweird.f32 %v1530
  %vm1537 = vweird.f32 %v1531
  %vm1538 = vmor %vm1536, %vm1537
  %v1539 = vsel %vm1538, %v1531, %v1535
  %v1540 = vand.u32 2147483647, %v1530
  %vm1541 = vcmp.eq.f32.partialorder %v1540, 8.507059e+37
  %v1542 = vand.u32 %v1530, 2147483648
  %v1543 = vor.u32 1.1754944e-38, %v1542
  %v1544 = vsel %vm1541, %v1543, %v1539
  %v1545 = vmul.f32 1.0, %v1544
  %v1546 = vtanh.pop %v1506
  %v1547 = vxor.u32 %v1507, 2147483648
  %v1548 = vmul.f32 %v1547, 1.442695
  %v1549 = vpow.pop %v1548
  %v1550 = vadd.f32 %v1549, 1.0
  %v1551 = vrcp.pop %v1550
  %v1552 = vmul.f32 %v1550, %v1551
  %v1553 = vsub.f32 1.0, %v1552
  %v1554 = vmul.f32 %v1551, %v1553
  %v1555 = vadd.f32 %v1551, %v1554
  %vm1556 = vweird.f32 %v1550
  %vm1557 = vweird.f32 %v1551
  %vm1558 = vmor %vm1556, %vm1557
  %v1559 = vsel %vm1558, %v1551, %v1555
  %v1560 = vand.u32 2147483647, %v1550
  %vm1561 = vcmp.eq.f32.partialorder %v1560, 8.507059e+37
  %v1562 = vand.u32 %v1550, 2147483648
  %v1563 = vor.u32 1.1754944e-38, %v1562
  %v1564 = vsel %vm1561, %v1563, %v1559
  %v1565 = vmul.f32 1.0, %v1564
  %v1566 = vmul.f32 %v1545, %v1414
  %v1567 = vmul.f32 %v1526, %v1546
  %v1568 = vadd.f32 %v1566, %v1567
  %v1569 = vtanh.pop %v1568
  %v1570 = vmul.f32 %v1565, %v1569
  %s1571 = scalar_lea.vmem [#allocation4], 56
  %1572 = vst [vmem:[%s1571] sm:$0xff] %v1570
  %v1573 = vld [vmem:[#allocation4] sm:$0xff]
  %v1574 = vld [vmem:[#allocation4 + $0x8] sm:$0xff]
  %v1575 = vld [vmem:[#allocation4 + $0x10] sm:$0xff]
  %v1576 = vld [vmem:[#allocation4 + $0x18] sm:$0xff]
  %v1577 = vld [vmem:[#allocation4 + $0x20] sm:$0xff]
  %v1578 = vld [vmem:[#allocation4 + $0x28] sm:$0xff]
  %v1579 = vld [vmem:[#allocation4 + $0x30] sm:$0xff]
  %v1580 = vld [vmem:[#allocation4 + $0x38] sm:$0xff]
  %v1581 = vld [vmem:[%s4] sm:$0xff]
  %v1582 = vld [vmem:[%s4 + $0x8] sm:$0xff]
  %v1583 = vld [vmem:[%s4 + $0x10] sm:$0xff]
  %v1584 = vld [vmem:[%s4 + $0x18] sm:$0xff]
  %v1585 = vld [vmem:[%s4 + $0x20] sm:$0xff]
  %v1586 = vld [vmem:[%s4 + $0x28] sm:$0xff]
  %v1587 = vld [vmem:[%s4 + $0x30] sm:$0xff]
  %v1588 = vld [vmem:[%s4 + $0x38] sm:$0xff]
  %v1589 = vld [vmem:[%s4 + $0x40] sm:$0xff]
  %v1590 = vld [vmem:[%s4 + $0x48] sm:$0xff]
  %v1591 = vld [vmem:[%s4 + $0x50] sm:$0xff]
  %v1592 = vld [vmem:[%s4 + $0x58] sm:$0xff]
  %v1593 = vld [vmem:[%s4 + $0x60] sm:$0xff]
  %v1594 = vld [vmem:[%s4 + $0x68] sm:$0xff]
  %v1595 = vld [vmem:[%s4 + $0x70] sm:$0xff]
  %v1596 = vld [vmem:[%s4 + $0x78] sm:$0xff]
  %v1597 = vld [vmem:[%s4 + $0x80] sm:$0xff]
  %v1598 = vld [vmem:[%s4 + $0x88] sm:$0xff]
  %v1599 = vld [vmem:[%s4 + $0x90] sm:$0xff]
  %v1600 = vld [vmem:[%s4 + $0x98] sm:$0xff]
  %v1601 = vld [vmem:[%s4 + $0xa0] sm:$0xff]
  %v1602 = vld [vmem:[%s4 + $0xa8] sm:$0xff]
  %v1603 = vld [vmem:[%s4 + $0xb0] sm:$0xff]
  %v1604 = vld [vmem:[%s4 + $0xb8] sm:$0xff]
  %v1605 = vld [vmem:[%s4 + $0xc0] sm:$0xff]
  %v1606 = vld [vmem:[%s4 + $0xc8] sm:$0xff]
  %v1607 = vld [vmem:[%s4 + $0xd0] sm:$0xff]
  %v1608 = vld [vmem:[%s4 + $0xd8] sm:$0xff]
  %v1609 = vld [vmem:[%s4 + $0xe0] sm:$0xff]
  %v1610 = vld [vmem:[%s4 + $0xe8] sm:$0xff]
  %v1611 = vld [vmem:[%s4 + $0xf0] sm:$0xff]
  %v1612 = vld [vmem:[%s4 + $0xf8] sm:$0xff]
  %v1613 = vld [vmem:[%s4 + $0x100] sm:$0xff]
  %v1614 = vld [vmem:[%s4 + $0x108] sm:$0xff]
  %v1615 = vld [vmem:[%s4 + $0x110] sm:$0xff]
  %v1616 = vld [vmem:[%s4 + $0x118] sm:$0xff]
  %v1617 = vld [vmem:[%s4 + $0x120] sm:$0xff]
  %v1618 = vld [vmem:[%s4 + $0x128] sm:$0xff]
  %v1619 = vld [vmem:[%s4 + $0x130] sm:$0xff]
  %v1620 = vld [vmem:[%s4 + $0x138] sm:$0xff]
  %v1621 = vld [vmem:[%s4 + $0x140] sm:$0xff]
  %v1622 = vld [vmem:[%s4 + $0x148] sm:$0xff]
  %v1623 = vld [vmem:[%s4 + $0x150] sm:$0xff]
  %v1624 = vld [vmem:[%s4 + $0x158] sm:$0xff]
  %v1625 = vld [vmem:[%s4 + $0x160] sm:$0xff]
  %v1626 = vld [vmem:[%s4 + $0x168] sm:$0xff]
  %v1627 = vld [vmem:[%s4 + $0x170] sm:$0xff]
  %v1628 = vld [vmem:[%s4 + $0x178] sm:$0xff]
  %v1629 = vld [vmem:[%s4 + $0x180] sm:$0xff]
  %v1630 = vld [vmem:[%s4 + $0x188] sm:$0xff]
  %v1631 = vld [vmem:[%s4 + $0x190] sm:$0xff]
  %v1632 = vld [vmem:[%s4 + $0x198] sm:$0xff]
  %v1633 = vld [vmem:[%s4 + $0x1a0] sm:$0xff]
  %v1634 = vld [vmem:[%s4 + $0x1a8] sm:$0xff]
  %v1635 = vld [vmem:[%s4 + $0x1b0] sm:$0xff]
  %v1636 = vld [vmem:[%s4 + $0x1b8] sm:$0xff]
  %v1637 = vld [vmem:[%s4 + $0x1c0] sm:$0xff]
  %v1638 = vld [vmem:[%s4 + $0x1c8] sm:$0xff]
  %v1639 = vld [vmem:[%s4 + $0x1d0] sm:$0xff]
  %v1640 = vld [vmem:[%s4 + $0x1d8] sm:$0xff]
  %v1641 = vld [vmem:[%s4 + $0x1e0] sm:$0xff]
  %v1642 = vld [vmem:[%s4 + $0x1e8] sm:$0xff]
  %v1643 = vld [vmem:[%s4 + $0x1f0] sm:$0xff]
  %v1644 = vld [vmem:[%s4 + $0x1f8] sm:$0xff]
  %v1645 = vld [vmem:[%s6] sm:$0xf]
  %v1647 = vperm.slane %v1645, 0
  %v1648 = vperm.slane %v1645, 1
  %v1649 = vperm.slane %v1645, 2
  %v1650 = vperm.slane %v1645, 3
  %1655 = vmatpush.msra.mxu0 %v1641
  %1656 = vmatpush.msra.mxu0 %v1637
  %1657 = vmatpush.msra.mxu0 %v1633
  %1658 = vmatpush.msra.mxu0 %v1629
  %1659 = vmatpush.msra.mxu0 %v1625
  %1660 = vmatpush.msra.mxu0 %v1621
  %1661 = vmatpush.msra.mxu0 %v1617
  %1662 = vmatpush.msra.mxu0 %v1613
  %1663 = vmatpush.msra.mxu0 %v1609
  %1664 = vmatpush.msra.mxu0 %v1605
  %1665 = vmatpush.msra.mxu0 %v1601
  %1666 = vmatpush.msra.mxu0 %v1597
  %1667 = vmatpush.msra.mxu0 %v1593
  %1668 = vmatpush.msra.mxu0 %v1589
  %1669 = vmatpush.msra.mxu0 %v1585
  %1670 = vmatpush.msra.mxu0 %v1581
  %1671 = vmatmul.f32.gmra.mxu0 %v1573
  %v1672 = vpop.f32.mrf.mxu0
  %v1673 = vadd.f32 %v1647, %v1672
  %1674 = vmatmul.f32.gmra.mxu0 %v1574
  %v1675 = vpop.f32.mrf.mxu0
  %v1676 = vadd.f32 %v1647, %v1675
  %1677 = vmatmul.f32.gmra.mxu0 %v1575
  %v1678 = vpop.f32.mrf.mxu0
  %v1679 = vadd.f32 %v1647, %v1678
  %1680 = vmatmul.f32.gmra.mxu0 %v1576
  %v1681 = vpop.f32.mrf.mxu0
  %v1682 = vadd.f32 %v1647, %v1681
  %1683 = vmatmul.f32.gmra.mxu0 %v1577
  %v1684 = vpop.f32.mrf.mxu0
  %v1685 = vadd.f32 %v1647, %v1684
  %1686 = vmatmul.f32.gmra.mxu0 %v1578
  %v1687 = vpop.f32.mrf.mxu0
  %v1688 = vadd.f32 %v1647, %v1687
  %1689 = vmatmul.f32.gmra.mxu0 %v1579
  %v1690 = vpop.f32.mrf.mxu0
  %v1691 = vadd.f32 %v1647, %v1690
  %1692 = vmatmul.f32.gmra.mxu0 %v1580
  %v1693 = vpop.f32.mrf.mxu0
  %v1694 = vadd.f32 %v1647, %v1693
  %1695 = vdwg.mxu0
  %1696 = vmatpush.msra.mxu0 %v1642
  %1697 = vmatpush.msra.mxu0 %v1638
  %1698 = vmatpush.msra.mxu0 %v1634
  %1699 = vmatpush.msra.mxu0 %v1630
  %1700 = vmatpush.msra.mxu0 %v1626
  %1701 = vmatpush.msra.mxu0 %v1622
  %1702 = vmatpush.msra.mxu0 %v1618
  %1703 = vmatpush.msra.mxu0 %v1614
  %1704 = vmatpush.msra.mxu0 %v1610
  %1705 = vmatpush.msra.mxu0 %v1606
  %1706 = vmatpush.msra.mxu0 %v1602
  %1707 = vmatpush.msra.mxu0 %v1598
  %1708 = vmatpush.msra.mxu0 %v1594
  %1709 = vmatpush.msra.mxu0 %v1590
  %1710 = vmatpush.msra.mxu0 %v1586
  %1711 = vmatpush.msra.mxu0 %v1582
  %1712 = vmatmul.f32.gmra.mxu0 %v1573
  %v1713 = vpop.f32.mrf.mxu0
  %v1714 = vadd.f32 %v1648, %v1713
  %1715 = vmatmul.f32.gmra.mxu0 %v1574
  %v1716 = vpop.f32.mrf.mxu0
  %v1717 = vadd.f32 %v1648, %v1716
  %1718 = vmatmul.f32.gmra.mxu0 %v1575
  %v1719 = vpop.f32.mrf.mxu0
  %v1720 = vadd.f32 %v1648, %v1719
  %1721 = vmatmul.f32.gmra.mxu0 %v1576
  %v1722 = vpop.f32.mrf.mxu0
  %v1723 = vadd.f32 %v1648, %v1722
  %1724 = vmatmul.f32.gmra.mxu0 %v1577
  %v1725 = vpop.f32.mrf.mxu0
  %v1726 = vadd.f32 %v1648, %v1725
  %1727 = vmatmul.f32.gmra.mxu0 %v1578
  %v1728 = vpop.f32.mrf.mxu0
  %v1729 = vadd.f32 %v1648, %v1728
  %1730 = vmatmul.f32.gmra.mxu0 %v1579
  %v1731 = vpop.f32.mrf.mxu0
  %v1732 = vadd.f32 %v1648, %v1731
  %1733 = vmatmul.f32.gmra.mxu0 %v1580
  %v1734 = vpop.f32.mrf.mxu0
  %v1735 = vadd.f32 %v1648, %v1734
  %1736 = vdwg.mxu0
  %1737 = vmatpush.msra.mxu0 %v1643
  %1738 = vmatpush.msra.mxu0 %v1639
  %1739 = vmatpush.msra.mxu0 %v1635
  %1740 = vmatpush.msra.mxu0 %v1631
  %1741 = vmatpush.msra.mxu0 %v1627
  %1742 = vmatpush.msra.mxu0 %v1623
  %1743 = vmatpush.msra.mxu0 %v1619
  %1744 = vmatpush.msra.mxu0 %v1615
  %1745 = vmatpush.msra.mxu0 %v1611
  %1746 = vmatpush.msra.mxu0 %v1607
  %1747 = vmatpush.msra.mxu0 %v1603
  %1748 = vmatpush.msra.mxu0 %v1599
  %1749 = vmatpush.msra.mxu0 %v1595
  %1750 = vmatpush.msra.mxu0 %v1591
  %1751 = vmatpush.msra.mxu0 %v1587
  %1752 = vmatpush.msra.mxu0 %v1583
  %1753 = vmatmul.f32.gmra.mxu0 %v1573
  %v1754 = vpop.f32.mrf.mxu0
  %v1755 = vadd.f32 %v1649, %v1754
  %1756 = vmatmul.f32.gmra.mxu0 %v1574
  %v1757 = vpop.f32.mrf.mxu0
  %v1758 = vadd.f32 %v1649, %v1757
  %1759 = vmatmul.f32.gmra.mxu0 %v1575
  %v1760 = vpop.f32.mrf.mxu0
  %v1761 = vadd.f32 %v1649, %v1760
  %1762 = vmatmul.f32.gmra.mxu0 %v1576
  %v1763 = vpop.f32.mrf.mxu0
  %v1764 = vadd.f32 %v1649, %v1763
  %1765 = vmatmul.f32.gmra.mxu0 %v1577
  %v1766 = vpop.f32.mrf.mxu0
  %v1767 = vadd.f32 %v1649, %v1766
  %1768 = vmatmul.f32.gmra.mxu0 %v1578
  %v1769 = vpop.f32.mrf.mxu0
  %v1770 = vadd.f32 %v1649, %v1769
  %1771 = vmatmul.f32.gmra.mxu0 %v1579
  %v1772 = vpop.f32.mrf.mxu0
  %v1773 = vadd.f32 %v1649, %v1772
  %1774 = vmatmul.f32.gmra.mxu0 %v1580
  %v1775 = vpop.f32.mrf.mxu0
  %v1776 = vadd.f32 %v1649, %v1775
  %1777 = vdwg.mxu0
  %1778 = vmatpush.msra.mxu0 %v1644
  %1779 = vmatpush.msra.mxu0 %v1640
  %1780 = vmatpush.msra.mxu0 %v1636
  %1781 = vmatpush.msra.mxu0 %v1632
  %1782 = vmatpush.msra.mxu0 %v1628
  %1783 = vmatpush.msra.mxu0 %v1624
  %1784 = vmatpush.msra.mxu0 %v1620
  %1785 = vmatpush.msra.mxu0 %v1616
  %1786 = vmatpush.msra.mxu0 %v1612
  %1787 = vmatpush.msra.mxu0 %v1608
  %1788 = vmatpush.msra.mxu0 %v1604
  %1789 = vmatpush.msra.mxu0 %v1600
  %1790 = vmatpush.msra.mxu0 %v1596
  %1791 = vmatpush.msra.mxu0 %v1592
  %1792 = vmatpush.msra.mxu0 %v1588
  %1793 = vmatpush.msra.mxu0 %v1584
  %1794 = vmatmul.f32.gmra.mxu0 %v1573
  %v1795 = vpop.f32.mrf.mxu0
  %v1796 = vadd.f32 %v1650, %v1795
  %1797 = vmatmul.f32.gmra.mxu0 %v1574
  %v1798 = vpop.f32.mrf.mxu0
  %v1799 = vadd.f32 %v1650, %v1798
  %1800 = vmatmul.f32.gmra.mxu0 %v1575
  %v1801 = vpop.f32.mrf.mxu0
  %v1802 = vadd.f32 %v1650, %v1801
  %1803 = vmatmul.f32.gmra.mxu0 %v1576
  %v1804 = vpop.f32.mrf.mxu0
  %v1805 = vadd.f32 %v1650, %v1804
  %1806 = vmatmul.f32.gmra.mxu0 %v1577
  %v1807 = vpop.f32.mrf.mxu0
  %v1808 = vadd.f32 %v1650, %v1807
  %1809 = vmatmul.f32.gmra.mxu0 %v1578
  %v1810 = vpop.f32.mrf.mxu0
  %v1811 = vadd.f32 %v1650, %v1810
  %1812 = vmatmul.f32.gmra.mxu0 %v1579
  %v1813 = vpop.f32.mrf.mxu0
  %v1814 = vadd.f32 %v1650, %v1813
  %1815 = vmatmul.f32.gmra.mxu0 %v1580
  %v1816 = vpop.f32.mrf.mxu0
  %v1817 = vadd.f32 %v1650, %v1816
  %1818 = vdwg.mxu0
  %1819 = vst [vmem:[#allocation3] sm:$0xff] %v1673
  %1820 = vst [vmem:[#allocation3 + $0x8] sm:$0xff] %v1714
  %1821 = vst [vmem:[#allocation3 + $0x10] sm:$0xff] %v1755
  %1822 = vst [vmem:[#allocation3 + $0x18] sm:$0xff] %v1796
  %1823 = vst [vmem:[#allocation3 + $0x20] sm:$0xff] %v1676
  %1824 = vst [vmem:[#allocation3 + $0x28] sm:$0xff] %v1717
  %1825 = vst [vmem:[#allocation3 + $0x30] sm:$0xff] %v1758
  %1826 = vst [vmem:[#allocation3 + $0x38] sm:$0xff] %v1799
  %1827 = vst [vmem:[#allocation3 + $0x40] sm:$0xff] %v1679
  %1828 = vst [vmem:[#allocation3 + $0x48] sm:$0xff] %v1720
  %1829 = vst [vmem:[#allocation3 + $0x50] sm:$0xff] %v1761
  %1830 = vst [vmem:[#allocation3 + $0x58] sm:$0xff] %v1802
  %1831 = vst [vmem:[#allocation3 + $0x60] sm:$0xff] %v1682
  %1832 = vst [vmem:[#allocation3 + $0x68] sm:$0xff] %v1723
  %1833 = vst [vmem:[#allocation3 + $0x70] sm:$0xff] %v1764
  %1834 = vst [vmem:[#allocation3 + $0x78] sm:$0xff] %v1805
  %1835 = vst [vmem:[#allocation3 + $0x80] sm:$0xff] %v1685
  %1836 = vst [vmem:[#allocation3 + $0x88] sm:$0xff] %v1726
  %1837 = vst [vmem:[#allocation3 + $0x90] sm:$0xff] %v1767
  %1838 = vst [vmem:[#allocation3 + $0x98] sm:$0xff] %v1808
  %1839 = vst [vmem:[#allocation3 + $0xa0] sm:$0xff] %v1688
  %1840 = vst [vmem:[#allocation3 + $0xa8] sm:$0xff] %v1729
  %1841 = vst [vmem:[#allocation3 + $0xb0] sm:$0xff] %v1770
  %1842 = vst [vmem:[#allocation3 + $0xb8] sm:$0xff] %v1811
  %1843 = vst [vmem:[#allocation3 + $0xc0] sm:$0xff] %v1691
  %1844 = vst [vmem:[#allocation3 + $0xc8] sm:$0xff] %v1732
  %1845 = vst [vmem:[#allocation3 + $0xd0] sm:$0xff] %v1773
  %1846 = vst [vmem:[#allocation3 + $0xd8] sm:$0xff] %v1814
  %1847 = vst [vmem:[#allocation3 + $0xe0] sm:$0xff] %v1694
  %1848 = vst [vmem:[#allocation3 + $0xe8] sm:$0xff] %v1735
  %1849 = vst [vmem:[#allocation3 + $0xf0] sm:$0xff] %v1776
  %1850 = vst [vmem:[#allocation3 + $0xf8] sm:$0xff] %v1817
  %v1851 = vld [vmem:[%s5] sm:$0xff]
  %v1852 = vld [vmem:[%s5 + $0x8] sm:$0xff]
  %v1853 = vld [vmem:[%s5 + $0x10] sm:$0xff]
  %v1854 = vld [vmem:[%s5 + $0x18] sm:$0xff]
  %v1855 = vld [vmem:[%s5 + $0x20] sm:$0xff]
  %v1856 = vld [vmem:[%s5 + $0x28] sm:$0xff]
  %v1857 = vld [vmem:[%s5 + $0x30] sm:$0xff]
  %v1858 = vld [vmem:[%s5 + $0x38] sm:$0xff]
  %v1859 = vld [vmem:[%s5 + $0x40] sm:$0xff]
  %v1860 = vld [vmem:[%s5 + $0x48] sm:$0xff]
  %v1861 = vld [vmem:[%s5 + $0x50] sm:$0xff]
  %v1862 = vld [vmem:[%s5 + $0x58] sm:$0xff]
  %v1863 = vld [vmem:[%s5 + $0x60] sm:$0xff]
  %v1864 = vld [vmem:[%s5 + $0x68] sm:$0xff]
  %v1865 = vld [vmem:[%s5 + $0x70] sm:$0xff]
  %v1866 = vld [vmem:[%s5 + $0x78] sm:$0xff]
  %v1867 = vld [vmem:[%s5 + $0x80] sm:$0xff]
  %v1868 = vld [vmem:[%s5 + $0x88] sm:$0xff]
  %v1869 = vld [vmem:[%s5 + $0x90] sm:$0xff]
  %v1870 = vld [vmem:[%s5 + $0x98] sm:$0xff]
  %v1871 = vld [vmem:[%s5 + $0xa0] sm:$0xff]
  %v1872 = vld [vmem:[%s5 + $0xa8] sm:$0xff]
  %v1873 = vld [vmem:[%s5 + $0xb0] sm:$0xff]
  %v1874 = vld [vmem:[%s5 + $0xb8] sm:$0xff]
  %v1875 = vld [vmem:[%s5 + $0xc0] sm:$0xff]
  %v1876 = vld [vmem:[%s5 + $0xc8] sm:$0xff]
  %v1877 = vld [vmem:[%s5 + $0xd0] sm:$0xff]
  %v1878 = vld [vmem:[%s5 + $0xd8] sm:$0xff]
  %v1879 = vld [vmem:[%s5 + $0xe0] sm:$0xff]
  %v1880 = vld [vmem:[%s5 + $0xe8] sm:$0xff]
  %v1881 = vld [vmem:[%s5 + $0xf0] sm:$0xff]
  %v1882 = vld [vmem:[%s5 + $0xf8] sm:$0xff]
  %v1883 = vld [vmem:[%s5 + $0x100] sm:$0xff]
  %v1884 = vld [vmem:[%s5 + $0x108] sm:$0xff]
  %v1885 = vld [vmem:[%s5 + $0x110] sm:$0xff]
  %v1886 = vld [vmem:[%s5 + $0x118] sm:$0xff]
  %v1887 = vld [vmem:[%s5 + $0x120] sm:$0xff]
  %v1888 = vld [vmem:[%s5 + $0x128] sm:$0xff]
  %v1889 = vld [vmem:[%s5 + $0x130] sm:$0xff]
  %v1890 = vld [vmem:[%s5 + $0x138] sm:$0xff]
  %v1891 = vld [vmem:[%s5 + $0x140] sm:$0xff]
  %v1892 = vld [vmem:[%s5 + $0x148] sm:$0xff]
  %v1893 = vld [vmem:[%s5 + $0x150] sm:$0xff]
  %v1894 = vld [vmem:[%s5 + $0x158] sm:$0xff]
  %v1895 = vld [vmem:[%s5 + $0x160] sm:$0xff]
  %v1896 = vld [vmem:[%s5 + $0x168] sm:$0xff]
  %v1897 = vld [vmem:[%s5 + $0x170] sm:$0xff]
  %v1898 = vld [vmem:[%s5 + $0x178] sm:$0xff]
  %v1899 = vld [vmem:[%s5 + $0x180] sm:$0xff]
  %v1900 = vld [vmem:[%s5 + $0x188] sm:$0xff]
  %v1901 = vld [vmem:[%s5 + $0x190] sm:$0xff]
  %v1902 = vld [vmem:[%s5 + $0x198] sm:$0xff]
  %v1903 = vld [vmem:[%s5 + $0x1a0] sm:$0xff]
  %v1904 = vld [vmem:[%s5 + $0x1a8] sm:$0xff]
  %v1905 = vld [vmem:[%s5 + $0x1b0] sm:$0xff]
  %v1906 = vld [vmem:[%s5 + $0x1b8] sm:$0xff]
  %v1907 = vld [vmem:[%s5 + $0x1c0] sm:$0xff]
  %v1908 = vld [vmem:[%s5 + $0x1c8] sm:$0xff]
  %v1909 = vld [vmem:[%s5 + $0x1d0] sm:$0xff]
  %v1910 = vld [vmem:[%s5 + $0x1d8] sm:$0xff]
  %v1911 = vld [vmem:[%s5 + $0x1e0] sm:$0xff]
  %v1912 = vld [vmem:[%s5 + $0x1e8] sm:$0xff]
  %v1913 = vld [vmem:[%s5 + $0x1f0] sm:$0xff]
  %v1914 = vld [vmem:[%s5 + $0x1f8] sm:$0xff]
  %v1915 = vld [vmem:[#allocation3] sm:$0xff]
  %v1916 = vld [vmem:[#allocation3 + $0x8] sm:$0xff]
  %v1917 = vld [vmem:[#allocation3 + $0x10] sm:$0xff]
  %v1918 = vld [vmem:[#allocation3 + $0x18] sm:$0xff]
  %1919 = vmatpush.msra.mxu0 %v1911
  %1920 = vmatpush.msra.mxu0 %v1907
  %1921 = vmatpush.msra.mxu0 %v1903
  %1922 = vmatpush.msra.mxu0 %v1899
  %1923 = vmatpush.msra.mxu0 %v1895
  %1924 = vmatpush.msra.mxu0 %v1891
  %1925 = vmatpush.msra.mxu0 %v1887
  %1926 = vmatpush.msra.mxu0 %v1883
  %1927 = vmatpush.msra.mxu0 %v1879
  %1928 = vmatpush.msra.mxu0 %v1875
  %1929 = vmatpush.msra.mxu0 %v1871
  %1930 = vmatpush.msra.mxu0 %v1867
  %1931 = vmatpush.msra.mxu0 %v1863
  %1932 = vmatpush.msra.mxu0 %v1859
  %1933 = vmatpush.msra.mxu0 %v1855
  %1934 = vmatpush.msra.mxu0 %v1851
  %1935 = vmatmul.f32.gmra.mxu0 0.0
  %v1936 = vpop.f32.mrf.mxu0
  %v1937 = vadd.f32 0.0, %v1936
  %1938 = vdwg.mxu0
  %1939 = vmatpush.msra.mxu0 %v1912
  %1940 = vmatpush.msra.mxu0 %v1908
  %1941 = vmatpush.msra.mxu0 %v1904
  %1942 = vmatpush.msra.mxu0 %v1900
  %1943 = vmatpush.msra.mxu0 %v1896
  %1944 = vmatpush.msra.mxu0 %v1892
  %1945 = vmatpush.msra.mxu0 %v1888
  %1946 = vmatpush.msra.mxu0 %v1884
  %1947 = vmatpush.msra.mxu0 %v1880
  %1948 = vmatpush.msra.mxu0 %v1876
  %1949 = vmatpush.msra.mxu0 %v1872
  %1950 = vmatpush.msra.mxu0 %v1868
  %1951 = vmatpush.msra.mxu0 %v1864
  %1952 = vmatpush.msra.mxu0 %v1860
  %1953 = vmatpush.msra.mxu0 %v1856
  %1954 = vmatpush.msra.mxu0 %v1852
  %1955 = vmatmul.f32.gmra.mxu0 0.0
  %v1956 = vpop.f32.mrf.mxu0
  %v1957 = vadd.f32 0.0, %v1956
  %1958 = vdwg.mxu0
  %1959 = vmatpush.msra.mxu0 %v1913
  %1960 = vmatpush.msra.mxu0 %v1909
  %1961 = vmatpush.msra.mxu0 %v1905
  %1962 = vmatpush.msra.mxu0 %v1901
  %1963 = vmatpush.msra.mxu0 %v1897
  %1964 = vmatpush.msra.mxu0 %v1893
  %1965 = vmatpush.msra.mxu0 %v1889
  %1966 = vmatpush.msra.mxu0 %v1885
  %1967 = vmatpush.msra.mxu0 %v1881
  %1968 = vmatpush.msra.mxu0 %v1877
  %1969 = vmatpush.msra.mxu0 %v1873
  %1970 = vmatpush.msra.mxu0 %v1869
  %1971 = vmatpush.msra.mxu0 %v1865
  %1972 = vmatpush.msra.mxu0 %v1861
  %1973 = vmatpush.msra.mxu0 %v1857
  %1974 = vmatpush.msra.mxu0 %v1853
  %1975 = vmatmul.f32.gmra.mxu0 0.0
  %v1976 = vpop.f32.mrf.mxu0
  %v1977 = vadd.f32 0.0, %v1976
  %1978 = vdwg.mxu0
  %1979 = vmatpush.msra.mxu0 %v1914
  %1980 = vmatpush.msra.mxu0 %v1910
  %1981 = vmatpush.msra.mxu0 %v1906
  %1982 = vmatpush.msra.mxu0 %v1902
  %1983 = vmatpush.msra.mxu0 %v1898
  %1984 = vmatpush.msra.mxu0 %v1894
  %1985 = vmatpush.msra.mxu0 %v1890
  %1986 = vmatpush.msra.mxu0 %v1886
  %1987 = vmatpush.msra.mxu0 %v1882
  %1988 = vmatpush.msra.mxu0 %v1878
  %1989 = vmatpush.msra.mxu0 %v1874
  %1990 = vmatpush.msra.mxu0 %v1870
  %1991 = vmatpush.msra.mxu0 %v1866
  %1992 = vmatpush.msra.mxu0 %v1862
  %1993 = vmatpush.msra.mxu0 %v1858
  %1994 = vmatpush.msra.mxu0 %v1854
  %1995 = vmatmul.f32.gmra.mxu0 0.0
  %v1996 = vpop.f32.mrf.mxu0
  %v1997 = vadd.f32 0.0, %v1996
  %1998 = vdwg.mxu0
  %v1999 = vadd.f32 %v1915, %v1937
  %v2000 = vadd.f32 %v1916, %v1957
  %v2001 = vadd.f32 %v1917, %v1977
  %v2002 = vadd.f32 %v1918, %v1997
  %v2003 = vxor.u32 %v1999, 2147483648
  %v2004 = vmul.f32 %v2003, 1.442695
  %v2005 = vpow.pop %v2004
  %v2006 = vadd.f32 %v2005, 1.0
  %v2007 = vrcp.pop %v2006
  %v2008 = vmul.f32 %v2006, %v2007
  %v2009 = vsub.f32 1.0, %v2008
  %v2010 = vmul.f32 %v2007, %v2009
  %v2011 = vadd.f32 %v2007, %v2010
  %vm2012 = vweird.f32 %v2006
  %vm2013 = vweird.f32 %v2007
  %vm2014 = vmor %vm2012, %vm2013
  %v2015 = vsel %vm2014, %v2007, %v2011
  %v2016 = vand.u32 2147483647, %v2006
  %vm2017 = vcmp.eq.f32.partialorder %v2016, 8.507059e+37
  %v2018 = vand.u32 %v2006, 2147483648
  %v2019 = vor.u32 1.1754944e-38, %v2018
  %v2020 = vsel %vm2017, %v2019, %v2015
  %v2021 = vmul.f32 1.0, %v2020
  %v2022 = vxor.u32 %v2000, 2147483648
  %v2023 = vmul.f32 %v2022, 1.442695
  %v2024 = vpow.pop %v2023
  %v2025 = vadd.f32 %v2024, 1.0
  %v2026 = vrcp.pop %v2025
  %v2027 = vmul.f32 %v2025, %v2026
  %v2028 = vsub.f32 1.0, %v2027
  %v2029 = vmul.f32 %v2026, %v2028
  %v2030 = vadd.f32 %v2026, %v2029
  %vm2031 = vweird.f32 %v2025
  %vm2032 = vweird.f32 %v2026
  %vm2033 = vmor %vm2031, %vm2032
  %v2034 = vsel %vm2033, %v2026, %v2030
  %v2035 = vand.u32 2147483647, %v2025
  %vm2036 = vcmp.eq.f32.partialorder %v2035, 8.507059e+37
  %v2037 = vand.u32 %v2025, 2147483648
  %v2038 = vor.u32 1.1754944e-38, %v2037
  %v2039 = vsel %vm2036, %v2038, %v2034
  %v2040 = vmul.f32 1.0, %v2039
  %v2041 = vtanh.pop %v2001
  %v2042 = vxor.u32 %v2002, 2147483648
  %v2043 = vmul.f32 %v2042, 1.442695
  %v2044 = vpow.pop %v2043
  %v2045 = vadd.f32 %v2044, 1.0
  %v2046 = vrcp.pop %v2045
  %v2047 = vmul.f32 %v2045, %v2046
  %v2048 = vsub.f32 1.0, %v2047
  %v2049 = vmul.f32 %v2046, %v2048
  %v2050 = vadd.f32 %v2046, %v2049
  %vm2051 = vweird.f32 %v2045
  %vm2052 = vweird.f32 %v2046
  %vm2053 = vmor %vm2051, %vm2052
  %v2054 = vsel %vm2053, %v2046, %v2050
  %v2055 = vand.u32 2147483647, %v2045
  %vm2056 = vcmp.eq.f32.partialorder %v2055, 8.507059e+37
  %v2057 = vand.u32 %v2045, 2147483648
  %v2058 = vor.u32 1.1754944e-38, %v2057
  %v2059 = vsel %vm2056, %v2058, %v2054
  %v2060 = vmul.f32 1.0, %v2059
  %v2061 = vmul.f32 %v2040, 0.0
  %v2062 = vmul.f32 %v2021, %v2041
  %v2063 = vadd.f32 %v2061, %v2062
  %v2064 = vtanh.pop %v2063
  %v2065 = vmul.f32 %v2060, %v2064
  %s2066 = scalar_lea.vmem [#allocation3], 32
  %v2067 = vld [vmem:[%s2066] sm:$0xff]
  %v2068 = vld [vmem:[%s2066 + $0x8] sm:$0xff]
  %v2069 = vld [vmem:[%s2066 + $0x10] sm:$0xff]
  %v2070 = vld [vmem:[%s2066 + $0x18] sm:$0xff]
  %2071 = vmatpush.msra.mxu0 %v1911
  %2072 = vmatpush.msra.mxu0 %v1907
  %2073 = vmatpush.msra.mxu0 %v1903
  %2074 = vmatpush.msra.mxu0 %v1899
  %2075 = vmatpush.msra.mxu0 %v1895
  %2076 = vmatpush.msra.mxu0 %v1891
  %2077 = vmatpush.msra.mxu0 %v1887
  %2078 = vmatpush.msra.mxu0 %v1883
  %2079 = vmatpush.msra.mxu0 %v1879
  %2080 = vmatpush.msra.mxu0 %v1875
  %2081 = vmatpush.msra.mxu0 %v1871
  %2082 = vmatpush.msra.mxu0 %v1867
  %2083 = vmatpush.msra.mxu0 %v1863
  %2084 = vmatpush.msra.mxu0 %v1859
  %2085 = vmatpush.msra.mxu0 %v1855
  %2086 = vmatpush.msra.mxu0 %v1851
  %2087 = vmatmul.f32.gmra.mxu0 %v2065
  %v2088 = vpop.f32.mrf.mxu0
  %v2089 = vadd.f32 0.0, %v2088
  %2090 = vdwg.mxu0
  %2091 = vmatpush.msra.mxu0 %v1912
  %2092 = vmatpush.msra.mxu0 %v1908
  %2093 = vmatpush.msra.mxu0 %v1904
  %2094 = vmatpush.msra.mxu0 %v1900
  %2095 = vmatpush.msra.mxu0 %v1896
  %2096 = vmatpush.msra.mxu0 %v1892
  %2097 = vmatpush.msra.mxu0 %v1888
  %2098 = vmatpush.msra.mxu0 %v1884
  %2099 = vmatpush.msra.mxu0 %v1880
  %2100 = vmatpush.msra.mxu0 %v1876
  %2101 = vmatpush.msra.mxu0 %v1872
  %2102 = vmatpush.msra.mxu0 %v1868
  %2103 = vmatpush.msra.mxu0 %v1864
  %2104 = vmatpush.msra.mxu0 %v1860
  %2105 = vmatpush.msra.mxu0 %v1856
  %2106 = vmatpush.msra.mxu0 %v1852
  %2107 = vmatmul.f32.gmra.mxu0 %v2065
  %v2108 = vpop.f32.mrf.mxu0
  %v2109 = vadd.f32 0.0, %v2108
  %2110 = vdwg.mxu0
  %2111 = vmatpush.msra.mxu0 %v1913
  %2112 = vmatpush.msra.mxu0 %v1909
  %2113 = vmatpush.msra.mxu0 %v1905
  %2114 = vmatpush.msra.mxu0 %v1901
  %2115 = vmatpush.msra.mxu0 %v1897
  %2116 = vmatpush.msra.mxu0 %v1893
  %2117 = vmatpush.msra.mxu0 %v1889
  %2118 = vmatpush.msra.mxu0 %v1885
  %2119 = vmatpush.msra.mxu0 %v1881
  %2120 = vmatpush.msra.mxu0 %v1877
  %2121 = vmatpush.msra.mxu0 %v1873
  %2122 = vmatpush.msra.mxu0 %v1869
  %2123 = vmatpush.msra.mxu0 %v1865
  %2124 = vmatpush.msra.mxu0 %v1861
  %2125 = vmatpush.msra.mxu0 %v1857
  %2126 = vmatpush.msra.mxu0 %v1853
  %2127 = vmatmul.f32.gmra.mxu0 %v2065
  %v2128 = vpop.f32.mrf.mxu0
  %v2129 = vadd.f32 0.0, %v2128
  %2130 = vdwg.mxu0
  %2131 = vmatpush.msra.mxu0 %v1914
  %2132 = vmatpush.msra.mxu0 %v1910
  %2133 = vmatpush.msra.mxu0 %v1906
  %2134 = vmatpush.msra.mxu0 %v1902
  %2135 = vmatpush.msra.mxu0 %v1898
  %2136 = vmatpush.msra.mxu0 %v1894
  %2137 = vmatpush.msra.mxu0 %v1890
  %2138 = vmatpush.msra.mxu0 %v1886
  %2139 = vmatpush.msra.mxu0 %v1882
  %2140 = vmatpush.msra.mxu0 %v1878
  %2141 = vmatpush.msra.mxu0 %v1874
  %2142 = vmatpush.msra.mxu0 %v1870
  %2143 = vmatpush.msra.mxu0 %v1866
  %2144 = vmatpush.msra.mxu0 %v1862
  %2145 = vmatpush.msra.mxu0 %v1858
  %2146 = vmatpush.msra.mxu0 %v1854
  %2147 = vmatmul.f32.gmra.mxu0 %v2065
  %v2148 = vpop.f32.mrf.mxu0
  %v2149 = vadd.f32 0.0, %v2148
  %2150 = vdwg.mxu0
  %v2151 = vadd.f32 %v2067, %v2089
  %v2152 = vadd.f32 %v2068, %v2109
  %v2153 = vadd.f32 %v2069, %v2129
  %v2154 = vadd.f32 %v2070, %v2149
  %v2155 = vxor.u32 %v2151, 2147483648
  %v2156 = vmul.f32 %v2155, 1.442695
  %v2157 = vpow.pop %v2156
  %v2158 = vadd.f32 %v2157, 1.0
  %v2159 = vrcp.pop %v2158
  %v2160 = vmul.f32 %v2158, %v2159
  %v2161 = vsub.f32 1.0, %v2160
  %v2162 = vmul.f32 %v2159, %v2161
  %v2163 = vadd.f32 %v2159, %v2162
  %vm2164 = vweird.f32 %v2158
  %vm2165 = vweird.f32 %v2159
  %vm2166 = vmor %vm2164, %vm2165
  %v2167 = vsel %vm2166, %v2159, %v2163
  %v2168 = vand.u32 2147483647, %v2158
  %vm2169 = vcmp.eq.f32.partialorder %v2168, 8.507059e+37
  %v2170 = vand.u32 %v2158, 2147483648
  %v2171 = vor.u32 1.1754944e-38, %v2170
  %v2172 = vsel %vm2169, %v2171, %v2167
  %v2173 = vmul.f32 1.0, %v2172
  %v2174 = vxor.u32 %v2152, 2147483648
  %v2175 = vmul.f32 %v2174, 1.442695
  %v2176 = vpow.pop %v2175
  %v2177 = vadd.f32 %v2176, 1.0
  %v2178 = vrcp.pop %v2177
  %v2179 = vmul.f32 %v2177, %v2178
  %v2180 = vsub.f32 1.0, %v2179
  %v2181 = vmul.f32 %v2178, %v2180
  %v2182 = vadd.f32 %v2178, %v2181
  %vm2183 = vweird.f32 %v2177
  %vm2184 = vweird.f32 %v2178
  %vm2185 = vmor %vm2183, %vm2184
  %v2186 = vsel %vm2185, %v2178, %v2182
  %v2187 = vand.u32 2147483647, %v2177
  %vm2188 = vcmp.eq.f32.partialorder %v2187, 8.507059e+37
  %v2189 = vand.u32 %v2177, 2147483648
  %v2190 = vor.u32 1.1754944e-38, %v2189
  %v2191 = vsel %vm2188, %v2190, %v2186
  %v2192 = vmul.f32 1.0, %v2191
  %v2193 = vtanh.pop %v2153
  %v2194 = vxor.u32 %v2154, 2147483648
  %v2195 = vmul.f32 %v2194, 1.442695
  %v2196 = vpow.pop %v2195
  %v2197 = vadd.f32 %v2196, 1.0
  %v2198 = vrcp.pop %v2197
  %v2199 = vmul.f32 %v2197, %v2198
  %v2200 = vsub.f32 1.0, %v2199
  %v2201 = vmul.f32 %v2198, %v2200
  %v2202 = vadd.f32 %v2198, %v2201
  %vm2203 = vweird.f32 %v2197
  %vm2204 = vweird.f32 %v2198
  %vm2205 = vmor %vm2203, %vm2204
  %v2206 = vsel %vm2205, %v2198, %v2202
  %v2207 = vand.u32 2147483647, %v2197
  %vm2208 = vcmp.eq.f32.partialorder %v2207, 8.507059e+37
  %v2209 = vand.u32 %v2197, 2147483648
  %v2210 = vor.u32 1.1754944e-38, %v2209
  %v2211 = vsel %vm2208, %v2210, %v2206
  %v2212 = vmul.f32 1.0, %v2211
  %v2213 = vmul.f32 %v2192, %v2063
  %v2214 = vmul.f32 %v2173, %v2193
  %v2215 = vadd.f32 %v2213, %v2214
  %v2216 = vtanh.pop %v2215
  %v2217 = vmul.f32 %v2212, %v2216
  %s2218 = scalar_lea.vmem [#allocation3], 64
  %v2219 = vld [vmem:[%s2218] sm:$0xff]
  %v2220 = vld [vmem:[%s2218 + $0x8] sm:$0xff]
  %v2221 = vld [vmem:[%s2218 + $0x10] sm:$0xff]
  %v2222 = vld [vmem:[%s2218 + $0x18] sm:$0xff]
  %2223 = vmatpush.msra.mxu0 %v1911
  %2224 = vmatpush.msra.mxu0 %v1907
  %2225 = vmatpush.msra.mxu0 %v1903
  %2226 = vmatpush.msra.mxu0 %v1899
  %2227 = vmatpush.msra.mxu0 %v1895
  %2228 = vmatpush.msra.mxu0 %v1891
  %2229 = vmatpush.msra.mxu0 %v1887
  %2230 = vmatpush.msra.mxu0 %v1883
  %2231 = vmatpush.msra.mxu0 %v1879
  %2232 = vmatpush.msra.mxu0 %v1875
  %2233 = vmatpush.msra.mxu0 %v1871
  %2234 = vmatpush.msra.mxu0 %v1867
  %2235 = vmatpush.msra.mxu0 %v1863
  %2236 = vmatpush.msra.mxu0 %v1859
  %2237 = vmatpush.msra.mxu0 %v1855
  %2238 = vmatpush.msra.mxu0 %v1851
  %2239 = vmatmul.f32.gmra.mxu0 %v2217
  %v2240 = vpop.f32.mrf.mxu0
  %v2241 = vadd.f32 0.0, %v2240
  %2242 = vdwg.mxu0
  %2243 = vmatpush.msra.mxu0 %v1912
  %2244 = vmatpush.msra.mxu0 %v1908
  %2245 = vmatpush.msra.mxu0 %v1904
  %2246 = vmatpush.msra.mxu0 %v1900
  %2247 = vmatpush.msra.mxu0 %v1896
  %2248 = vmatpush.msra.mxu0 %v1892
  %2249 = vmatpush.msra.mxu0 %v1888
  %2250 = vmatpush.msra.mxu0 %v1884
  %2251 = vmatpush.msra.mxu0 %v1880
  %2252 = vmatpush.msra.mxu0 %v1876
  %2253 = vmatpush.msra.mxu0 %v1872
  %2254 = vmatpush.msra.mxu0 %v1868
  %2255 = vmatpush.msra.mxu0 %v1864
  %2256 = vmatpush.msra.mxu0 %v1860
  %2257 = vmatpush.msra.mxu0 %v1856
  %2258 = vmatpush.msra.mxu0 %v1852
  %2259 = vmatmul.f32.gmra.mxu0 %v2217
  %v2260 = vpop.f32.mrf.mxu0
  %v2261 = vadd.f32 0.0, %v2260
  %2262 = vdwg.mxu0
  %2263 = vmatpush.msra.mxu0 %v1913
  %2264 = vmatpush.msra.mxu0 %v1909
  %2265 = vmatpush.msra.mxu0 %v1905
  %2266 = vmatpush.msra.mxu0 %v1901
  %2267 = vmatpush.msra.mxu0 %v1897
  %2268 = vmatpush.msra.mxu0 %v1893
  %2269 = vmatpush.msra.mxu0 %v1889
  %2270 = vmatpush.msra.mxu0 %v1885
  %2271 = vmatpush.msra.mxu0 %v1881
  %2272 = vmatpush.msra.mxu0 %v1877
  %2273 = vmatpush.msra.mxu0 %v1873
  %2274 = vmatpush.msra.mxu0 %v1869
  %2275 = vmatpush.msra.mxu0 %v1865
  %2276 = vmatpush.msra.mxu0 %v1861
  %2277 = vmatpush.msra.mxu0 %v1857
  %2278 = vmatpush.msra.mxu0 %v1853
  %2279 = vmatmul.f32.gmra.mxu0 %v2217
  %v2280 = vpop.f32.mrf.mxu0
  %v2281 = vadd.f32 0.0, %v2280
  %2282 = vdwg.mxu0
  %2283 = vmatpush.msra.mxu0 %v1914
  %2284 = vmatpush.msra.mxu0 %v1910
  %2285 = vmatpush.msra.mxu0 %v1906
  %2286 = vmatpush.msra.mxu0 %v1902
  %2287 = vmatpush.msra.mxu0 %v1898
  %2288 = vmatpush.msra.mxu0 %v1894
  %2289 = vmatpush.msra.mxu0 %v1890
  %2290 = vmatpush.msra.mxu0 %v1886
  %2291 = vmatpush.msra.mxu0 %v1882
  %2292 = vmatpush.msra.mxu0 %v1878
  %2293 = vmatpush.msra.mxu0 %v1874
  %2294 = vmatpush.msra.mxu0 %v1870
  %2295 = vmatpush.msra.mxu0 %v1866
  %2296 = vmatpush.msra.mxu0 %v1862
  %2297 = vmatpush.msra.mxu0 %v1858
  %2298 = vmatpush.msra.mxu0 %v1854
  %2299 = vmatmul.f32.gmra.mxu0 %v2217
  %v2300 = vpop.f32.mrf.mxu0
  %v2301 = vadd.f32 0.0, %v2300
  %2302 = vdwg.mxu0
  %v2303 = vadd.f32 %v2219, %v2241
  %v2304 = vadd.f32 %v2220, %v2261
  %v2305 = vadd.f32 %v2221, %v2281
  %v2306 = vadd.f32 %v2222, %v2301
  %v2307 = vxor.u32 %v2303, 2147483648
  %v2308 = vmul.f32 %v2307, 1.442695
  %v2309 = vpow.pop %v2308
  %v2310 = vadd.f32 %v2309, 1.0
  %v2311 = vrcp.pop %v2310
  %v2312 = vmul.f32 %v2310, %v2311
  %v2313 = vsub.f32 1.0, %v2312
  %v2314 = vmul.f32 %v2311, %v2313
  %v2315 = vadd.f32 %v2311, %v2314
  %vm2316 = vweird.f32 %v2310
  %vm2317 = vweird.f32 %v2311
  %vm2318 = vmor %vm2316, %vm2317
  %v2319 = vsel %vm2318, %v2311, %v2315
  %v2320 = vand.u32 2147483647, %v2310
  %vm2321 = vcmp.eq.f32.partialorder %v2320, 8.507059e+37
  %v2322 = vand.u32 %v2310, 2147483648
  %v2323 = vor.u32 1.1754944e-38, %v2322
  %v2324 = vsel %vm2321, %v2323, %v2319
  %v2325 = vmul.f32 1.0, %v2324
  %v2326 = vxor.u32 %v2304, 2147483648
  %v2327 = vmul.f32 %v2326, 1.442695
  %v2328 = vpow.pop %v2327
  %v2329 = vadd.f32 %v2328, 1.0
  %v2330 = vrcp.pop %v2329
  %v2331 = vmul.f32 %v2329, %v2330
  %v2332 = vsub.f32 1.0, %v2331
  %v2333 = vmul.f32 %v2330, %v2332
  %v2334 = vadd.f32 %v2330, %v2333
  %vm2335 = vweird.f32 %v2329
  %vm2336 = vweird.f32 %v2330
  %vm2337 = vmor %vm2335, %vm2336
  %v2338 = vsel %vm2337, %v2330, %v2334
  %v2339 = vand.u32 2147483647, %v2329
  %vm2340 = vcmp.eq.f32.partialorder %v2339, 8.507059e+37
  %v2341 = vand.u32 %v2329, 2147483648
  %v2342 = vor.u32 1.1754944e-38, %v2341
  %v2343 = vsel %vm2340, %v2342, %v2338
  %v2344 = vmul.f32 1.0, %v2343
  %v2345 = vtanh.pop %v2305
  %v2346 = vxor.u32 %v2306, 2147483648
  %v2347 = vmul.f32 %v2346, 1.442695
  %v2348 = vpow.pop %v2347
  %v2349 = vadd.f32 %v2348, 1.0
  %v2350 = vrcp.pop %v2349
  %v2351 = vmul.f32 %v2349, %v2350
  %v2352 = vsub.f32 1.0, %v2351
  %v2353 = vmul.f32 %v2350, %v2352
  %v2354 = vadd.f32 %v2350, %v2353
  %vm2355 = vweird.f32 %v2349
  %vm2356 = vweird.f32 %v2350
  %vm2357 = vmor %vm2355, %vm2356
  %v2358 = vsel %vm2357, %v2350, %v2354
  %v2359 = vand.u32 2147483647, %v2349
  %vm2360 = vcmp.eq.f32.partialorder %v2359, 8.507059e+37
  %v2361 = vand.u32 %v2349, 2147483648
  %v2362 = vor.u32 1.1754944e-38, %v2361
  %v2363 = vsel %vm2360, %v2362, %v2358
  %v2364 = vmul.f32 1.0, %v2363
  %v2365 = vmul.f32 %v2344, %v2215
  %v2366 = vmul.f32 %v2325, %v2345
  %v2367 = vadd.f32 %v2365, %v2366
  %v2368 = vtanh.pop %v2367
  %v2369 = vmul.f32 %v2364, %v2368
  %s2370 = scalar_lea.vmem [#allocation3], 96
  %v2371 = vld [vmem:[%s2370] sm:$0xff]
  %v2372 = vld [vmem:[%s2370 + $0x8] sm:$0xff]
  %v2373 = vld [vmem:[%s2370 + $0x10] sm:$0xff]
  %v2374 = vld [vmem:[%s2370 + $0x18] sm:$0xff]
  %2375 = vmatpush.msra.mxu0 %v1911
  %2376 = vmatpush.msra.mxu0 %v1907
  %2377 = vmatpush.msra.mxu0 %v1903
  %2378 = vmatpush.msra.mxu0 %v1899
  %2379 = vmatpush.msra.mxu0 %v1895
  %2380 = vmatpush.msra.mxu0 %v1891
  %2381 = vmatpush.msra.mxu0 %v1887
  %2382 = vmatpush.msra.mxu0 %v1883
  %2383 = vmatpush.msra.mxu0 %v1879
  %2384 = vmatpush.msra.mxu0 %v1875
  %2385 = vmatpush.msra.mxu0 %v1871
  %2386 = vmatpush.msra.mxu0 %v1867
  %2387 = vmatpush.msra.mxu0 %v1863
  %2388 = vmatpush.msra.mxu0 %v1859
  %2389 = vmatpush.msra.mxu0 %v1855
  %2390 = vmatpush.msra.mxu0 %v1851
  %2391 = vmatmul.f32.gmra.mxu0 %v2369
  %v2392 = vpop.f32.mrf.mxu0
  %v2393 = vadd.f32 0.0, %v2392
  %2394 = vdwg.mxu0
  %2395 = vmatpush.msra.mxu0 %v1912
  %2396 = vmatpush.msra.mxu0 %v1908
  %2397 = vmatpush.msra.mxu0 %v1904
  %2398 = vmatpush.msra.mxu0 %v1900
  %2399 = vmatpush.msra.mxu0 %v1896
  %2400 = vmatpush.msra.mxu0 %v1892
  %2401 = vmatpush.msra.mxu0 %v1888
  %2402 = vmatpush.msra.mxu0 %v1884
  %2403 = vmatpush.msra.mxu0 %v1880
  %2404 = vmatpush.msra.mxu0 %v1876
  %2405 = vmatpush.msra.mxu0 %v1872
  %2406 = vmatpush.msra.mxu0 %v1868
  %2407 = vmatpush.msra.mxu0 %v1864
  %2408 = vmatpush.msra.mxu0 %v1860
  %2409 = vmatpush.msra.mxu0 %v1856
  %2410 = vmatpush.msra.mxu0 %v1852
  %2411 = vmatmul.f32.gmra.mxu0 %v2369
  %v2412 = vpop.f32.mrf.mxu0
  %v2413 = vadd.f32 0.0, %v2412
  %2414 = vdwg.mxu0
  %2415 = vmatpush.msra.mxu0 %v1913
  %2416 = vmatpush.msra.mxu0 %v1909
  %2417 = vmatpush.msra.mxu0 %v1905
  %2418 = vmatpush.msra.mxu0 %v1901
  %2419 = vmatpush.msra.mxu0 %v1897
  %2420 = vmatpush.msra.mxu0 %v1893
  %2421 = vmatpush.msra.mxu0 %v1889
  %2422 = vmatpush.msra.mxu0 %v1885
  %2423 = vmatpush.msra.mxu0 %v1881
  %2424 = vmatpush.msra.mxu0 %v1877
  %2425 = vmatpush.msra.mxu0 %v1873
  %2426 = vmatpush.msra.mxu0 %v1869
  %2427 = vmatpush.msra.mxu0 %v1865
  %2428 = vmatpush.msra.mxu0 %v1861
  %2429 = vmatpush.msra.mxu0 %v1857
  %2430 = vmatpush.msra.mxu0 %v1853
  %2431 = vmatmul.f32.gmra.mxu0 %v2369
  %v2432 = vpop.f32.mrf.mxu0
  %v2433 = vadd.f32 0.0, %v2432
  %2434 = vdwg.mxu0
  %2435 = vmatpush.msra.mxu0 %v1914
  %2436 = vmatpush.msra.mxu0 %v1910
  %2437 = vmatpush.msra.mxu0 %v1906
  %2438 = vmatpush.msra.mxu0 %v1902
  %2439 = vmatpush.msra.mxu0 %v1898
  %2440 = vmatpush.msra.mxu0 %v1894
  %2441 = vmatpush.msra.mxu0 %v1890
  %2442 = vmatpush.msra.mxu0 %v1886
  %2443 = vmatpush.msra.mxu0 %v1882
  %2444 = vmatpush.msra.mxu0 %v1878
  %2445 = vmatpush.msra.mxu0 %v1874
  %2446 = vmatpush.msra.mxu0 %v1870
  %2447 = vmatpush.msra.mxu0 %v1866
  %2448 = vmatpush.msra.mxu0 %v1862
  %2449 = vmatpush.msra.mxu0 %v1858
  %2450 = vmatpush.msra.mxu0 %v1854
  %2451 = vmatmul.f32.gmra.mxu0 %v2369
  %v2452 = vpop.f32.mrf.mxu0
  %v2453 = vadd.f32 0.0, %v2452
  %2454 = vdwg.mxu0
  %v2455 = vadd.f32 %v2371, %v2393
  %v2456 = vadd.f32 %v2372, %v2413
  %v2457 = vadd.f32 %v2373, %v2433
  %v2458 = vadd.f32 %v2374, %v2453
  %v2459 = vxor.u32 %v2455, 2147483648
  %v2460 = vmul.f32 %v2459, 1.442695
  %v2461 = vpow.pop %v2460
  %v2462 = vadd.f32 %v2461, 1.0
  %v2463 = vrcp.pop %v2462
  %v2464 = vmul.f32 %v2462, %v2463
  %v2465 = vsub.f32 1.0, %v2464
  %v2466 = vmul.f32 %v2463, %v2465
  %v2467 = vadd.f32 %v2463, %v2466
  %vm2468 = vweird.f32 %v2462
  %vm2469 = vweird.f32 %v2463
  %vm2470 = vmor %vm2468, %vm2469
  %v2471 = vsel %vm2470, %v2463, %v2467
  %v2472 = vand.u32 2147483647, %v2462
  %vm2473 = vcmp.eq.f32.partialorder %v2472, 8.507059e+37
  %v2474 = vand.u32 %v2462, 2147483648
  %v2475 = vor.u32 1.1754944e-38, %v2474
  %v2476 = vsel %vm2473, %v2475, %v2471
  %v2477 = vmul.f32 1.0, %v2476
  %v2478 = vxor.u32 %v2456, 2147483648
  %v2479 = vmul.f32 %v2478, 1.442695
  %v2480 = vpow.pop %v2479
  %v2481 = vadd.f32 %v2480, 1.0
  %v2482 = vrcp.pop %v2481
  %v2483 = vmul.f32 %v2481, %v2482
  %v2484 = vsub.f32 1.0, %v2483
  %v2485 = vmul.f32 %v2482, %v2484
  %v2486 = vadd.f32 %v2482, %v2485
  %vm2487 = vweird.f32 %v2481
  %vm2488 = vweird.f32 %v2482
  %vm2489 = vmor %vm2487, %vm2488
  %v2490 = vsel %vm2489, %v2482, %v2486
  %v2491 = vand.u32 2147483647, %v2481
  %vm2492 = vcmp.eq.f32.partialorder %v2491, 8.507059e+37
  %v2493 = vand.u32 %v2481, 2147483648
  %v2494 = vor.u32 1.1754944e-38, %v2493
  %v2495 = vsel %vm2492, %v2494, %v2490
  %v2496 = vmul.f32 1.0, %v2495
  %v2497 = vtanh.pop %v2457
  %v2498 = vxor.u32 %v2458, 2147483648
  %v2499 = vmul.f32 %v2498, 1.442695
  %v2500 = vpow.pop %v2499
  %v2501 = vadd.f32 %v2500, 1.0
  %v2502 = vrcp.pop %v2501
  %v2503 = vmul.f32 %v2501, %v2502
  %v2504 = vsub.f32 1.0, %v2503
  %v2505 = vmul.f32 %v2502, %v2504
  %v2506 = vadd.f32 %v2502, %v2505
  %vm2507 = vweird.f32 %v2501
  %vm2508 = vweird.f32 %v2502
  %vm2509 = vmor %vm2507, %vm2508
  %v2510 = vsel %vm2509, %v2502, %v2506
  %v2511 = vand.u32 2147483647, %v2501
  %vm2512 = vcmp.eq.f32.partialorder %v2511, 8.507059e+37
  %v2513 = vand.u32 %v2501, 2147483648
  %v2514 = vor.u32 1.1754944e-38, %v2513
  %v2515 = vsel %vm2512, %v2514, %v2510
  %v2516 = vmul.f32 1.0, %v2515
  %v2517 = vmul.f32 %v2496, %v2367
  %v2518 = vmul.f32 %v2477, %v2497
  %v2519 = vadd.f32 %v2517, %v2518
  %v2520 = vtanh.pop %v2519
  %v2521 = vmul.f32 %v2516, %v2520
  %s2522 = scalar_lea.vmem [#allocation3], 128
  %v2523 = vld [vmem:[%s2522] sm:$0xff]
  %v2524 = vld [vmem:[%s2522 + $0x8] sm:$0xff]
  %v2525 = vld [vmem:[%s2522 + $0x10] sm:$0xff]
  %v2526 = vld [vmem:[%s2522 + $0x18] sm:$0xff]
  %2527 = vmatpush.msra.mxu0 %v1911
  %2528 = vmatpush.msra.mxu0 %v1907
  %2529 = vmatpush.msra.mxu0 %v1903
  %2530 = vmatpush.msra.mxu0 %v1899
  %2531 = vmatpush.msra.mxu0 %v1895
  %2532 = vmatpush.msra.mxu0 %v1891
  %2533 = vmatpush.msra.mxu0 %v1887
  %2534 = vmatpush.msra.mxu0 %v1883
  %2535 = vmatpush.msra.mxu0 %v1879
  %2536 = vmatpush.msra.mxu0 %v1875
  %2537 = vmatpush.msra.mxu0 %v1871
  %2538 = vmatpush.msra.mxu0 %v1867
  %2539 = vmatpush.msra.mxu0 %v1863
  %2540 = vmatpush.msra.mxu0 %v1859
  %2541 = vmatpush.msra.mxu0 %v1855
  %2542 = vmatpush.msra.mxu0 %v1851
  %2543 = vmatmul.f32.gmra.mxu0 %v2521
  %v2544 = vpop.f32.mrf.mxu0
  %v2545 = vadd.f32 0.0, %v2544
  %2546 = vdwg.mxu0
  %2547 = vmatpush.msra.mxu0 %v1912
  %2548 = vmatpush.msra.mxu0 %v1908
  %2549 = vmatpush.msra.mxu0 %v1904
  %2550 = vmatpush.msra.mxu0 %v1900
  %2551 = vmatpush.msra.mxu0 %v1896
  %2552 = vmatpush.msra.mxu0 %v1892
  %2553 = vmatpush.msra.mxu0 %v1888
  %2554 = vmatpush.msra.mxu0 %v1884
  %2555 = vmatpush.msra.mxu0 %v1880
  %2556 = vmatpush.msra.mxu0 %v1876
  %2557 = vmatpush.msra.mxu0 %v1872
  %2558 = vmatpush.msra.mxu0 %v1868
  %2559 = vmatpush.msra.mxu0 %v1864
  %2560 = vmatpush.msra.mxu0 %v1860
  %2561 = vmatpush.msra.mxu0 %v1856
  %2562 = vmatpush.msra.mxu0 %v1852
  %2563 = vmatmul.f32.gmra.mxu0 %v2521
  %v2564 = vpop.f32.mrf.mxu0
  %v2565 = vadd.f32 0.0, %v2564
  %2566 = vdwg.mxu0
  %2567 = vmatpush.msra.mxu0 %v1913
  %2568 = vmatpush.msra.mxu0 %v1909
  %2569 = vmatpush.msra.mxu0 %v1905
  %2570 = vmatpush.msra.mxu0 %v1901
  %2571 = vmatpush.msra.mxu0 %v1897
  %2572 = vmatpush.msra.mxu0 %v1893
  %2573 = vmatpush.msra.mxu0 %v1889
  %2574 = vmatpush.msra.mxu0 %v1885
  %2575 = vmatpush.msra.mxu0 %v1881
  %2576 = vmatpush.msra.mxu0 %v1877
  %2577 = vmatpush.msra.mxu0 %v1873
  %2578 = vmatpush.msra.mxu0 %v1869
  %2579 = vmatpush.msra.mxu0 %v1865
  %2580 = vmatpush.msra.mxu0 %v1861
  %2581 = vmatpush.msra.mxu0 %v1857
  %2582 = vmatpush.msra.mxu0 %v1853
  %2583 = vmatmul.f32.gmra.mxu0 %v2521
  %v2584 = vpop.f32.mrf.mxu0
  %v2585 = vadd.f32 0.0, %v2584
  %2586 = vdwg.mxu0
  %2587 = vmatpush.msra.mxu0 %v1914
  %2588 = vmatpush.msra.mxu0 %v1910
  %2589 = vmatpush.msra.mxu0 %v1906
  %2590 = vmatpush.msra.mxu0 %v1902
  %2591 = vmatpush.msra.mxu0 %v1898
  %2592 = vmatpush.msra.mxu0 %v1894
  %2593 = vmatpush.msra.mxu0 %v1890
  %2594 = vmatpush.msra.mxu0 %v1886
  %2595 = vmatpush.msra.mxu0 %v1882
  %2596 = vmatpush.msra.mxu0 %v1878
  %2597 = vmatpush.msra.mxu0 %v1874
  %2598 = vmatpush.msra.mxu0 %v1870
  %2599 = vmatpush.msra.mxu0 %v1866
  %2600 = vmatpush.msra.mxu0 %v1862
  %2601 = vmatpush.msra.mxu0 %v1858
  %2602 = vmatpush.msra.mxu0 %v1854
  %2603 = vmatmul.f32.gmra.mxu0 %v2521
  %v2604 = vpop.f32.mrf.mxu0
  %v2605 = vadd.f32 0.0, %v2604
  %2606 = vdwg.mxu0
  %v2607 = vadd.f32 %v2523, %v2545
  %v2608 = vadd.f32 %v2524, %v2565
  %v2609 = vadd.f32 %v2525, %v2585
  %v2610 = vadd.f32 %v2526, %v2605
  %v2611 = vxor.u32 %v2607, 2147483648
  %v2612 = vmul.f32 %v2611, 1.442695
  %v2613 = vpow.pop %v2612
  %v2614 = vadd.f32 %v2613, 1.0
  %v2615 = vrcp.pop %v2614
  %v2616 = vmul.f32 %v2614, %v2615
  %v2617 = vsub.f32 1.0, %v2616
  %v2618 = vmul.f32 %v2615, %v2617
  %v2619 = vadd.f32 %v2615, %v2618
  %vm2620 = vweird.f32 %v2614
  %vm2621 = vweird.f32 %v2615
  %vm2622 = vmor %vm2620, %vm2621
  %v2623 = vsel %vm2622, %v2615, %v2619
  %v2624 = vand.u32 2147483647, %v2614
  %vm2625 = vcmp.eq.f32.partialorder %v2624, 8.507059e+37
  %v2626 = vand.u32 %v2614, 2147483648
  %v2627 = vor.u32 1.1754944e-38, %v2626
  %v2628 = vsel %vm2625, %v2627, %v2623
  %v2629 = vmul.f32 1.0, %v2628
  %v2630 = vxor.u32 %v2608, 2147483648
  %v2631 = vmul.f32 %v2630, 1.442695
  %v2632 = vpow.pop %v2631
  %v2633 = vadd.f32 %v2632, 1.0
  %v2634 = vrcp.pop %v2633
  %v2635 = vmul.f32 %v2633, %v2634
  %v2636 = vsub.f32 1.0, %v2635
  %v2637 = vmul.f32 %v2634, %v2636
  %v2638 = vadd.f32 %v2634, %v2637
  %vm2639 = vweird.f32 %v2633
  %vm2640 = vweird.f32 %v2634
  %vm2641 = vmor %vm2639, %vm2640
  %v2642 = vsel %vm2641, %v2634, %v2638
  %v2643 = vand.u32 2147483647, %v2633
  %vm2644 = vcmp.eq.f32.partialorder %v2643, 8.507059e+37
  %v2645 = vand.u32 %v2633, 2147483648
  %v2646 = vor.u32 1.1754944e-38, %v2645
  %v2647 = vsel %vm2644, %v2646, %v2642
  %v2648 = vmul.f32 1.0, %v2647
  %v2649 = vtanh.pop %v2609
  %v2650 = vxor.u32 %v2610, 2147483648
  %v2651 = vmul.f32 %v2650, 1.442695
  %v2652 = vpow.pop %v2651
  %v2653 = vadd.f32 %v2652, 1.0
  %v2654 = vrcp.pop %v2653
  %v2655 = vmul.f32 %v2653, %v2654
  %v2656 = vsub.f32 1.0, %v2655
  %v2657 = vmul.f32 %v2654, %v2656
  %v2658 = vadd.f32 %v2654, %v2657
  %vm2659 = vweird.f32 %v2653
  %vm2660 = vweird.f32 %v2654
  %vm2661 = vmor %vm2659, %vm2660
  %v2662 = vsel %vm2661, %v2654, %v2658
  %v2663 = vand.u32 2147483647, %v2653
  %vm2664 = vcmp.eq.f32.partialorder %v2663, 8.507059e+37
  %v2665 = vand.u32 %v2653, 2147483648
  %v2666 = vor.u32 1.1754944e-38, %v2665
  %v2667 = vsel %vm2664, %v2666, %v2662
  %v2668 = vmul.f32 1.0, %v2667
  %v2669 = vmul.f32 %v2648, %v2519
  %v2670 = vmul.f32 %v2629, %v2649
  %v2671 = vadd.f32 %v2669, %v2670
  %v2672 = vtanh.pop %v2671
  %v2673 = vmul.f32 %v2668, %v2672
  %s2674 = scalar_lea.vmem [#allocation3], 160
  %v2675 = vld [vmem:[%s2674] sm:$0xff]
  %v2676 = vld [vmem:[%s2674 + $0x8] sm:$0xff]
  %v2677 = vld [vmem:[%s2674 + $0x10] sm:$0xff]
  %v2678 = vld [vmem:[%s2674 + $0x18] sm:$0xff]
  %2679 = vmatpush.msra.mxu0 %v1911
  %2680 = vmatpush.msra.mxu0 %v1907
  %2681 = vmatpush.msra.mxu0 %v1903
  %2682 = vmatpush.msra.mxu0 %v1899
  %2683 = vmatpush.msra.mxu0 %v1895
  %2684 = vmatpush.msra.mxu0 %v1891
  %2685 = vmatpush.msra.mxu0 %v1887
  %2686 = vmatpush.msra.mxu0 %v1883
  %2687 = vmatpush.msra.mxu0 %v1879
  %2688 = vmatpush.msra.mxu0 %v1875
  %2689 = vmatpush.msra.mxu0 %v1871
  %2690 = vmatpush.msra.mxu0 %v1867
  %2691 = vmatpush.msra.mxu0 %v1863
  %2692 = vmatpush.msra.mxu0 %v1859
  %2693 = vmatpush.msra.mxu0 %v1855
  %2694 = vmatpush.msra.mxu0 %v1851
  %2695 = vmatmul.f32.gmra.mxu0 %v2673
  %v2696 = vpop.f32.mrf.mxu0
  %v2697 = vadd.f32 0.0, %v2696
  %2698 = vdwg.mxu0
  %2699 = vmatpush.msra.mxu0 %v1912
  %2700 = vmatpush.msra.mxu0 %v1908
  %2701 = vmatpush.msra.mxu0 %v1904
  %2702 = vmatpush.msra.mxu0 %v1900
  %2703 = vmatpush.msra.mxu0 %v1896
  %2704 = vmatpush.msra.mxu0 %v1892
  %2705 = vmatpush.msra.mxu0 %v1888
  %2706 = vmatpush.msra.mxu0 %v1884
  %2707 = vmatpush.msra.mxu0 %v1880
  %2708 = vmatpush.msra.mxu0 %v1876
  %2709 = vmatpush.msra.mxu0 %v1872
  %2710 = vmatpush.msra.mxu0 %v1868
  %2711 = vmatpush.msra.mxu0 %v1864
  %2712 = vmatpush.msra.mxu0 %v1860
  %2713 = vmatpush.msra.mxu0 %v1856
  %2714 = vmatpush.msra.mxu0 %v1852
  %2715 = vmatmul.f32.gmra.mxu0 %v2673
  %v2716 = vpop.f32.mrf.mxu0
  %v2717 = vadd.f32 0.0, %v2716
  %2718 = vdwg.mxu0
  %2719 = vmatpush.msra.mxu0 %v1913
  %2720 = vmatpush.msra.mxu0 %v1909
  %2721 = vmatpush.msra.mxu0 %v1905
  %2722 = vmatpush.msra.mxu0 %v1901
  %2723 = vmatpush.msra.mxu0 %v1897
  %2724 = vmatpush.msra.mxu0 %v1893
  %2725 = vmatpush.msra.mxu0 %v1889
  %2726 = vmatpush.msra.mxu0 %v1885
  %2727 = vmatpush.msra.mxu0 %v1881
  %2728 = vmatpush.msra.mxu0 %v1877
  %2729 = vmatpush.msra.mxu0 %v1873
  %2730 = vmatpush.msra.mxu0 %v1869
  %2731 = vmatpush.msra.mxu0 %v1865
  %2732 = vmatpush.msra.mxu0 %v1861
  %2733 = vmatpush.msra.mxu0 %v1857
  %2734 = vmatpush.msra.mxu0 %v1853
  %2735 = vmatmul.f32.gmra.mxu0 %v2673
  %v2736 = vpop.f32.mrf.mxu0
  %v2737 = vadd.f32 0.0, %v2736
  %2738 = vdwg.mxu0
  %2739 = vmatpush.msra.mxu0 %v1914
  %2740 = vmatpush.msra.mxu0 %v1910
  %2741 = vmatpush.msra.mxu0 %v1906
  %2742 = vmatpush.msra.mxu0 %v1902
  %2743 = vmatpush.msra.mxu0 %v1898
  %2744 = vmatpush.msra.mxu0 %v1894
  %2745 = vmatpush.msra.mxu0 %v1890
  %2746 = vmatpush.msra.mxu0 %v1886
  %2747 = vmatpush.msra.mxu0 %v1882
  %2748 = vmatpush.msra.mxu0 %v1878
  %2749 = vmatpush.msra.mxu0 %v1874
  %2750 = vmatpush.msra.mxu0 %v1870
  %2751 = vmatpush.msra.mxu0 %v1866
  %2752 = vmatpush.msra.mxu0 %v1862
  %2753 = vmatpush.msra.mxu0 %v1858
  %2754 = vmatpush.msra.mxu0 %v1854
  %2755 = vmatmul.f32.gmra.mxu0 %v2673
  %v2756 = vpop.f32.mrf.mxu0
  %v2757 = vadd.f32 0.0, %v2756
  %2758 = vdwg.mxu0
  %v2759 = vadd.f32 %v2675, %v2697
  %v2760 = vadd.f32 %v2676, %v2717
  %v2761 = vadd.f32 %v2677, %v2737
  %v2762 = vadd.f32 %v2678, %v2757
  %v2763 = vxor.u32 %v2759, 2147483648
  %v2764 = vmul.f32 %v2763, 1.442695
  %v2765 = vpow.pop %v2764
  %v2766 = vadd.f32 %v2765, 1.0
  %v2767 = vrcp.pop %v2766
  %v2768 = vmul.f32 %v2766, %v2767
  %v2769 = vsub.f32 1.0, %v2768
  %v2770 = vmul.f32 %v2767, %v2769
  %v2771 = vadd.f32 %v2767, %v2770
  %vm2772 = vweird.f32 %v2766
  %vm2773 = vweird.f32 %v2767
  %vm2774 = vmor %vm2772, %vm2773
  %v2775 = vsel %vm2774, %v2767, %v2771
  %v2776 = vand.u32 2147483647, %v2766
  %vm2777 = vcmp.eq.f32.partialorder %v2776, 8.507059e+37
  %v2778 = vand.u32 %v2766, 2147483648
  %v2779 = vor.u32 1.1754944e-38, %v2778
  %v2780 = vsel %vm2777, %v2779, %v2775
  %v2781 = vmul.f32 1.0, %v2780
  %v2782 = vxor.u32 %v2760, 2147483648
  %v2783 = vmul.f32 %v2782, 1.442695
  %v2784 = vpow.pop %v2783
  %v2785 = vadd.f32 %v2784, 1.0
  %v2786 = vrcp.pop %v2785
  %v2787 = vmul.f32 %v2785, %v2786
  %v2788 = vsub.f32 1.0, %v2787
  %v2789 = vmul.f32 %v2786, %v2788
  %v2790 = vadd.f32 %v2786, %v2789
  %vm2791 = vweird.f32 %v2785
  %vm2792 = vweird.f32 %v2786
  %vm2793 = vmor %vm2791, %vm2792
  %v2794 = vsel %vm2793, %v2786, %v2790
  %v2795 = vand.u32 2147483647, %v2785
  %vm2796 = vcmp.eq.f32.partialorder %v2795, 8.507059e+37
  %v2797 = vand.u32 %v2785, 2147483648
  %v2798 = vor.u32 1.1754944e-38, %v2797
  %v2799 = vsel %vm2796, %v2798, %v2794
  %v2800 = vmul.f32 1.0, %v2799
  %v2801 = vtanh.pop %v2761
  %v2802 = vxor.u32 %v2762, 2147483648
  %v2803 = vmul.f32 %v2802, 1.442695
  %v2804 = vpow.pop %v2803
  %v2805 = vadd.f32 %v2804, 1.0
  %v2806 = vrcp.pop %v2805
  %v2807 = vmul.f32 %v2805, %v2806
  %v2808 = vsub.f32 1.0, %v2807
  %v2809 = vmul.f32 %v2806, %v2808
  %v2810 = vadd.f32 %v2806, %v2809
  %vm2811 = vweird.f32 %v2805
  %vm2812 = vweird.f32 %v2806
  %vm2813 = vmor %vm2811, %vm2812
  %v2814 = vsel %vm2813, %v2806, %v2810
  %v2815 = vand.u32 2147483647, %v2805
  %vm2816 = vcmp.eq.f32.partialorder %v2815, 8.507059e+37
  %v2817 = vand.u32 %v2805, 2147483648
  %v2818 = vor.u32 1.1754944e-38, %v2817
  %v2819 = vsel %vm2816, %v2818, %v2814
  %v2820 = vmul.f32 1.0, %v2819
  %v2821 = vmul.f32 %v2800, %v2671
  %v2822 = vmul.f32 %v2781, %v2801
  %v2823 = vadd.f32 %v2821, %v2822
  %v2824 = vtanh.pop %v2823
  %v2825 = vmul.f32 %v2820, %v2824
  %s2826 = scalar_lea.vmem [#allocation3], 192
  %v2827 = vld [vmem:[%s2826] sm:$0xff]
  %v2828 = vld [vmem:[%s2826 + $0x8] sm:$0xff]
  %v2829 = vld [vmem:[%s2826 + $0x10] sm:$0xff]
  %v2830 = vld [vmem:[%s2826 + $0x18] sm:$0xff]
  %2831 = vmatpush.msra.mxu0 %v1911
  %2832 = vmatpush.msra.mxu0 %v1907
  %2833 = vmatpush.msra.mxu0 %v1903
  %2834 = vmatpush.msra.mxu0 %v1899
  %2835 = vmatpush.msra.mxu0 %v1895
  %2836 = vmatpush.msra.mxu0 %v1891
  %2837 = vmatpush.msra.mxu0 %v1887
  %2838 = vmatpush.msra.mxu0 %v1883
  %2839 = vmatpush.msra.mxu0 %v1879
  %2840 = vmatpush.msra.mxu0 %v1875
  %2841 = vmatpush.msra.mxu0 %v1871
  %2842 = vmatpush.msra.mxu0 %v1867
  %2843 = vmatpush.msra.mxu0 %v1863
  %2844 = vmatpush.msra.mxu0 %v1859
  %2845 = vmatpush.msra.mxu0 %v1855
  %2846 = vmatpush.msra.mxu0 %v1851
  %2847 = vmatmul.f32.gmra.mxu0 %v2825
  %v2848 = vpop.f32.mrf.mxu0
  %v2849 = vadd.f32 0.0, %v2848
  %2850 = vdwg.mxu0
  %2851 = vmatpush.msra.mxu0 %v1912
  %2852 = vmatpush.msra.mxu0 %v1908
  %2853 = vmatpush.msra.mxu0 %v1904
  %2854 = vmatpush.msra.mxu0 %v1900
  %2855 = vmatpush.msra.mxu0 %v1896
  %2856 = vmatpush.msra.mxu0 %v1892
  %2857 = vmatpush.msra.mxu0 %v1888
  %2858 = vmatpush.msra.mxu0 %v1884
  %2859 = vmatpush.msra.mxu0 %v1880
  %2860 = vmatpush.msra.mxu0 %v1876
  %2861 = vmatpush.msra.mxu0 %v1872
  %2862 = vmatpush.msra.mxu0 %v1868
  %2863 = vmatpush.msra.mxu0 %v1864
  %2864 = vmatpush.msra.mxu0 %v1860
  %2865 = vmatpush.msra.mxu0 %v1856
  %2866 = vmatpush.msra.mxu0 %v1852
  %2867 = vmatmul.f32.gmra.mxu0 %v2825
  %v2868 = vpop.f32.mrf.mxu0
  %v2869 = vadd.f32 0.0, %v2868
  %2870 = vdwg.mxu0
  %2871 = vmatpush.msra.mxu0 %v1913
  %2872 = vmatpush.msra.mxu0 %v1909
  %2873 = vmatpush.msra.mxu0 %v1905
  %2874 = vmatpush.msra.mxu0 %v1901
  %2875 = vmatpush.msra.mxu0 %v1897
  %2876 = vmatpush.msra.mxu0 %v1893
  %2877 = vmatpush.msra.mxu0 %v1889
  %2878 = vmatpush.msra.mxu0 %v1885
  %2879 = vmatpush.msra.mxu0 %v1881
  %2880 = vmatpush.msra.mxu0 %v1877
  %2881 = vmatpush.msra.mxu0 %v1873
  %2882 = vmatpush.msra.mxu0 %v1869
  %2883 = vmatpush.msra.mxu0 %v1865
  %2884 = vmatpush.msra.mxu0 %v1861
  %2885 = vmatpush.msra.mxu0 %v1857
  %2886 = vmatpush.msra.mxu0 %v1853
  %2887 = vmatmul.f32.gmra.mxu0 %v2825
  %v2888 = vpop.f32.mrf.mxu0
  %v2889 = vadd.f32 0.0, %v2888
  %2890 = vdwg.mxu0
  %2891 = vmatpush.msra.mxu0 %v1914
  %2892 = vmatpush.msra.mxu0 %v1910
  %2893 = vmatpush.msra.mxu0 %v1906
  %2894 = vmatpush.msra.mxu0 %v1902
  %2895 = vmatpush.msra.mxu0 %v1898
  %2896 = vmatpush.msra.mxu0 %v1894
  %2897 = vmatpush.msra.mxu0 %v1890
  %2898 = vmatpush.msra.mxu0 %v1886
  %2899 = vmatpush.msra.mxu0 %v1882
  %2900 = vmatpush.msra.mxu0 %v1878
  %2901 = vmatpush.msra.mxu0 %v1874
  %2902 = vmatpush.msra.mxu0 %v1870
  %2903 = vmatpush.msra.mxu0 %v1866
  %2904 = vmatpush.msra.mxu0 %v1862
  %2905 = vmatpush.msra.mxu0 %v1858
  %2906 = vmatpush.msra.mxu0 %v1854
  %2907 = vmatmul.f32.gmra.mxu0 %v2825
  %v2908 = vpop.f32.mrf.mxu0
  %v2909 = vadd.f32 0.0, %v2908
  %2910 = vdwg.mxu0
  %v2911 = vadd.f32 %v2827, %v2849
  %v2912 = vadd.f32 %v2828, %v2869
  %v2913 = vadd.f32 %v2829, %v2889
  %v2914 = vadd.f32 %v2830, %v2909
  %v2915 = vxor.u32 %v2911, 2147483648
  %v2916 = vmul.f32 %v2915, 1.442695
  %v2917 = vpow.pop %v2916
  %v2918 = vadd.f32 %v2917, 1.0
  %v2919 = vrcp.pop %v2918
  %v2920 = vmul.f32 %v2918, %v2919
  %v2921 = vsub.f32 1.0, %v2920
  %v2922 = vmul.f32 %v2919, %v2921
  %v2923 = vadd.f32 %v2919, %v2922
  %vm2924 = vweird.f32 %v2918
  %vm2925 = vweird.f32 %v2919
  %vm2926 = vmor %vm2924, %vm2925
  %v2927 = vsel %vm2926, %v2919, %v2923
  %v2928 = vand.u32 2147483647, %v2918
  %vm2929 = vcmp.eq.f32.partialorder %v2928, 8.507059e+37
  %v2930 = vand.u32 %v2918, 2147483648
  %v2931 = vor.u32 1.1754944e-38, %v2930
  %v2932 = vsel %vm2929, %v2931, %v2927
  %v2933 = vmul.f32 1.0, %v2932
  %v2934 = vxor.u32 %v2912, 2147483648
  %v2935 = vmul.f32 %v2934, 1.442695
  %v2936 = vpow.pop %v2935
  %v2937 = vadd.f32 %v2936, 1.0
  %v2938 = vrcp.pop %v2937
  %v2939 = vmul.f32 %v2937, %v2938
  %v2940 = vsub.f32 1.0, %v2939
  %v2941 = vmul.f32 %v2938, %v2940
  %v2942 = vadd.f32 %v2938, %v2941
  %vm2943 = vweird.f32 %v2937
  %vm2944 = vweird.f32 %v2938
  %vm2945 = vmor %vm2943, %vm2944
  %v2946 = vsel %vm2945, %v2938, %v2942
  %v2947 = vand.u32 2147483647, %v2937
  %vm2948 = vcmp.eq.f32.partialorder %v2947, 8.507059e+37
  %v2949 = vand.u32 %v2937, 2147483648
  %v2950 = vor.u32 1.1754944e-38, %v2949
  %v2951 = vsel %vm2948, %v2950, %v2946
  %v2952 = vmul.f32 1.0, %v2951
  %v2953 = vtanh.pop %v2913
  %v2954 = vxor.u32 %v2914, 2147483648
  %v2955 = vmul.f32 %v2954, 1.442695
  %v2956 = vpow.pop %v2955
  %v2957 = vadd.f32 %v2956, 1.0
  %v2958 = vrcp.pop %v2957
  %v2959 = vmul.f32 %v2957, %v2958
  %v2960 = vsub.f32 1.0, %v2959
  %v2961 = vmul.f32 %v2958, %v2960
  %v2962 = vadd.f32 %v2958, %v2961
  %vm2963 = vweird.f32 %v2957
  %vm2964 = vweird.f32 %v2958
  %vm2965 = vmor %vm2963, %vm2964
  %v2966 = vsel %vm2965, %v2958, %v2962
  %v2967 = vand.u32 2147483647, %v2957
  %vm2968 = vcmp.eq.f32.partialorder %v2967, 8.507059e+37
  %v2969 = vand.u32 %v2957, 2147483648
  %v2970 = vor.u32 1.1754944e-38, %v2969
  %v2971 = vsel %vm2968, %v2970, %v2966
  %v2972 = vmul.f32 1.0, %v2971
  %v2973 = vmul.f32 %v2952, %v2823
  %v2974 = vmul.f32 %v2933, %v2953
  %v2975 = vadd.f32 %v2973, %v2974
  %v2976 = vtanh.pop %v2975
  %v2977 = vmul.f32 %v2972, %v2976
  %s2978 = scalar_lea.vmem [#allocation3], 224
  %v2979 = vld [vmem:[%s2978] sm:$0xff]
  %v2980 = vld [vmem:[%s2978 + $0x8] sm:$0xff]
  %v2981 = vld [vmem:[%s2978 + $0x10] sm:$0xff]
  %v2982 = vld [vmem:[%s2978 + $0x18] sm:$0xff]
  %2983 = vmatpush.msra.mxu0 %v1911
  %2984 = vmatpush.msra.mxu0 %v1907
  %2985 = vmatpush.msra.mxu0 %v1903
  %2986 = vmatpush.msra.mxu0 %v1899
  %2987 = vmatpush.msra.mxu0 %v1895
  %2988 = vmatpush.msra.mxu0 %v1891
  %2989 = vmatpush.msra.mxu0 %v1887
  %2990 = vmatpush.msra.mxu0 %v1883
  %2991 = vmatpush.msra.mxu0 %v1879
  %2992 = vmatpush.msra.mxu0 %v1875
  %2993 = vmatpush.msra.mxu0 %v1871
  %2994 = vmatpush.msra.mxu0 %v1867
  %2995 = vmatpush.msra.mxu0 %v1863
  %2996 = vmatpush.msra.mxu0 %v1859
  %2997 = vmatpush.msra.mxu0 %v1855
  %2998 = vmatpush.msra.mxu0 %v1851
  %2999 = vmatmul.f32.gmra.mxu0 %v2977
  %v3000 = vpop.f32.mrf.mxu0
  %v3001 = vadd.f32 0.0, %v3000
  %3002 = vdwg.mxu0
  %3003 = vmatpush.msra.mxu0 %v1912
  %3004 = vmatpush.msra.mxu0 %v1908
  %3005 = vmatpush.msra.mxu0 %v1904
  %3006 = vmatpush.msra.mxu0 %v1900
  %3007 = vmatpush.msra.mxu0 %v1896
  %3008 = vmatpush.msra.mxu0 %v1892
  %3009 = vmatpush.msra.mxu0 %v1888
  %3010 = vmatpush.msra.mxu0 %v1884
  %3011 = vmatpush.msra.mxu0 %v1880
  %3012 = vmatpush.msra.mxu0 %v1876
  %3013 = vmatpush.msra.mxu0 %v1872
  %3014 = vmatpush.msra.mxu0 %v1868
  %3015 = vmatpush.msra.mxu0 %v1864
  %3016 = vmatpush.msra.mxu0 %v1860
  %3017 = vmatpush.msra.mxu0 %v1856
  %3018 = vmatpush.msra.mxu0 %v1852
  %3019 = vmatmul.f32.gmra.mxu0 %v2977
  %v3020 = vpop.f32.mrf.mxu0
  %v3021 = vadd.f32 0.0, %v3020
  %3022 = vdwg.mxu0
  %3023 = vmatpush.msra.mxu0 %v1913
  %3024 = vmatpush.msra.mxu0 %v1909
  %3025 = vmatpush.msra.mxu0 %v1905
  %3026 = vmatpush.msra.mxu0 %v1901
  %3027 = vmatpush.msra.mxu0 %v1897
  %3028 = vmatpush.msra.mxu0 %v1893
  %3029 = vmatpush.msra.mxu0 %v1889
  %3030 = vmatpush.msra.mxu0 %v1885
  %3031 = vmatpush.msra.mxu0 %v1881
  %3032 = vmatpush.msra.mxu0 %v1877
  %3033 = vmatpush.msra.mxu0 %v1873
  %3034 = vmatpush.msra.mxu0 %v1869
  %3035 = vmatpush.msra.mxu0 %v1865
  %3036 = vmatpush.msra.mxu0 %v1861
  %3037 = vmatpush.msra.mxu0 %v1857
  %3038 = vmatpush.msra.mxu0 %v1853
  %3039 = vmatmul.f32.gmra.mxu0 %v2977
  %v3040 = vpop.f32.mrf.mxu0
  %v3041 = vadd.f32 0.0, %v3040
  %3042 = vdwg.mxu0
  %3043 = vmatpush.msra.mxu0 %v1914
  %3044 = vmatpush.msra.mxu0 %v1910
  %3045 = vmatpush.msra.mxu0 %v1906
  %3046 = vmatpush.msra.mxu0 %v1902
  %3047 = vmatpush.msra.mxu0 %v1898
  %3048 = vmatpush.msra.mxu0 %v1894
  %3049 = vmatpush.msra.mxu0 %v1890
  %3050 = vmatpush.msra.mxu0 %v1886
  %3051 = vmatpush.msra.mxu0 %v1882
  %3052 = vmatpush.msra.mxu0 %v1878
  %3053 = vmatpush.msra.mxu0 %v1874
  %3054 = vmatpush.msra.mxu0 %v1870
  %3055 = vmatpush.msra.mxu0 %v1866
  %3056 = vmatpush.msra.mxu0 %v1862
  %3057 = vmatpush.msra.mxu0 %v1858
  %3058 = vmatpush.msra.mxu0 %v1854
  %3059 = vmatmul.f32.gmra.mxu0 %v2977
  %v3060 = vpop.f32.mrf.mxu0
  %v3061 = vadd.f32 0.0, %v3060
  %3062 = vdwg.mxu0
  %v3063 = vadd.f32 %v2979, %v3001
  %v3064 = vadd.f32 %v2980, %v3021
  %v3065 = vadd.f32 %v2981, %v3041
  %v3066 = vadd.f32 %v2982, %v3061
  %v3067 = vxor.u32 %v3063, 2147483648
  %v3068 = vmul.f32 %v3067, 1.442695
  %v3069 = vpow.pop %v3068
  %v3070 = vadd.f32 %v3069, 1.0
  %v3071 = vrcp.pop %v3070
  %v3072 = vmul.f32 %v3070, %v3071
  %v3073 = vsub.f32 1.0, %v3072
  %v3074 = vmul.f32 %v3071, %v3073
  %v3075 = vadd.f32 %v3071, %v3074
  %vm3076 = vweird.f32 %v3070
  %vm3077 = vweird.f32 %v3071
  %vm3078 = vmor %vm3076, %vm3077
  %v3079 = vsel %vm3078, %v3071, %v3075
  %v3080 = vand.u32 2147483647, %v3070
  %vm3081 = vcmp.eq.f32.partialorder %v3080, 8.507059e+37
  %v3082 = vand.u32 %v3070, 2147483648
  %v3083 = vor.u32 1.1754944e-38, %v3082
  %v3084 = vsel %vm3081, %v3083, %v3079
  %v3085 = vmul.f32 1.0, %v3084
  %v3086 = vxor.u32 %v3064, 2147483648
  %v3087 = vmul.f32 %v3086, 1.442695
  %v3088 = vpow.pop %v3087
  %v3089 = vadd.f32 %v3088, 1.0
  %v3090 = vrcp.pop %v3089
  %v3091 = vmul.f32 %v3089, %v3090
  %v3092 = vsub.f32 1.0, %v3091
  %v3093 = vmul.f32 %v3090, %v3092
  %v3094 = vadd.f32 %v3090, %v3093
  %vm3095 = vweird.f32 %v3089
  %vm3096 = vweird.f32 %v3090
  %vm3097 = vmor %vm3095, %vm3096
  %v3098 = vsel %vm3097, %v3090, %v3094
  %v3099 = vand.u32 2147483647, %v3089
  %vm3100 = vcmp.eq.f32.partialorder %v3099, 8.507059e+37
  %v3101 = vand.u32 %v3089, 2147483648
  %v3102 = vor.u32 1.1754944e-38, %v3101
  %v3103 = vsel %vm3100, %v3102, %v3098
  %v3104 = vmul.f32 1.0, %v3103
  %v3105 = vtanh.pop %v3065
  %v3106 = vxor.u32 %v3066, 2147483648
  %v3107 = vmul.f32 %v3106, 1.442695
  %v3108 = vpow.pop %v3107
  %v3109 = vadd.f32 %v3108, 1.0
  %v3110 = vrcp.pop %v3109
  %v3111 = vmul.f32 %v3109, %v3110
  %v3112 = vsub.f32 1.0, %v3111
  %v3113 = vmul.f32 %v3110, %v3112
  %v3114 = vadd.f32 %v3110, %v3113
  %vm3115 = vweird.f32 %v3109
  %vm3116 = vweird.f32 %v3110
  %vm3117 = vmor %vm3115, %vm3116
  %v3118 = vsel %vm3117, %v3110, %v3114
  %v3119 = vand.u32 2147483647, %v3109
  %vm3120 = vcmp.eq.f32.partialorder %v3119, 8.507059e+37
  %v3121 = vand.u32 %v3109, 2147483648
  %v3122 = vor.u32 1.1754944e-38, %v3121
  %v3123 = vsel %vm3120, %v3122, %v3118
  %v3124 = vmul.f32 1.0, %v3123
  %v3125 = vmul.f32 %v3104, %v2975
  %v3126 = vmul.f32 %v3085, %v3105
  %v3127 = vadd.f32 %v3125, %v3126
  %v3128 = vtanh.pop %v3127
  %v3129 = vmul.f32 %v3124, %v3128
  %v3130 = vld [vmem:[%s7] sm:$0xff]
  %v3131 = vld [vmem:[%s7 + $0x8] sm:$0xff]
  %v3132 = vld [vmem:[%s7 + $0x10] sm:$0xff]
  %v3133 = vld [vmem:[%s7 + $0x18] sm:$0xff]
  %v3134 = vld [vmem:[%s7 + $0x20] sm:$0xff]
  %v3135 = vld [vmem:[%s7 + $0x28] sm:$0xff]
  %v3136 = vld [vmem:[%s7 + $0x30] sm:$0xff]
  %v3137 = vld [vmem:[%s7 + $0x38] sm:$0xff]
  %v3138 = vld [vmem:[%s7 + $0x40] sm:$0xff]
  %v3139 = vld [vmem:[%s7 + $0x48] sm:$0xff]
  %v3140 = vld [vmem:[%s7 + $0x50] sm:$0xff]
  %v3141 = vld [vmem:[%s7 + $0x58] sm:$0xff]
  %v3142 = vld [vmem:[%s7 + $0x60] sm:$0xff]
  %v3143 = vld [vmem:[%s7 + $0x68] sm:$0xff]
  %v3144 = vld [vmem:[%s7 + $0x70] sm:$0xff]
  %v3145 = vld [vmem:[%s7 + $0x78] sm:$0xff]
  %v3146 = vld [vmem:[%s8] sm:$0x1]
  %v3148 = vperm.slane %v3146, 0
  %3150 = vmatpush.msra.mxu0 %v3145
  %3151 = vmatpush.msra.mxu0 %v3144
  %3152 = vmatpush.msra.mxu0 %v3143
  %3153 = vmatpush.msra.mxu0 %v3142
  %3154 = vmatpush.msra.mxu0 %v3141
  %3155 = vmatpush.msra.mxu0 %v3140
  %3156 = vmatpush.msra.mxu0 %v3139
  %3157 = vmatpush.msra.mxu0 %v3138
  %3158 = vmatpush.msra.mxu0 %v3137
  %3159 = vmatpush.msra.mxu0 %v3136
  %3160 = vmatpush.msra.mxu0 %v3135
  %3161 = vmatpush.msra.mxu0 %v3134
  %3162 = vmatpush.msra.mxu0 %v3133
  %3163 = vmatpush.msra.mxu0 %v3132
  %3164 = vmatpush.msra.mxu0 %v3131
  %3165 = vmatpush.msra.mxu0 %v3130
  %3166 = vmatmul.f32.gmra.mxu0 %v3129
  %v3167 = vpop.f32.mrf.mxu0
  %v3168 = vadd.f32 %v3148, %v3167
  %3169 = vdwg.mxu0
  %vm3170 = vcmask 23552
  %3171 = vst.msk [vmem:[%s9] sm:$0xff] %vm3170, %v3168
  // Predicated region
  $region38: #{lstm_model_forward.1} parent=0 // pred_check
    _
  $region39: #{lstm_model_forward.1} parent=0 // pred_check_branch
    %3173 = sbr.rel (0) target = $region41
  $region40: #{lstm_model_forward.1} parent=0 // pred_region
    _
  $region41: #{lstm_model_forward.1} parent=0 // pred_fallthru
    _
  // Predicated region
  $region42: #{lstm_model_forward.1} parent=0 // pred_check
    _
  $region43: #{lstm_model_forward.1} parent=0 // pred_check_branch
    %3175 = sbr.rel (0) target = $region45
  $region44: #{lstm_model_forward.1} parent=0 // pred_region
    _
  $region45: #{lstm_model_forward.1} parent=0 // pred_fallthru
    _

</llo_original>
